<compile_context>
chip_gen: v5e
topology: v5e:2x2
jax: 0.10.0
libtpu: 0.0.40
codegen_flags: <defaults>
</compile_context>

<pallas_src>
import functools

import jax
import jax.numpy as jnp
from jax import lax
from jax.experimental import pallas as pl
from jax.experimental.pallas import tpu as pltpu

# ----------------------------- module config --------------------------------
IN_DIM = 32
IN_POINTS = 8
N_GROUPS = 2
QUERY_DIM = 32
OUT_DIM = 32
OUT_POINTS = 8

EFF_IN = IN_DIM // N_GROUPS                  # 16
EFF_OUT = OUT_DIM // N_GROUPS                # 16
M_PARAMS = EFF_IN * EFF_OUT                  # 256
S_PARAMS = IN_POINTS * OUT_POINTS            # 64
TOTAL = M_PARAMS + S_PARAMS                  # 320
GEN_OUT = N_GROUPS * TOTAL                   # 640
FLAT_OUT = N_GROUPS * OUT_POINTS * EFF_OUT   # 256
GROUP_FEAT = IN_POINTS * EFF_IN              # 128
GROUP_FLAT = OUT_POINTS * EFF_OUT            # 128

LN_EPS = 1e-5                                # F.layer_norm default eps


def _ln_tokens(x):
    """One-pass LayerNorm per token (lane) over the leading two axes of (A,B,TN)."""
    inv_n = 1.0 / (x.shape[0] * x.shape[1])
    s = jnp.sum(x, axis=(0, 1), keepdims=True)
    s2 = jnp.sum(x * x, axis=(0, 1), keepdims=True)
    mean = s * inv_n
    var = s2 * inv_n - mean * mean
    return (x - mean) * jax.lax.rsqrt(var + LN_EPS)


def _layer_norm_last2(x):
    """LayerNorm over last two dims, no affine (reference only, two-pass)."""
    mean = jnp.mean(x, axis=(-2, -1), keepdims=True)
    var = jnp.mean(jnp.square(x - mean), axis=(-2, -1), keepdims=True)
    return (x - mean) * jax.lax.rsqrt(var + LN_EPS)


# ------------------------------- kernel -------------------------------------
def adaptive_mixing_kernel(x_ref, q_ref, wp_ref, bp_ref, wot_ref, bo_ref, o_ref):
    # x_ref  : (TN, G*P*C)   sampled features, token-major (native layout)
    # q_ref  : (TN, Dq)      queries, token-major
    # wp_ref : (GEN_OUT, Dq) parameter_generator.weight (PyTorch layout)
    # bp_ref : (GEN_OUT, 1)  parameter_generator.bias (column)
    # wot_ref: (FLAT_OUT, Dq) out_proj.weight, pre-transposed in wrapper
    # bo_ref : (1, Dq)       out_proj.bias (row)
    # o_ref  : (TN, Dq)      token-major output (query + projection)
    q = q_ref[...].astype(jnp.float32)                         # (tn, Dq)
    tn = q.shape[0]

    # generate mixing parameters token-minor on the MXU:  wp @ q.T
    #   params[j, n] = sum_d wp[j, d] * q[n, d] + bp[j]
    params = lax.dot_general(
        wp_ref[...].astype(jnp.float32), q,
        dimension_numbers=(((1,), (1,)), ((), ())),
        preferred_element_type=jnp.float32)                    # (GEN_OUT, tn)
    params = params + bp_ref[...].astype(jnp.float32)

    # bring x token-minor (tokens on lanes) — the only explicit transpose;
    # goes through the XLU, which is otherwise idle in this kernel.
    x_t = x_ref[...].astype(jnp.float32).T                     # (G*P*C, tn)

    wot = wot_ref[...].astype(jnp.float32)                     # (FLAT_OUT, Dq)

    proj = None
    for g in range(N_GROUPS):  # G == 2, static -> unrolled
        base = g * TOTAL
        # slice offsets (0, 256, 320, 576) are multiples of 8 -> sublane aligned
        m_g = params[base:base + M_PARAMS, :].reshape(EFF_IN, EFF_OUT, tn)
        s_g = params[base + M_PARAMS:base + TOTAL, :].reshape(
            OUT_POINTS, IN_POINTS, tn)
        x_g = x_t[g * GROUP_FEAT:(g + 1) * GROUP_FEAT, :].reshape(
            IN_POINTS, EFF_IN, tn)

        # adaptive channel mixing as a static accumulation loop over c
        # (no rank-4 broadcast temporary):
        #   acc[p, o, n] = sum_c x_g[p, c, n] * m_g[c, o, n]
        acc = x_g[:, 0, :][:, None, :] * m_g[0][None, :, :]
        for c in range(1, EFF_IN):
            acc = acc + x_g[:, c, :][:, None, :] * m_g[c][None, :, :]
        acc = jax.nn.relu(_ln_tokens(acc))                     # (P, Co, tn)

        # adaptive point mixing, accumulation loop over p:
        #   out[po, o, n] = sum_p s_g[po, p, n] * acc[p, o, n]
        out = s_g[:, 0, :][:, None, :] * acc[0][None, :, :]
        for p in range(1, IN_POINTS):
            out = out + s_g[:, p, :][:, None, :] * acc[p][None, :, :]
        out = jax.nn.relu(_ln_tokens(out))                     # (Po, Co, tn)

        flat_g = out.reshape(GROUP_FLAT, tn)                   # (128, tn)

        # per-group output projection, accumulated (replaces concat + one dot):
        #   contrib[n, d] = sum_f flat_g[f, n] * wo[d, g*128 + f]
        contrib = lax.dot_general(
            flat_g, wot[g * GROUP_FLAT:(g + 1) * GROUP_FLAT, :],
            dimension_numbers=(((0,), (0,)), ((), ())),
            preferred_element_type=jnp.float32)                # (tn, Dq)
        proj = contrib if proj is None else proj + contrib

    proj = proj + bo_ref[...].astype(jnp.float32)
    # residual + token-major store (last dim == full query dim)
    o_ref[...] = (q + proj).astype(o_ref.dtype)


# ------------------------------- wrapper -------------------------------------
@functools.partial(jax.jit, static_argnames=("token_tile",))
def adaptive_mixing(x, query, wp, bp, wo, bo, token_tile=512):
    """x: (B, Q, G, P, C), query: (B, Q, Dq) -> (B, Q, Dq)."""
    B, Q, G, P, C = x.shape
    assert G == N_GROUPS and P == IN_POINTS and C == EFF_IN
    assert token_tile % 128 == 0, "token tile must be a multiple of 128"
    N = B * Q
    # don't over-pad tiny inputs; shapes are static under jit
    tn = min(token_tile, max(128, pl.cdiv(N, 128) * 128))
    n_pad = pl.cdiv(N, tn) * tn

    # plain contiguous reshapes — NO wrapper-side HBM transposes of activations
    x2 = x.reshape(N, G * P * C)
    q2 = query.reshape(N, QUERY_DIM)
    if n_pad != N:  # padding copies; callers should prefer N % tn == 0
        x2 = jnp.pad(x2, ((0, n_pad - N), (0, 0)))
        q2 = jnp.pad(q2, ((0, n_pad - N), (0, 0)))
    bp2 = bp.reshape(GEN_OUT, 1)
    wo_t = wo.T                          # weight-sized transpose, negligible
    bo2 = bo.reshape(1, QUERY_DIM)

    out2 = pl.pallas_call(
        adaptive_mixing_kernel,
        out_shape=jax.ShapeDtypeStruct((n_pad, QUERY_DIM), query.dtype),
        grid_spec=pltpu.PrefetchScalarGridSpec(
            num_scalar_prefetch=0,
            grid=(n_pad // tn,),
            in_specs=[
                # NOTE: bump x/q to pipeline_mode=pl.Buffered(3) only if an
                # xprof trace shows exposed DMA at the chosen tn (kernel is
                # VPU-bound, so default double-buffering hides it).
                pl.BlockSpec((tn, G * P * C), lambda i: (i, 0)),
                pl.BlockSpec((tn, QUERY_DIM), lambda i: (i, 0)),
                pl.BlockSpec((GEN_OUT, QUERY_DIM), lambda i: (0, 0)),
                pl.BlockSpec((GEN_OUT, 1), lambda i: (0, 0)),
                pl.BlockSpec((FLAT_OUT, QUERY_DIM), lambda i: (0, 0)),
                pl.BlockSpec((1, QUERY_DIM), lambda i: (0, 0)),
            ],
            out_specs=pl.BlockSpec((tn, QUERY_DIM), lambda i: (i, 0)),
        ),
        compiler_params=pltpu.CompilerParams(
            dimension_semantics=("parallel",),      # shards grid steps on v7x
            vmem_limit_bytes=32 * 1024 * 1024,      # safe on v5e/v6e/v7x
        ),
    )(x2, q2, wp, bp2, wo_t, bo2)

    return out2[:N].reshape(B, Q, QUERY_DIM)


# --------------------------- pure-JAX reference ------------------------------
def adaptive_mixing_ref(x, query, wp, bp, wo, bo):
    B, Q, G, P, C = x.shape
    N = B * Q
    params = query.reshape(N, QUERY_DIM) @ wp.T + bp        # (N, G*TOTAL)
    params = params.reshape(N, G, TOTAL)
    M = params[:, :, :M_PARAMS].reshape(N, G, EFF_IN, EFF_OUT)
    S = params[:, :, M_PARAMS:].reshape(N, G, OUT_POINTS, IN_POINTS)
    out = x.reshape(N, G, P, C)
    out = jnp.einsum('ngpc,ngco->ngpo', out, M)
    out = jax.nn.relu(_layer_norm_last2(out))
    out = jnp.einsum('ngqp,ngpc->ngqc', S, out)
    out = jax.nn.relu(_layer_norm_last2(out))
    out = out.reshape(B, Q, -1)
    out = out @ wo.T + bo
    return query + out


# ----------------------------------- main ------------------------------------
if __name__ == "__main__":
    key = jax.random.PRNGKey(0)
    k_x, k_q, k_wp, k_bp, k_wo, k_bo = jax.random.split(key, 6)

    # deterministic synthetic parameters (PyTorch nn.Linear layouts)
    wp = 0.02 * jax.random.normal(k_wp, (GEN_OUT, QUERY_DIM), jnp.float32)
    bp = 0.02 * jax.random.normal(k_bp, (GEN_OUT,), jnp.float32)
    wo = 0.02 * jax.random.normal(k_wo, (QUERY_DIM, FLAT_OUT), jnp.float32)
    bo = 0.02 * jax.random.normal(k_bo, (QUERY_DIM,), jnp.float32)

    # check 1: tiny shape (single grid step)
    B, Q = 2, 8
    x = jax.random.normal(k_x, (B, Q, N_GROUPS, IN_POINTS, EFF_IN), jnp.float32)
    query = jax.random.normal(k_q, (B, Q, QUERY_DIM), jnp.float32)
    out = jax.block_until_ready(adaptive_mixing(x, query, wp, bp, wo, bo))
    ref = adaptive_mixing_ref(x, query, wp, bp, wo, bo)
    assert out.shape == (B, Q, QUERY_DIM)
    assert jnp.allclose(out, ref, rtol=1e-4, atol=1e-4), \
        float(jnp.max(jnp.abs(out - ref)))

    # check 2: multi-step grid + token-padding path
    B2, Q2 = 2, 300
    x_b = jax.random.normal(k_x, (B2, Q2, N_GROUPS, IN_POINTS, EFF_IN),
                            jnp.float32)
    q_b = jax.random.normal(k_q, (B2, Q2, QUERY_DIM), jnp.float32)
    out_b = jax.block_until_ready(
        adaptive_mixing(x_b, q_b, wp, bp, wo, bo, token_tile=256))
    ref_b = adaptive_mixing_ref(x_b, q_b, wp, bp, wo, bo)
    assert jnp.allclose(out_b, ref_b, rtol=1e-4, atol=1e-4), \
        float(jnp.max(jnp.abs(out_b - ref_b)))

    print("KERNEL_OK")
</pallas_src>

<mosaic_0001>
module attributes {stable_mosaic.version = 11 : i64} {
  func.func @adaptive_mixing_kernel(%arg0: i32, %arg1: memref<128x256xf32, #tpu.memory_space<vmem>>, %arg2: memref<128x32xf32, #tpu.memory_space<vmem>>, %arg3: memref<640x32xf32, #tpu.memory_space<vmem>>, %arg4: memref<640x1xf32, #tpu.memory_space<vmem>>, %arg5: memref<256x32xf32, #tpu.memory_space<vmem>>, %arg6: memref<1x32xf32, #tpu.memory_space<vmem>>, %arg7: memref<128x32xf32, #tpu.memory_space<vmem>>) attributes {dimension_semantics = [#tpu.dimension_semantics<parallel>], iteration_bounds = array<i64: 1>, scalar_prefetch = 0 : i64, scratch_operands = 0 : i64, tpu.core_type = #tpu.core_type<tc>, window_params = [{transform_indices = @transform_0, window_bounds = array<i64: 128, 256>}, {transform_indices = @transform_1, window_bounds = array<i64: 128, 32>}, {pipeline_mode = #tpu.pipeline_mode<synchronous>, transform_indices = @transform_2, window_bounds = array<i64: 640, 32>}, {pipeline_mode = #tpu.pipeline_mode<synchronous>, transform_indices = @transform_3, window_bounds = array<i64: 640, 1>}, {pipeline_mode = #tpu.pipeline_mode<synchronous>, transform_indices = @transform_4, window_bounds = array<i64: 256, 32>}, {pipeline_mode = #tpu.pipeline_mode<synchronous>, transform_indices = @transform_5, window_bounds = array<i64: 1, 32>}, {transform_indices = @transform_6, window_bounds = array<i64: 128, 32>}]} {
    %c0 = arith.constant 0 : index
    %c0_0 = arith.constant 0 : index
    %0 = vector.load %arg2[%c0, %c0_0] : memref<128x32xf32, #tpu.memory_space<vmem>>, vector<128x32xf32>
    %c0_1 = arith.constant 0 : index
    %c0_2 = arith.constant 0 : index
    %1 = vector.load %arg3[%c0_1, %c0_2] : memref<640x32xf32, #tpu.memory_space<vmem>>, vector<640x32xf32>
    %cst = arith.constant dense<0.000000e+00> : vector<640x128xf32>
    %2 = tpu.matmul %1, %0, %cst {dimension_numbers = #tpu.dot_dimension_numbers<[1], [1], [0], [0], [0, 0, 1, 0], [], []>} : vector<640x32xf32>, vector<128x32xf32>, vector<640x128xf32> -> vector<640x128xf32>
    %c0_3 = arith.constant 0 : index
    %c0_4 = arith.constant 0 : index
    %3 = vector.load %arg4[%c0_3, %c0_4] : memref<640x1xf32, #tpu.memory_space<vmem>>, vector<640x1xf32>
    %4 = vector.broadcast %3 : vector<640x1xf32> to vector<640x128xf32>
    %5 = arith.addf %2, %4 : vector<640x128xf32>
    %c0_5 = arith.constant 0 : index
    %c0_6 = arith.constant 0 : index
    %6 = vector.load %arg1[%c0_5, %c0_6] : memref<128x256xf32, #tpu.memory_space<vmem>>, vector<128x256xf32>
    %7 = tpu.transpose %6, [1, 0] : vector<128x256xf32> -> vector<256x128xf32>
    %c0_7 = arith.constant 0 : index
    %c0_8 = arith.constant 0 : index
    %8 = vector.load %arg5[%c0_7, %c0_8] : memref<256x32xf32, #tpu.memory_space<vmem>>, vector<256x32xf32>
    %9 = vector.extract_strided_slice %5 {offsets = [0, 0], sizes = [256, 128], strides = [1, 1]} : vector<640x128xf32> to vector<256x128xf32>
    %10 = vector.shape_cast %9 : vector<256x128xf32> to vector<16x16x128xf32>
    %11 = vector.extract_strided_slice %5 {offsets = [256, 0], sizes = [64, 128], strides = [1, 1]} : vector<640x128xf32> to vector<64x128xf32>
    %12 = vector.shape_cast %11 : vector<64x128xf32> to vector<8x8x128xf32>
    %13 = vector.extract_strided_slice %7 {offsets = [0, 0], sizes = [128, 128], strides = [1, 1]} : vector<256x128xf32> to vector<128x128xf32>
    %14 = vector.shape_cast %13 : vector<128x128xf32> to vector<8x16x128xf32>
    %15 = vector.extract_strided_slice %14 {offsets = [0, 0, 0], sizes = [8, 1, 128], strides = [1, 1, 1]} : vector<8x16x128xf32> to vector<8x1x128xf32>
    %16 = vector.shape_cast %15 : vector<8x1x128xf32> to vector<8x128xf32>
    %17 = vector.shape_cast %16 : vector<8x128xf32> to vector<8x1x128xf32>
    %18 = vector.extract_strided_slice %10 {offsets = [0, 0, 0], sizes = [1, 16, 128], strides = [1, 1, 1]} : vector<16x16x128xf32> to vector<1x16x128xf32>
    %19 = vector.shape_cast %18 : vector<1x16x128xf32> to vector<16x128xf32>
    %20 = vector.shape_cast %19 : vector<16x128xf32> to vector<1x16x128xf32>
    %21 = vector.broadcast %17 : vector<8x1x128xf32> to vector<8x16x128xf32>
    %22 = vector.broadcast %20 : vector<1x16x128xf32> to vector<8x16x128xf32>
    %23 = arith.mulf %21, %22 : vector<8x16x128xf32>
    %24 = vector.extract_strided_slice %14 {offsets = [0, 1, 0], sizes = [8, 1, 128], strides = [1, 1, 1]} : vector<8x16x128xf32> to vector<8x1x128xf32>
    %25 = vector.shape_cast %24 : vector<8x1x128xf32> to vector<8x128xf32>
    %26 = vector.shape_cast %25 : vector<8x128xf32> to vector<8x1x128xf32>
    %27 = vector.extract_strided_slice %10 {offsets = [1, 0, 0], sizes = [1, 16, 128], strides = [1, 1, 1]} : vector<16x16x128xf32> to vector<1x16x128xf32>
    %28 = vector.shape_cast %27 : vector<1x16x128xf32> to vector<16x128xf32>
    %29 = vector.shape_cast %28 : vector<16x128xf32> to vector<1x16x128xf32>
    %30 = vector.broadcast %26 : vector<8x1x128xf32> to vector<8x16x128xf32>
    %31 = vector.broadcast %29 : vector<1x16x128xf32> to vector<8x16x128xf32>
    %32 = arith.mulf %30, %31 : vector<8x16x128xf32>
    %33 = arith.addf %23, %32 : vector<8x16x128xf32>
    %34 = vector.extract_strided_slice %14 {offsets = [0, 2, 0], sizes = [8, 1, 128], strides = [1, 1, 1]} : vector<8x16x128xf32> to vector<8x1x128xf32>
    %35 = vector.shape_cast %34 : vector<8x1x128xf32> to vector<8x128xf32>
    %36 = vector.shape_cast %35 : vector<8x128xf32> to vector<8x1x128xf32>
    %37 = vector.extract_strided_slice %10 {offsets = [2, 0, 0], sizes = [1, 16, 128], strides = [1, 1, 1]} : vector<16x16x128xf32> to vector<1x16x128xf32>
    %38 = vector.shape_cast %37 : vector<1x16x128xf32> to vector<16x128xf32>
    %39 = vector.shape_cast %38 : vector<16x128xf32> to vector<1x16x128xf32>
    %40 = vector.broadcast %36 : vector<8x1x128xf32> to vector<8x16x128xf32>
    %41 = vector.broadcast %39 : vector<1x16x128xf32> to vector<8x16x128xf32>
    %42 = arith.mulf %40, %41 : vector<8x16x128xf32>
    %43 = arith.addf %33, %42 : vector<8x16x128xf32>
    %44 = vector.extract_strided_slice %14 {offsets = [0, 3, 0], sizes = [8, 1, 128], strides = [1, 1, 1]} : vector<8x16x128xf32> to vector<8x1x128xf32>
    %45 = vector.shape_cast %44 : vector<8x1x128xf32> to vector<8x128xf32>
    %46 = vector.shape_cast %45 : vector<8x128xf32> to vector<8x1x128xf32>
    %47 = vector.extract_strided_slice %10 {offsets = [3, 0, 0], sizes = [1, 16, 128], strides = [1, 1, 1]} : vector<16x16x128xf32> to vector<1x16x128xf32>
    %48 = vector.shape_cast %47 : vector<1x16x128xf32> to vector<16x128xf32>
    %49 = vector.shape_cast %48 : vector<16x128xf32> to vector<1x16x128xf32>
    %50 = vector.broadcast %46 : vector<8x1x128xf32> to vector<8x16x128xf32>
    %51 = vector.broadcast %49 : vector<1x16x128xf32> to vector<8x16x128xf32>
    %52 = arith.mulf %50, %51 : vector<8x16x128xf32>
    %53 = arith.addf %43, %52 : vector<8x16x128xf32>
    %54 = vector.extract_strided_slice %14 {offsets = [0, 4, 0], sizes = [8, 1, 128], strides = [1, 1, 1]} : vector<8x16x128xf32> to vector<8x1x128xf32>
    %55 = vector.shape_cast %54 : vector<8x1x128xf32> to vector<8x128xf32>
    %56 = vector.shape_cast %55 : vector<8x128xf32> to vector<8x1x128xf32>
    %57 = vector.extract_strided_slice %10 {offsets = [4, 0, 0], sizes = [1, 16, 128], strides = [1, 1, 1]} : vector<16x16x128xf32> to vector<1x16x128xf32>
    %58 = vector.shape_cast %57 : vector<1x16x128xf32> to vector<16x128xf32>
    %59 = vector.shape_cast %58 : vector<16x128xf32> to vector<1x16x128xf32>
    %60 = vector.broadcast %56 : vector<8x1x128xf32> to vector<8x16x128xf32>
    %61 = vector.broadcast %59 : vector<1x16x128xf32> to vector<8x16x128xf32>
    %62 = arith.mulf %60, %61 : vector<8x16x128xf32>
    %63 = arith.addf %53, %62 : vector<8x16x128xf32>
    %64 = vector.extract_strided_slice %14 {offsets = [0, 5, 0], sizes = [8, 1, 128], strides = [1, 1, 1]} : vector<8x16x128xf32> to vector<8x1x128xf32>
    %65 = vector.shape_cast %64 : vector<8x1x128xf32> to vector<8x128xf32>
    %66 = vector.shape_cast %65 : vector<8x128xf32> to vector<8x1x128xf32>
    %67 = vector.extract_strided_slice %10 {offsets = [5, 0, 0], sizes = [1, 16, 128], strides = [1, 1, 1]} : vector<16x16x128xf32> to vector<1x16x128xf32>
    %68 = vector.shape_cast %67 : vector<1x16x128xf32> to vector<16x128xf32>
    %69 = vector.shape_cast %68 : vector<16x128xf32> to vector<1x16x128xf32>
    %70 = vector.broadcast %66 : vector<8x1x128xf32> to vector<8x16x128xf32>
    %71 = vector.broadcast %69 : vector<1x16x128xf32> to vector<8x16x128xf32>
    %72 = arith.mulf %70, %71 : vector<8x16x128xf32>
    %73 = arith.addf %63, %72 : vector<8x16x128xf32>
    %74 = vector.extract_strided_slice %14 {offsets = [0, 6, 0], sizes = [8, 1, 128], strides = [1, 1, 1]} : vector<8x16x128xf32> to vector<8x1x128xf32>
    %75 = vector.shape_cast %74 : vector<8x1x128xf32> to vector<8x128xf32>
    %76 = vector.shape_cast %75 : vector<8x128xf32> to vector<8x1x128xf32>
    %77 = vector.extract_strided_slice %10 {offsets = [6, 0, 0], sizes = [1, 16, 128], strides = [1, 1, 1]} : vector<16x16x128xf32> to vector<1x16x128xf32>
    %78 = vector.shape_cast %77 : vector<1x16x128xf32> to vector<16x128xf32>
    %79 = vector.shape_cast %78 : vector<16x128xf32> to vector<1x16x128xf32>
    %80 = vector.broadcast %76 : vector<8x1x128xf32> to vector<8x16x128xf32>
    %81 = vector.broadcast %79 : vector<1x16x128xf32> to vector<8x16x128xf32>
    %82 = arith.mulf %80, %81 : vector<8x16x128xf32>
    %83 = arith.addf %73, %82 : vector<8x16x128xf32>
    %84 = vector.extract_strided_slice %14 {offsets = [0, 7, 0], sizes = [8, 1, 128], strides = [1, 1, 1]} : vector<8x16x128xf32> to vector<8x1x128xf32>
    %85 = vector.shape_cast %84 : vector<8x1x128xf32> to vector<8x128xf32>
    %86 = vector.shape_cast %85 : vector<8x128xf32> to vector<8x1x128xf32>
    %87 = vector.extract_strided_slice %10 {offsets = [7, 0, 0], sizes = [1, 16, 128], strides = [1, 1, 1]} : vector<16x16x128xf32> to vector<1x16x128xf32>
    %88 = vector.shape_cast %87 : vector<1x16x128xf32> to vector<16x128xf32>
    %89 = vector.shape_cast %88 : vector<16x128xf32> to vector<1x16x128xf32>
    %90 = vector.broadcast %86 : vector<8x1x128xf32> to vector<8x16x128xf32>
    %91 = vector.broadcast %89 : vector<1x16x128xf32> to vector<8x16x128xf32>
    %92 = arith.mulf %90, %91 : vector<8x16x128xf32>
    %93 = arith.addf %83, %92 : vector<8x16x128xf32>
    %94 = vector.extract_strided_slice %14 {offsets = [0, 8, 0], sizes = [8, 1, 128], strides = [1, 1, 1]} : vector<8x16x128xf32> to vector<8x1x128xf32>
    %95 = vector.shape_cast %94 : vector<8x1x128xf32> to vector<8x128xf32>
    %96 = vector.shape_cast %95 : vector<8x128xf32> to vector<8x1x128xf32>
    %97 = vector.extract_strided_slice %10 {offsets = [8, 0, 0], sizes = [1, 16, 128], strides = [1, 1, 1]} : vector<16x16x128xf32> to vector<1x16x128xf32>
    %98 = vector.shape_cast %97 : vector<1x16x128xf32> to vector<16x128xf32>
    %99 = vector.shape_cast %98 : vector<16x128xf32> to vector<1x16x128xf32>
    %100 = vector.broadcast %96 : vector<8x1x128xf32> to vector<8x16x128xf32>
    %101 = vector.broadcast %99 : vector<1x16x128xf32> to vector<8x16x128xf32>
    %102 = arith.mulf %100, %101 : vector<8x16x128xf32>
    %103 = arith.addf %93, %102 : vector<8x16x128xf32>
    %104 = vector.extract_strided_slice %14 {offsets = [0, 9, 0], sizes = [8, 1, 128], strides = [1, 1, 1]} : vector<8x16x128xf32> to vector<8x1x128xf32>
    %105 = vector.shape_cast %104 : vector<8x1x128xf32> to vector<8x128xf32>
    %106 = vector.shape_cast %105 : vector<8x128xf32> to vector<8x1x128xf32>
    %107 = vector.extract_strided_slice %10 {offsets = [9, 0, 0], sizes = [1, 16, 128], strides = [1, 1, 1]} : vector<16x16x128xf32> to vector<1x16x128xf32>
    %108 = vector.shape_cast %107 : vector<1x16x128xf32> to vector<16x128xf32>
    %109 = vector.shape_cast %108 : vector<16x128xf32> to vector<1x16x128xf32>
    %110 = vector.broadcast %106 : vector<8x1x128xf32> to vector<8x16x128xf32>
    %111 = vector.broadcast %109 : vector<1x16x128xf32> to vector<8x16x128xf32>
    %112 = arith.mulf %110, %111 : vector<8x16x128xf32>
    %113 = arith.addf %103, %112 : vector<8x16x128xf32>
    %114 = vector.extract_strided_slice %14 {offsets = [0, 10, 0], sizes = [8, 1, 128], strides = [1, 1, 1]} : vector<8x16x128xf32> to vector<8x1x128xf32>
    %115 = vector.shape_cast %114 : vector<8x1x128xf32> to vector<8x128xf32>
    %116 = vector.shape_cast %115 : vector<8x128xf32> to vector<8x1x128xf32>
    %117 = vector.extract_strided_slice %10 {offsets = [10, 0, 0], sizes = [1, 16, 128], strides = [1, 1, 1]} : vector<16x16x128xf32> to vector<1x16x128xf32>
    %118 = vector.shape_cast %117 : vector<1x16x128xf32> to vector<16x128xf32>
    %119 = vector.shape_cast %118 : vector<16x128xf32> to vector<1x16x128xf32>
    %120 = vector.broadcast %116 : vector<8x1x128xf32> to vector<8x16x128xf32>
    %121 = vector.broadcast %119 : vector<1x16x128xf32> to vector<8x16x128xf32>
    %122 = arith.mulf %120, %121 : vector<8x16x128xf32>
    %123 = arith.addf %113, %122 : vector<8x16x128xf32>
    %124 = vector.extract_strided_slice %14 {offsets = [0, 11, 0], sizes = [8, 1, 128], strides = [1, 1, 1]} : vector<8x16x128xf32> to vector<8x1x128xf32>
    %125 = vector.shape_cast %124 : vector<8x1x128xf32> to vector<8x128xf32>
    %126 = vector.shape_cast %125 : vector<8x128xf32> to vector<8x1x128xf32>
    %127 = vector.extract_strided_slice %10 {offsets = [11, 0, 0], sizes = [1, 16, 128], strides = [1, 1, 1]} : vector<16x16x128xf32> to vector<1x16x128xf32>
    %128 = vector.shape_cast %127 : vector<1x16x128xf32> to vector<16x128xf32>
    %129 = vector.shape_cast %128 : vector<16x128xf32> to vector<1x16x128xf32>
    %130 = vector.broadcast %126 : vector<8x1x128xf32> to vector<8x16x128xf32>
    %131 = vector.broadcast %129 : vector<1x16x128xf32> to vector<8x16x128xf32>
    %132 = arith.mulf %130, %131 : vector<8x16x128xf32>
    %133 = arith.addf %123, %132 : vector<8x16x128xf32>
    %134 = vector.extract_strided_slice %14 {offsets = [0, 12, 0], sizes = [8, 1, 128], strides = [1, 1, 1]} : vector<8x16x128xf32> to vector<8x1x128xf32>
    %135 = vector.shape_cast %134 : vector<8x1x128xf32> to vector<8x128xf32>
    %136 = vector.shape_cast %135 : vector<8x128xf32> to vector<8x1x128xf32>
    %137 = vector.extract_strided_slice %10 {offsets = [12, 0, 0], sizes = [1, 16, 128], strides = [1, 1, 1]} : vector<16x16x128xf32> to vector<1x16x128xf32>
    %138 = vector.shape_cast %137 : vector<1x16x128xf32> to vector<16x128xf32>
    %139 = vector.shape_cast %138 : vector<16x128xf32> to vector<1x16x128xf32>
    %140 = vector.broadcast %136 : vector<8x1x128xf32> to vector<8x16x128xf32>
    %141 = vector.broadcast %139 : vector<1x16x128xf32> to vector<8x16x128xf32>
    %142 = arith.mulf %140, %141 : vector<8x16x128xf32>
    %143 = arith.addf %133, %142 : vector<8x16x128xf32>
    %144 = vector.extract_strided_slice %14 {offsets = [0, 13, 0], sizes = [8, 1, 128], strides = [1, 1, 1]} : vector<8x16x128xf32> to vector<8x1x128xf32>
    %145 = vector.shape_cast %144 : vector<8x1x128xf32> to vector<8x128xf32>
    %146 = vector.shape_cast %145 : vector<8x128xf32> to vector<8x1x128xf32>
    %147 = vector.extract_strided_slice %10 {offsets = [13, 0, 0], sizes = [1, 16, 128], strides = [1, 1, 1]} : vector<16x16x128xf32> to vector<1x16x128xf32>
    %148 = vector.shape_cast %147 : vector<1x16x128xf32> to vector<16x128xf32>
    %149 = vector.shape_cast %148 : vector<16x128xf32> to vector<1x16x128xf32>
    %150 = vector.broadcast %146 : vector<8x1x128xf32> to vector<8x16x128xf32>
    %151 = vector.broadcast %149 : vector<1x16x128xf32> to vector<8x16x128xf32>
    %152 = arith.mulf %150, %151 : vector<8x16x128xf32>
    %153 = arith.addf %143, %152 : vector<8x16x128xf32>
    %154 = vector.extract_strided_slice %14 {offsets = [0, 14, 0], sizes = [8, 1, 128], strides = [1, 1, 1]} : vector<8x16x128xf32> to vector<8x1x128xf32>
    %155 = vector.shape_cast %154 : vector<8x1x128xf32> to vector<8x128xf32>
    %156 = vector.shape_cast %155 : vector<8x128xf32> to vector<8x1x128xf32>
    %157 = vector.extract_strided_slice %10 {offsets = [14, 0, 0], sizes = [1, 16, 128], strides = [1, 1, 1]} : vector<16x16x128xf32> to vector<1x16x128xf32>
    %158 = vector.shape_cast %157 : vector<1x16x128xf32> to vector<16x128xf32>
    %159 = vector.shape_cast %158 : vector<16x128xf32> to vector<1x16x128xf32>
    %160 = vector.broadcast %156 : vector<8x1x128xf32> to vector<8x16x128xf32>
    %161 = vector.broadcast %159 : vector<1x16x128xf32> to vector<8x16x128xf32>
    %162 = arith.mulf %160, %161 : vector<8x16x128xf32>
    %163 = arith.addf %153, %162 : vector<8x16x128xf32>
    %164 = vector.extract_strided_slice %14 {offsets = [0, 15, 0], sizes = [8, 1, 128], strides = [1, 1, 1]} : vector<8x16x128xf32> to vector<8x1x128xf32>
    %165 = vector.shape_cast %164 : vector<8x1x128xf32> to vector<8x128xf32>
    %166 = vector.shape_cast %165 : vector<8x128xf32> to vector<8x1x128xf32>
    %167 = vector.extract_strided_slice %10 {offsets = [15, 0, 0], sizes = [1, 16, 128], strides = [1, 1, 1]} : vector<16x16x128xf32> to vector<1x16x128xf32>
    %168 = vector.shape_cast %167 : vector<1x16x128xf32> to vector<16x128xf32>
    %169 = vector.shape_cast %168 : vector<16x128xf32> to vector<1x16x128xf32>
    %170 = vector.broadcast %166 : vector<8x1x128xf32> to vector<8x16x128xf32>
    %171 = vector.broadcast %169 : vector<1x16x128xf32> to vector<8x16x128xf32>
    %172 = arith.mulf %170, %171 : vector<8x16x128xf32>
    %173 = arith.addf %163, %172 : vector<8x16x128xf32>
    %cst_9 = arith.constant dense<0.000000e+00> : vector<128xf32>
    %174 = vector.multi_reduction <add>, %173, %cst_9 [0, 1] : vector<8x16x128xf32> to vector<128xf32>
    %175 = vector.shape_cast %174 : vector<128xf32> to vector<1x1x128xf32>
    %176 = arith.mulf %173, %173 : vector<8x16x128xf32>
    %cst_10 = arith.constant dense<0.000000e+00> : vector<128xf32>
    %177 = vector.multi_reduction <add>, %176, %cst_10 [0, 1] : vector<8x16x128xf32> to vector<128xf32>
    %178 = vector.shape_cast %177 : vector<128xf32> to vector<1x1x128xf32>
    %cst_11 = arith.constant 7.812500e-03 : f32
    %179 = vector.broadcast %cst_11 : f32 to vector<1x1x128xf32>
    %180 = arith.mulf %175, %179 : vector<1x1x128xf32>
    %cst_12 = arith.constant 7.812500e-03 : f32
    %181 = vector.broadcast %cst_12 : f32 to vector<1x1x128xf32>
    %182 = arith.mulf %178, %181 : vector<1x1x128xf32>
    %183 = arith.mulf %180, %180 : vector<1x1x128xf32>
    %184 = arith.subf %182, %183 : vector<1x1x128xf32>
    %185 = vector.broadcast %180 : vector<1x1x128xf32> to vector<8x16x128xf32>
    %186 = arith.subf %173, %185 : vector<8x16x128xf32>
    %cst_13 = arith.constant 9.99999974E-6 : f32
    %187 = vector.broadcast %cst_13 : f32 to vector<1x1x128xf32>
    %188 = arith.addf %184, %187 : vector<1x1x128xf32>
    %189 = math.rsqrt %188 : vector<1x1x128xf32>
    %190 = vector.broadcast %189 : vector<1x1x128xf32> to vector<8x16x128xf32>
    %191 = arith.mulf %186, %190 : vector<8x16x128xf32>
    %cst_14 = arith.constant 0.000000e+00 : f32
    %192 = vector.broadcast %cst_14 : f32 to vector<8x16x128xf32>
    %193 = arith.maximumf %191, %192 : vector<8x16x128xf32>
    %194 = vector.extract_strided_slice %12 {offsets = [0, 0, 0], sizes = [8, 1, 128], strides = [1, 1, 1]} : vector<8x8x128xf32> to vector<8x1x128xf32>
    %195 = vector.shape_cast %194 : vector<8x1x128xf32> to vector<8x128xf32>
    %196 = vector.shape_cast %195 : vector<8x128xf32> to vector<8x1x128xf32>
    %197 = vector.extract_strided_slice %193 {offsets = [0, 0, 0], sizes = [1, 16, 128], strides = [1, 1, 1]} : vector<8x16x128xf32> to vector<1x16x128xf32>
    %198 = vector.shape_cast %197 : vector<1x16x128xf32> to vector<16x128xf32>
    %199 = vector.shape_cast %198 : vector<16x128xf32> to vector<1x16x128xf32>
    %200 = vector.broadcast %196 : vector<8x1x128xf32> to vector<8x16x128xf32>
    %201 = vector.broadcast %199 : vector<1x16x128xf32> to vector<8x16x128xf32>
    %202 = arith.mulf %200, %201 : vector<8x16x128xf32>
    %203 = vector.extract_strided_slice %12 {offsets = [0, 1, 0], sizes = [8, 1, 128], strides = [1, 1, 1]} : vector<8x8x128xf32> to vector<8x1x128xf32>
    %204 = vector.shape_cast %203 : vector<8x1x128xf32> to vector<8x128xf32>
    %205 = vector.shape_cast %204 : vector<8x128xf32> to vector<8x1x128xf32>
    %206 = vector.extract_strided_slice %193 {offsets = [1, 0, 0], sizes = [1, 16, 128], strides = [1, 1, 1]} : vector<8x16x128xf32> to vector<1x16x128xf32>
    %207 = vector.shape_cast %206 : vector<1x16x128xf32> to vector<16x128xf32>
    %208 = vector.shape_cast %207 : vector<16x128xf32> to vector<1x16x128xf32>
    %209 = vector.broadcast %205 : vector<8x1x128xf32> to vector<8x16x128xf32>
    %210 = vector.broadcast %208 : vector<1x16x128xf32> to vector<8x16x128xf32>
    %211 = arith.mulf %209, %210 : vector<8x16x128xf32>
    %212 = arith.addf %202, %211 : vector<8x16x128xf32>
    %213 = vector.extract_strided_slice %12 {offsets = [0, 2, 0], sizes = [8, 1, 128], strides = [1, 1, 1]} : vector<8x8x128xf32> to vector<8x1x128xf32>
    %214 = vector.shape_cast %213 : vector<8x1x128xf32> to vector<8x128xf32>
    %215 = vector.shape_cast %214 : vector<8x128xf32> to vector<8x1x128xf32>
    %216 = vector.extract_strided_slice %193 {offsets = [2, 0, 0], sizes = [1, 16, 128], strides = [1, 1, 1]} : vector<8x16x128xf32> to vector<1x16x128xf32>
    %217 = vector.shape_cast %216 : vector<1x16x128xf32> to vector<16x128xf32>
    %218 = vector.shape_cast %217 : vector<16x128xf32> to vector<1x16x128xf32>
    %219 = vector.broadcast %215 : vector<8x1x128xf32> to vector<8x16x128xf32>
    %220 = vector.broadcast %218 : vector<1x16x128xf32> to vector<8x16x128xf32>
    %221 = arith.mulf %219, %220 : vector<8x16x128xf32>
    %222 = arith.addf %212, %221 : vector<8x16x128xf32>
    %223 = vector.extract_strided_slice %12 {offsets = [0, 3, 0], sizes = [8, 1, 128], strides = [1, 1, 1]} : vector<8x8x128xf32> to vector<8x1x128xf32>
    %224 = vector.shape_cast %223 : vector<8x1x128xf32> to vector<8x128xf32>
    %225 = vector.shape_cast %224 : vector<8x128xf32> to vector<8x1x128xf32>
    %226 = vector.extract_strided_slice %193 {offsets = [3, 0, 0], sizes = [1, 16, 128], strides = [1, 1, 1]} : vector<8x16x128xf32> to vector<1x16x128xf32>
    %227 = vector.shape_cast %226 : vector<1x16x128xf32> to vector<16x128xf32>
    %228 = vector.shape_cast %227 : vector<16x128xf32> to vector<1x16x128xf32>
    %229 = vector.broadcast %225 : vector<8x1x128xf32> to vector<8x16x128xf32>
    %230 = vector.broadcast %228 : vector<1x16x128xf32> to vector<8x16x128xf32>
    %231 = arith.mulf %229, %230 : vector<8x16x128xf32>
    %232 = arith.addf %222, %231 : vector<8x16x128xf32>
    %233 = vector.extract_strided_slice %12 {offsets = [0, 4, 0], sizes = [8, 1, 128], strides = [1, 1, 1]} : vector<8x8x128xf32> to vector<8x1x128xf32>
    %234 = vector.shape_cast %233 : vector<8x1x128xf32> to vector<8x128xf32>
    %235 = vector.shape_cast %234 : vector<8x128xf32> to vector<8x1x128xf32>
    %236 = vector.extract_strided_slice %193 {offsets = [4, 0, 0], sizes = [1, 16, 128], strides = [1, 1, 1]} : vector<8x16x128xf32> to vector<1x16x128xf32>
    %237 = vector.shape_cast %236 : vector<1x16x128xf32> to vector<16x128xf32>
    %238 = vector.shape_cast %237 : vector<16x128xf32> to vector<1x16x128xf32>
    %239 = vector.broadcast %235 : vector<8x1x128xf32> to vector<8x16x128xf32>
    %240 = vector.broadcast %238 : vector<1x16x128xf32> to vector<8x16x128xf32>
    %241 = arith.mulf %239, %240 : vector<8x16x128xf32>
    %242 = arith.addf %232, %241 : vector<8x16x128xf32>
    %243 = vector.extract_strided_slice %12 {offsets = [0, 5, 0], sizes = [8, 1, 128], strides = [1, 1, 1]} : vector<8x8x128xf32> to vector<8x1x128xf32>
    %244 = vector.shape_cast %243 : vector<8x1x128xf32> to vector<8x128xf32>
    %245 = vector.shape_cast %244 : vector<8x128xf32> to vector<8x1x128xf32>
    %246 = vector.extract_strided_slice %193 {offsets = [5, 0, 0], sizes = [1, 16, 128], strides = [1, 1, 1]} : vector<8x16x128xf32> to vector<1x16x128xf32>
    %247 = vector.shape_cast %246 : vector<1x16x128xf32> to vector<16x128xf32>
    %248 = vector.shape_cast %247 : vector<16x128xf32> to vector<1x16x128xf32>
    %249 = vector.broadcast %245 : vector<8x1x128xf32> to vector<8x16x128xf32>
    %250 = vector.broadcast %248 : vector<1x16x128xf32> to vector<8x16x128xf32>
    %251 = arith.mulf %249, %250 : vector<8x16x128xf32>
    %252 = arith.addf %242, %251 : vector<8x16x128xf32>
    %253 = vector.extract_strided_slice %12 {offsets = [0, 6, 0], sizes = [8, 1, 128], strides = [1, 1, 1]} : vector<8x8x128xf32> to vector<8x1x128xf32>
    %254 = vector.shape_cast %253 : vector<8x1x128xf32> to vector<8x128xf32>
    %255 = vector.shape_cast %254 : vector<8x128xf32> to vector<8x1x128xf32>
    %256 = vector.extract_strided_slice %193 {offsets = [6, 0, 0], sizes = [1, 16, 128], strides = [1, 1, 1]} : vector<8x16x128xf32> to vector<1x16x128xf32>
    %257 = vector.shape_cast %256 : vector<1x16x128xf32> to vector<16x128xf32>
    %258 = vector.shape_cast %257 : vector<16x128xf32> to vector<1x16x128xf32>
    %259 = vector.broadcast %255 : vector<8x1x128xf32> to vector<8x16x128xf32>
    %260 = vector.broadcast %258 : vector<1x16x128xf32> to vector<8x16x128xf32>
    %261 = arith.mulf %259, %260 : vector<8x16x128xf32>
    %262 = arith.addf %252, %261 : vector<8x16x128xf32>
    %263 = vector.extract_strided_slice %12 {offsets = [0, 7, 0], sizes = [8, 1, 128], strides = [1, 1, 1]} : vector<8x8x128xf32> to vector<8x1x128xf32>
    %264 = vector.shape_cast %263 : vector<8x1x128xf32> to vector<8x128xf32>
    %265 = vector.shape_cast %264 : vector<8x128xf32> to vector<8x1x128xf32>
    %266 = vector.extract_strided_slice %193 {offsets = [7, 0, 0], sizes = [1, 16, 128], strides = [1, 1, 1]} : vector<8x16x128xf32> to vector<1x16x128xf32>
    %267 = vector.shape_cast %266 : vector<1x16x128xf32> to vector<16x128xf32>
    %268 = vector.shape_cast %267 : vector<16x128xf32> to vector<1x16x128xf32>
    %269 = vector.broadcast %265 : vector<8x1x128xf32> to vector<8x16x128xf32>
    %270 = vector.broadcast %268 : vector<1x16x128xf32> to vector<8x16x128xf32>
    %271 = arith.mulf %269, %270 : vector<8x16x128xf32>
    %272 = arith.addf %262, %271 : vector<8x16x128xf32>
    %cst_15 = arith.constant dense<0.000000e+00> : vector<128xf32>
    %273 = vector.multi_reduction <add>, %272, %cst_15 [0, 1] : vector<8x16x128xf32> to vector<128xf32>
    %274 = vector.shape_cast %273 : vector<128xf32> to vector<1x1x128xf32>
    %275 = arith.mulf %272, %272 : vector<8x16x128xf32>
    %cst_16 = arith.constant dense<0.000000e+00> : vector<128xf32>
    %276 = vector.multi_reduction <add>, %275, %cst_16 [0, 1] : vector<8x16x128xf32> to vector<128xf32>
    %277 = vector.shape_cast %276 : vector<128xf32> to vector<1x1x128xf32>
    %cst_17 = arith.constant 7.812500e-03 : f32
    %278 = vector.broadcast %cst_17 : f32 to vector<1x1x128xf32>
    %279 = arith.mulf %274, %278 : vector<1x1x128xf32>
    %cst_18 = arith.constant 7.812500e-03 : f32
    %280 = vector.broadcast %cst_18 : f32 to vector<1x1x128xf32>
    %281 = arith.mulf %277, %280 : vector<1x1x128xf32>
    %282 = arith.mulf %279, %279 : vector<1x1x128xf32>
    %283 = arith.subf %281, %282 : vector<1x1x128xf32>
    %284 = vector.broadcast %279 : vector<1x1x128xf32> to vector<8x16x128xf32>
    %285 = arith.subf %272, %284 : vector<8x16x128xf32>
    %cst_19 = arith.constant 9.99999974E-6 : f32
    %286 = vector.broadcast %cst_19 : f32 to vector<1x1x128xf32>
    %287 = arith.addf %283, %286 : vector<1x1x128xf32>
    %288 = math.rsqrt %287 : vector<1x1x128xf32>
    %289 = vector.broadcast %288 : vector<1x1x128xf32> to vector<8x16x128xf32>
    %290 = arith.mulf %285, %289 : vector<8x16x128xf32>
    %cst_20 = arith.constant 0.000000e+00 : f32
    %291 = vector.broadcast %cst_20 : f32 to vector<8x16x128xf32>
    %292 = arith.maximumf %290, %291 : vector<8x16x128xf32>
    %293 = vector.shape_cast %292 : vector<8x16x128xf32> to vector<128x128xf32>
    %294 = vector.extract_strided_slice %8 {offsets = [0, 0], sizes = [128, 32], strides = [1, 1]} : vector<256x32xf32> to vector<128x32xf32>
    %cst_21 = arith.constant dense<0.000000e+00> : vector<128x32xf32>
    %295 = tpu.matmul %293, %294, %cst_21 {dimension_numbers = #tpu.dot_dimension_numbers<[0], [0], [1], [1], [0, 1, 1, 1], [], []>} : vector<128x128xf32>, vector<128x32xf32>, vector<128x32xf32> -> vector<128x32xf32>
    %296 = vector.extract_strided_slice %5 {offsets = [320, 0], sizes = [256, 128], strides = [1, 1]} : vector<640x128xf32> to vector<256x128xf32>
    %297 = vector.shape_cast %296 : vector<256x128xf32> to vector<16x16x128xf32>
    %298 = vector.extract_strided_slice %5 {offsets = [576, 0], sizes = [64, 128], strides = [1, 1]} : vector<640x128xf32> to vector<64x128xf32>
    %299 = vector.shape_cast %298 : vector<64x128xf32> to vector<8x8x128xf32>
    %300 = vector.extract_strided_slice %7 {offsets = [128, 0], sizes = [128, 128], strides = [1, 1]} : vector<256x128xf32> to vector<128x128xf32>
    %301 = vector.shape_cast %300 : vector<128x128xf32> to vector<8x16x128xf32>
    %302 = vector.extract_strided_slice %301 {offsets = [0, 0, 0], sizes = [8, 1, 128], strides = [1, 1, 1]} : vector<8x16x128xf32> to vector<8x1x128xf32>
    %303 = vector.shape_cast %302 : vector<8x1x128xf32> to vector<8x128xf32>
    %304 = vector.shape_cast %303 : vector<8x128xf32> to vector<8x1x128xf32>
    %305 = vector.extract_strided_slice %297 {offsets = [0, 0, 0], sizes = [1, 16, 128], strides = [1, 1, 1]} : vector<16x16x128xf32> to vector<1x16x128xf32>
    %306 = vector.shape_cast %305 : vector<1x16x128xf32> to vector<16x128xf32>
    %307 = vector.shape_cast %306 : vector<16x128xf32> to vector<1x16x128xf32>
    %308 = vector.broadcast %304 : vector<8x1x128xf32> to vector<8x16x128xf32>
    %309 = vector.broadcast %307 : vector<1x16x128xf32> to vector<8x16x128xf32>
    %310 = arith.mulf %308, %309 : vector<8x16x128xf32>
    %311 = vector.extract_strided_slice %301 {offsets = [0, 1, 0], sizes = [8, 1, 128], strides = [1, 1, 1]} : vector<8x16x128xf32> to vector<8x1x128xf32>
    %312 = vector.shape_cast %311 : vector<8x1x128xf32> to vector<8x128xf32>
    %313 = vector.shape_cast %312 : vector<8x128xf32> to vector<8x1x128xf32>
    %314 = vector.extract_strided_slice %297 {offsets = [1, 0, 0], sizes = [1, 16, 128], strides = [1, 1, 1]} : vector<16x16x128xf32> to vector<1x16x128xf32>
    %315 = vector.shape_cast %314 : vector<1x16x128xf32> to vector<16x128xf32>
    %316 = vector.shape_cast %315 : vector<16x128xf32> to vector<1x16x128xf32>
    %317 = vector.broadcast %313 : vector<8x1x128xf32> to vector<8x16x128xf32>
    %318 = vector.broadcast %316 : vector<1x16x128xf32> to vector<8x16x128xf32>
    %319 = arith.mulf %317, %318 : vector<8x16x128xf32>
    %320 = arith.addf %310, %319 : vector<8x16x128xf32>
    %321 = vector.extract_strided_slice %301 {offsets = [0, 2, 0], sizes = [8, 1, 128], strides = [1, 1, 1]} : vector<8x16x128xf32> to vector<8x1x128xf32>
    %322 = vector.shape_cast %321 : vector<8x1x128xf32> to vector<8x128xf32>
    %323 = vector.shape_cast %322 : vector<8x128xf32> to vector<8x1x128xf32>
    %324 = vector.extract_strided_slice %297 {offsets = [2, 0, 0], sizes = [1, 16, 128], strides = [1, 1, 1]} : vector<16x16x128xf32> to vector<1x16x128xf32>
    %325 = vector.shape_cast %324 : vector<1x16x128xf32> to vector<16x128xf32>
    %326 = vector.shape_cast %325 : vector<16x128xf32> to vector<1x16x128xf32>
    %327 = vector.broadcast %323 : vector<8x1x128xf32> to vector<8x16x128xf32>
    %328 = vector.broadcast %326 : vector<1x16x128xf32> to vector<8x16x128xf32>
    %329 = arith.mulf %327, %328 : vector<8x16x128xf32>
    %330 = arith.addf %320, %329 : vector<8x16x128xf32>
    %331 = vector.extract_strided_slice %301 {offsets = [0, 3, 0], sizes = [8, 1, 128], strides = [1, 1, 1]} : vector<8x16x128xf32> to vector<8x1x128xf32>
    %332 = vector.shape_cast %331 : vector<8x1x128xf32> to vector<8x128xf32>
    %333 = vector.shape_cast %332 : vector<8x128xf32> to vector<8x1x128xf32>
    %334 = vector.extract_strided_slice %297 {offsets = [3, 0, 0], sizes = [1, 16, 128], strides = [1, 1, 1]} : vector<16x16x128xf32> to vector<1x16x128xf32>
    %335 = vector.shape_cast %334 : vector<1x16x128xf32> to vector<16x128xf32>
    %336 = vector.shape_cast %335 : vector<16x128xf32> to vector<1x16x128xf32>
    %337 = vector.broadcast %333 : vector<8x1x128xf32> to vector<8x16x128xf32>
    %338 = vector.broadcast %336 : vector<1x16x128xf32> to vector<8x16x128xf32>
    %339 = arith.mulf %337, %338 : vector<8x16x128xf32>
    %340 = arith.addf %330, %339 : vector<8x16x128xf32>
    %341 = vector.extract_strided_slice %301 {offsets = [0, 4, 0], sizes = [8, 1, 128], strides = [1, 1, 1]} : vector<8x16x128xf32> to vector<8x1x128xf32>
    %342 = vector.shape_cast %341 : vector<8x1x128xf32> to vector<8x128xf32>
    %343 = vector.shape_cast %342 : vector<8x128xf32> to vector<8x1x128xf32>
    %344 = vector.extract_strided_slice %297 {offsets = [4, 0, 0], sizes = [1, 16, 128], strides = [1, 1, 1]} : vector<16x16x128xf32> to vector<1x16x128xf32>
    %345 = vector.shape_cast %344 : vector<1x16x128xf32> to vector<16x128xf32>
    %346 = vector.shape_cast %345 : vector<16x128xf32> to vector<1x16x128xf32>
    %347 = vector.broadcast %343 : vector<8x1x128xf32> to vector<8x16x128xf32>
    %348 = vector.broadcast %346 : vector<1x16x128xf32> to vector<8x16x128xf32>
    %349 = arith.mulf %347, %348 : vector<8x16x128xf32>
    %350 = arith.addf %340, %349 : vector<8x16x128xf32>
    %351 = vector.extract_strided_slice %301 {offsets = [0, 5, 0], sizes = [8, 1, 128], strides = [1, 1, 1]} : vector<8x16x128xf32> to vector<8x1x128xf32>
    %352 = vector.shape_cast %351 : vector<8x1x128xf32> to vector<8x128xf32>
    %353 = vector.shape_cast %352 : vector<8x128xf32> to vector<8x1x128xf32>
    %354 = vector.extract_strided_slice %297 {offsets = [5, 0, 0], sizes = [1, 16, 128], strides = [1, 1, 1]} : vector<16x16x128xf32> to vector<1x16x128xf32>
    %355 = vector.shape_cast %354 : vector<1x16x128xf32> to vector<16x128xf32>
    %356 = vector.shape_cast %355 : vector<16x128xf32> to vector<1x16x128xf32>
    %357 = vector.broadcast %353 : vector<8x1x128xf32> to vector<8x16x128xf32>
    %358 = vector.broadcast %356 : vector<1x16x128xf32> to vector<8x16x128xf32>
    %359 = arith.mulf %357, %358 : vector<8x16x128xf32>
    %360 = arith.addf %350, %359 : vector<8x16x128xf32>
    %361 = vector.extract_strided_slice %301 {offsets = [0, 6, 0], sizes = [8, 1, 128], strides = [1, 1, 1]} : vector<8x16x128xf32> to vector<8x1x128xf32>
    %362 = vector.shape_cast %361 : vector<8x1x128xf32> to vector<8x128xf32>
    %363 = vector.shape_cast %362 : vector<8x128xf32> to vector<8x1x128xf32>
    %364 = vector.extract_strided_slice %297 {offsets = [6, 0, 0], sizes = [1, 16, 128], strides = [1, 1, 1]} : vector<16x16x128xf32> to vector<1x16x128xf32>
    %365 = vector.shape_cast %364 : vector<1x16x128xf32> to vector<16x128xf32>
    %366 = vector.shape_cast %365 : vector<16x128xf32> to vector<1x16x128xf32>
    %367 = vector.broadcast %363 : vector<8x1x128xf32> to vector<8x16x128xf32>
    %368 = vector.broadcast %366 : vector<1x16x128xf32> to vector<8x16x128xf32>
    %369 = arith.mulf %367, %368 : vector<8x16x128xf32>
    %370 = arith.addf %360, %369 : vector<8x16x128xf32>
    %371 = vector.extract_strided_slice %301 {offsets = [0, 7, 0], sizes = [8, 1, 128], strides = [1, 1, 1]} : vector<8x16x128xf32> to vector<8x1x128xf32>
    %372 = vector.shape_cast %371 : vector<8x1x128xf32> to vector<8x128xf32>
    %373 = vector.shape_cast %372 : vector<8x128xf32> to vector<8x1x128xf32>
    %374 = vector.extract_strided_slice %297 {offsets = [7, 0, 0], sizes = [1, 16, 128], strides = [1, 1, 1]} : vector<16x16x128xf32> to vector<1x16x128xf32>
    %375 = vector.shape_cast %374 : vector<1x16x128xf32> to vector<16x128xf32>
    %376 = vector.shape_cast %375 : vector<16x128xf32> to vector<1x16x128xf32>
    %377 = vector.broadcast %373 : vector<8x1x128xf32> to vector<8x16x128xf32>
    %378 = vector.broadcast %376 : vector<1x16x128xf32> to vector<8x16x128xf32>
    %379 = arith.mulf %377, %378 : vector<8x16x128xf32>
    %380 = arith.addf %370, %379 : vector<8x16x128xf32>
    %381 = vector.extract_strided_slice %301 {offsets = [0, 8, 0], sizes = [8, 1, 128], strides = [1, 1, 1]} : vector<8x16x128xf32> to vector<8x1x128xf32>
    %382 = vector.shape_cast %381 : vector<8x1x128xf32> to vector<8x128xf32>
    %383 = vector.shape_cast %382 : vector<8x128xf32> to vector<8x1x128xf32>
    %384 = vector.extract_strided_slice %297 {offsets = [8, 0, 0], sizes = [1, 16, 128], strides = [1, 1, 1]} : vector<16x16x128xf32> to vector<1x16x128xf32>
    %385 = vector.shape_cast %384 : vector<1x16x128xf32> to vector<16x128xf32>
    %386 = vector.shape_cast %385 : vector<16x128xf32> to vector<1x16x128xf32>
    %387 = vector.broadcast %383 : vector<8x1x128xf32> to vector<8x16x128xf32>
    %388 = vector.broadcast %386 : vector<1x16x128xf32> to vector<8x16x128xf32>
    %389 = arith.mulf %387, %388 : vector<8x16x128xf32>
    %390 = arith.addf %380, %389 : vector<8x16x128xf32>
    %391 = vector.extract_strided_slice %301 {offsets = [0, 9, 0], sizes = [8, 1, 128], strides = [1, 1, 1]} : vector<8x16x128xf32> to vector<8x1x128xf32>
    %392 = vector.shape_cast %391 : vector<8x1x128xf32> to vector<8x128xf32>
    %393 = vector.shape_cast %392 : vector<8x128xf32> to vector<8x1x128xf32>
    %394 = vector.extract_strided_slice %297 {offsets = [9, 0, 0], sizes = [1, 16, 128], strides = [1, 1, 1]} : vector<16x16x128xf32> to vector<1x16x128xf32>
    %395 = vector.shape_cast %394 : vector<1x16x128xf32> to vector<16x128xf32>
    %396 = vector.shape_cast %395 : vector<16x128xf32> to vector<1x16x128xf32>
    %397 = vector.broadcast %393 : vector<8x1x128xf32> to vector<8x16x128xf32>
    %398 = vector.broadcast %396 : vector<1x16x128xf32> to vector<8x16x128xf32>
    %399 = arith.mulf %397, %398 : vector<8x16x128xf32>
    %400 = arith.addf %390, %399 : vector<8x16x128xf32>
    %401 = vector.extract_strided_slice %301 {offsets = [0, 10, 0], sizes = [8, 1, 128], strides = [1, 1, 1]} : vector<8x16x128xf32> to vector<8x1x128xf32>
    %402 = vector.shape_cast %401 : vector<8x1x128xf32> to vector<8x128xf32>
    %403 = vector.shape_cast %402 : vector<8x128xf32> to vector<8x1x128xf32>
    %404 = vector.extract_strided_slice %297 {offsets = [10, 0, 0], sizes = [1, 16, 128], strides = [1, 1, 1]} : vector<16x16x128xf32> to vector<1x16x128xf32>
    %405 = vector.shape_cast %404 : vector<1x16x128xf32> to vector<16x128xf32>
    %406 = vector.shape_cast %405 : vector<16x128xf32> to vector<1x16x128xf32>
    %407 = vector.broadcast %403 : vector<8x1x128xf32> to vector<8x16x128xf32>
    %408 = vector.broadcast %406 : vector<1x16x128xf32> to vector<8x16x128xf32>
    %409 = arith.mulf %407, %408 : vector<8x16x128xf32>
    %410 = arith.addf %400, %409 : vector<8x16x128xf32>
    %411 = vector.extract_strided_slice %301 {offsets = [0, 11, 0], sizes = [8, 1, 128], strides = [1, 1, 1]} : vector<8x16x128xf32> to vector<8x1x128xf32>
    %412 = vector.shape_cast %411 : vector<8x1x128xf32> to vector<8x128xf32>
    %413 = vector.shape_cast %412 : vector<8x128xf32> to vector<8x1x128xf32>
    %414 = vector.extract_strided_slice %297 {offsets = [11, 0, 0], sizes = [1, 16, 128], strides = [1, 1, 1]} : vector<16x16x128xf32> to vector<1x16x128xf32>
    %415 = vector.shape_cast %414 : vector<1x16x128xf32> to vector<16x128xf32>
    %416 = vector.shape_cast %415 : vector<16x128xf32> to vector<1x16x128xf32>
    %417 = vector.broadcast %413 : vector<8x1x128xf32> to vector<8x16x128xf32>
    %418 = vector.broadcast %416 : vector<1x16x128xf32> to vector<8x16x128xf32>
    %419 = arith.mulf %417, %418 : vector<8x16x128xf32>
    %420 = arith.addf %410, %419 : vector<8x16x128xf32>
    %421 = vector.extract_strided_slice %301 {offsets = [0, 12, 0], sizes = [8, 1, 128], strides = [1, 1, 1]} : vector<8x16x128xf32> to vector<8x1x128xf32>
    %422 = vector.shape_cast %421 : vector<8x1x128xf32> to vector<8x128xf32>
    %423 = vector.shape_cast %422 : vector<8x128xf32> to vector<8x1x128xf32>
    %424 = vector.extract_strided_slice %297 {offsets = [12, 0, 0], sizes = [1, 16, 128], strides = [1, 1, 1]} : vector<16x16x128xf32> to vector<1x16x128xf32>
    %425 = vector.shape_cast %424 : vector<1x16x128xf32> to vector<16x128xf32>
    %426 = vector.shape_cast %425 : vector<16x128xf32> to vector<1x16x128xf32>
    %427 = vector.broadcast %423 : vector<8x1x128xf32> to vector<8x16x128xf32>
    %428 = vector.broadcast %426 : vector<1x16x128xf32> to vector<8x16x128xf32>
    %429 = arith.mulf %427, %428 : vector<8x16x128xf32>
    %430 = arith.addf %420, %429 : vector<8x16x128xf32>
    %431 = vector.extract_strided_slice %301 {offsets = [0, 13, 0], sizes = [8, 1, 128], strides = [1, 1, 1]} : vector<8x16x128xf32> to vector<8x1x128xf32>
    %432 = vector.shape_cast %431 : vector<8x1x128xf32> to vector<8x128xf32>
    %433 = vector.shape_cast %432 : vector<8x128xf32> to vector<8x1x128xf32>
    %434 = vector.extract_strided_slice %297 {offsets = [13, 0, 0], sizes = [1, 16, 128], strides = [1, 1, 1]} : vector<16x16x128xf32> to vector<1x16x128xf32>
    %435 = vector.shape_cast %434 : vector<1x16x128xf32> to vector<16x128xf32>
    %436 = vector.shape_cast %435 : vector<16x128xf32> to vector<1x16x128xf32>
    %437 = vector.broadcast %433 : vector<8x1x128xf32> to vector<8x16x128xf32>
    %438 = vector.broadcast %436 : vector<1x16x128xf32> to vector<8x16x128xf32>
    %439 = arith.mulf %437, %438 : vector<8x16x128xf32>
    %440 = arith.addf %430, %439 : vector<8x16x128xf32>
    %441 = vector.extract_strided_slice %301 {offsets = [0, 14, 0], sizes = [8, 1, 128], strides = [1, 1, 1]} : vector<8x16x128xf32> to vector<8x1x128xf32>
    %442 = vector.shape_cast %441 : vector<8x1x128xf32> to vector<8x128xf32>
    %443 = vector.shape_cast %442 : vector<8x128xf32> to vector<8x1x128xf32>
    %444 = vector.extract_strided_slice %297 {offsets = [14, 0, 0], sizes = [1, 16, 128], strides = [1, 1, 1]} : vector<16x16x128xf32> to vector<1x16x128xf32>
    %445 = vector.shape_cast %444 : vector<1x16x128xf32> to vector<16x128xf32>
    %446 = vector.shape_cast %445 : vector<16x128xf32> to vector<1x16x128xf32>
    %447 = vector.broadcast %443 : vector<8x1x128xf32> to vector<8x16x128xf32>
    %448 = vector.broadcast %446 : vector<1x16x128xf32> to vector<8x16x128xf32>
    %449 = arith.mulf %447, %448 : vector<8x16x128xf32>
    %450 = arith.addf %440, %449 : vector<8x16x128xf32>
    %451 = vector.extract_strided_slice %301 {offsets = [0, 15, 0], sizes = [8, 1, 128], strides = [1, 1, 1]} : vector<8x16x128xf32> to vector<8x1x128xf32>
    %452 = vector.shape_cast %451 : vector<8x1x128xf32> to vector<8x128xf32>
    %453 = vector.shape_cast %452 : vector<8x128xf32> to vector<8x1x128xf32>
    %454 = vector.extract_strided_slice %297 {offsets = [15, 0, 0], sizes = [1, 16, 128], strides = [1, 1, 1]} : vector<16x16x128xf32> to vector<1x16x128xf32>
    %455 = vector.shape_cast %454 : vector<1x16x128xf32> to vector<16x128xf32>
    %456 = vector.shape_cast %455 : vector<16x128xf32> to vector<1x16x128xf32>
    %457 = vector.broadcast %453 : vector<8x1x128xf32> to vector<8x16x128xf32>
    %458 = vector.broadcast %456 : vector<1x16x128xf32> to vector<8x16x128xf32>
    %459 = arith.mulf %457, %458 : vector<8x16x128xf32>
    %460 = arith.addf %450, %459 : vector<8x16x128xf32>
    %cst_22 = arith.constant dense<0.000000e+00> : vector<128xf32>
    %461 = vector.multi_reduction <add>, %460, %cst_22 [0, 1] : vector<8x16x128xf32> to vector<128xf32>
    %462 = vector.shape_cast %461 : vector<128xf32> to vector<1x1x128xf32>
    %463 = arith.mulf %460, %460 : vector<8x16x128xf32>
    %cst_23 = arith.constant dense<0.000000e+00> : vector<128xf32>
    %464 = vector.multi_reduction <add>, %463, %cst_23 [0, 1] : vector<8x16x128xf32> to vector<128xf32>
    %465 = vector.shape_cast %464 : vector<128xf32> to vector<1x1x128xf32>
    %cst_24 = arith.constant 7.812500e-03 : f32
    %466 = vector.broadcast %cst_24 : f32 to vector<1x1x128xf32>
    %467 = arith.mulf %462, %466 : vector<1x1x128xf32>
    %cst_25 = arith.constant 7.812500e-03 : f32
    %468 = vector.broadcast %cst_25 : f32 to vector<1x1x128xf32>
    %469 = arith.mulf %465, %468 : vector<1x1x128xf32>
    %470 = arith.mulf %467, %467 : vector<1x1x128xf32>
    %471 = arith.subf %469, %470 : vector<1x1x128xf32>
    %472 = vector.broadcast %467 : vector<1x1x128xf32> to vector<8x16x128xf32>
    %473 = arith.subf %460, %472 : vector<8x16x128xf32>
    %cst_26 = arith.constant 9.99999974E-6 : f32
    %474 = vector.broadcast %cst_26 : f32 to vector<1x1x128xf32>
    %475 = arith.addf %471, %474 : vector<1x1x128xf32>
    %476 = math.rsqrt %475 : vector<1x1x128xf32>
    %477 = vector.broadcast %476 : vector<1x1x128xf32> to vector<8x16x128xf32>
    %478 = arith.mulf %473, %477 : vector<8x16x128xf32>
    %cst_27 = arith.constant 0.000000e+00 : f32
    %479 = vector.broadcast %cst_27 : f32 to vector<8x16x128xf32>
    %480 = arith.maximumf %478, %479 : vector<8x16x128xf32>
    %481 = vector.extract_strided_slice %299 {offsets = [0, 0, 0], sizes = [8, 1, 128], strides = [1, 1, 1]} : vector<8x8x128xf32> to vector<8x1x128xf32>
    %482 = vector.shape_cast %481 : vector<8x1x128xf32> to vector<8x128xf32>
    %483 = vector.shape_cast %482 : vector<8x128xf32> to vector<8x1x128xf32>
    %484 = vector.extract_strided_slice %480 {offsets = [0, 0, 0], sizes = [1, 16, 128], strides = [1, 1, 1]} : vector<8x16x128xf32> to vector<1x16x128xf32>
    %485 = vector.shape_cast %484 : vector<1x16x128xf32> to vector<16x128xf32>
    %486 = vector.shape_cast %485 : vector<16x128xf32> to vector<1x16x128xf32>
    %487 = vector.broadcast %483 : vector<8x1x128xf32> to vector<8x16x128xf32>
    %488 = vector.broadcast %486 : vector<1x16x128xf32> to vector<8x16x128xf32>
    %489 = arith.mulf %487, %488 : vector<8x16x128xf32>
    %490 = vector.extract_strided_slice %299 {offsets = [0, 1, 0], sizes = [8, 1, 128], strides = [1, 1, 1]} : vector<8x8x128xf32> to vector<8x1x128xf32>
    %491 = vector.shape_cast %490 : vector<8x1x128xf32> to vector<8x128xf32>
    %492 = vector.shape_cast %491 : vector<8x128xf32> to vector<8x1x128xf32>
    %493 = vector.extract_strided_slice %480 {offsets = [1, 0, 0], sizes = [1, 16, 128], strides = [1, 1, 1]} : vector<8x16x128xf32> to vector<1x16x128xf32>
    %494 = vector.shape_cast %493 : vector<1x16x128xf32> to vector<16x128xf32>
    %495 = vector.shape_cast %494 : vector<16x128xf32> to vector<1x16x128xf32>
    %496 = vector.broadcast %492 : vector<8x1x128xf32> to vector<8x16x128xf32>
    %497 = vector.broadcast %495 : vector<1x16x128xf32> to vector<8x16x128xf32>
    %498 = arith.mulf %496, %497 : vector<8x16x128xf32>
    %499 = arith.addf %489, %498 : vector<8x16x128xf32>
    %500 = vector.extract_strided_slice %299 {offsets = [0, 2, 0], sizes = [8, 1, 128], strides = [1, 1, 1]} : vector<8x8x128xf32> to vector<8x1x128xf32>
    %501 = vector.shape_cast %500 : vector<8x1x128xf32> to vector<8x128xf32>
    %502 = vector.shape_cast %501 : vector<8x128xf32> to vector<8x1x128xf32>
    %503 = vector.extract_strided_slice %480 {offsets = [2, 0, 0], sizes = [1, 16, 128], strides = [1, 1, 1]} : vector<8x16x128xf32> to vector<1x16x128xf32>
    %504 = vector.shape_cast %503 : vector<1x16x128xf32> to vector<16x128xf32>
    %505 = vector.shape_cast %504 : vector<16x128xf32> to vector<1x16x128xf32>
    %506 = vector.broadcast %502 : vector<8x1x128xf32> to vector<8x16x128xf32>
    %507 = vector.broadcast %505 : vector<1x16x128xf32> to vector<8x16x128xf32>
    %508 = arith.mulf %506, %507 : vector<8x16x128xf32>
    %509 = arith.addf %499, %508 : vector<8x16x128xf32>
    %510 = vector.extract_strided_slice %299 {offsets = [0, 3, 0], sizes = [8, 1, 128], strides = [1, 1, 1]} : vector<8x8x128xf32> to vector<8x1x128xf32>
    %511 = vector.shape_cast %510 : vector<8x1x128xf32> to vector<8x128xf32>
    %512 = vector.shape_cast %511 : vector<8x128xf32> to vector<8x1x128xf32>
    %513 = vector.extract_strided_slice %480 {offsets = [3, 0, 0], sizes = [1, 16, 128], strides = [1, 1, 1]} : vector<8x16x128xf32> to vector<1x16x128xf32>
    %514 = vector.shape_cast %513 : vector<1x16x128xf32> to vector<16x128xf32>
    %515 = vector.shape_cast %514 : vector<16x128xf32> to vector<1x16x128xf32>
    %516 = vector.broadcast %512 : vector<8x1x128xf32> to vector<8x16x128xf32>
    %517 = vector.broadcast %515 : vector<1x16x128xf32> to vector<8x16x128xf32>
    %518 = arith.mulf %516, %517 : vector<8x16x128xf32>
    %519 = arith.addf %509, %518 : vector<8x16x128xf32>
    %520 = vector.extract_strided_slice %299 {offsets = [0, 4, 0], sizes = [8, 1, 128], strides = [1, 1, 1]} : vector<8x8x128xf32> to vector<8x1x128xf32>
    %521 = vector.shape_cast %520 : vector<8x1x128xf32> to vector<8x128xf32>
    %522 = vector.shape_cast %521 : vector<8x128xf32> to vector<8x1x128xf32>
    %523 = vector.extract_strided_slice %480 {offsets = [4, 0, 0], sizes = [1, 16, 128], strides = [1, 1, 1]} : vector<8x16x128xf32> to vector<1x16x128xf32>
    %524 = vector.shape_cast %523 : vector<1x16x128xf32> to vector<16x128xf32>
    %525 = vector.shape_cast %524 : vector<16x128xf32> to vector<1x16x128xf32>
    %526 = vector.broadcast %522 : vector<8x1x128xf32> to vector<8x16x128xf32>
    %527 = vector.broadcast %525 : vector<1x16x128xf32> to vector<8x16x128xf32>
    %528 = arith.mulf %526, %527 : vector<8x16x128xf32>
    %529 = arith.addf %519, %528 : vector<8x16x128xf32>
    %530 = vector.extract_strided_slice %299 {offsets = [0, 5, 0], sizes = [8, 1, 128], strides = [1, 1, 1]} : vector<8x8x128xf32> to vector<8x1x128xf32>
    %531 = vector.shape_cast %530 : vector<8x1x128xf32> to vector<8x128xf32>
    %532 = vector.shape_cast %531 : vector<8x128xf32> to vector<8x1x128xf32>
    %533 = vector.extract_strided_slice %480 {offsets = [5, 0, 0], sizes = [1, 16, 128], strides = [1, 1, 1]} : vector<8x16x128xf32> to vector<1x16x128xf32>
    %534 = vector.shape_cast %533 : vector<1x16x128xf32> to vector<16x128xf32>
    %535 = vector.shape_cast %534 : vector<16x128xf32> to vector<1x16x128xf32>
    %536 = vector.broadcast %532 : vector<8x1x128xf32> to vector<8x16x128xf32>
    %537 = vector.broadcast %535 : vector<1x16x128xf32> to vector<8x16x128xf32>
    %538 = arith.mulf %536, %537 : vector<8x16x128xf32>
    %539 = arith.addf %529, %538 : vector<8x16x128xf32>
    %540 = vector.extract_strided_slice %299 {offsets = [0, 6, 0], sizes = [8, 1, 128], strides = [1, 1, 1]} : vector<8x8x128xf32> to vector<8x1x128xf32>
    %541 = vector.shape_cast %540 : vector<8x1x128xf32> to vector<8x128xf32>
    %542 = vector.shape_cast %541 : vector<8x128xf32> to vector<8x1x128xf32>
    %543 = vector.extract_strided_slice %480 {offsets = [6, 0, 0], sizes = [1, 16, 128], strides = [1, 1, 1]} : vector<8x16x128xf32> to vector<1x16x128xf32>
    %544 = vector.shape_cast %543 : vector<1x16x128xf32> to vector<16x128xf32>
    %545 = vector.shape_cast %544 : vector<16x128xf32> to vector<1x16x128xf32>
    %546 = vector.broadcast %542 : vector<8x1x128xf32> to vector<8x16x128xf32>
    %547 = vector.broadcast %545 : vector<1x16x128xf32> to vector<8x16x128xf32>
    %548 = arith.mulf %546, %547 : vector<8x16x128xf32>
    %549 = arith.addf %539, %548 : vector<8x16x128xf32>
    %550 = vector.extract_strided_slice %299 {offsets = [0, 7, 0], sizes = [8, 1, 128], strides = [1, 1, 1]} : vector<8x8x128xf32> to vector<8x1x128xf32>
    %551 = vector.shape_cast %550 : vector<8x1x128xf32> to vector<8x128xf32>
    %552 = vector.shape_cast %551 : vector<8x128xf32> to vector<8x1x128xf32>
    %553 = vector.extract_strided_slice %480 {offsets = [7, 0, 0], sizes = [1, 16, 128], strides = [1, 1, 1]} : vector<8x16x128xf32> to vector<1x16x128xf32>
    %554 = vector.shape_cast %553 : vector<1x16x128xf32> to vector<16x128xf32>
    %555 = vector.shape_cast %554 : vector<16x128xf32> to vector<1x16x128xf32>
    %556 = vector.broadcast %552 : vector<8x1x128xf32> to vector<8x16x128xf32>
    %557 = vector.broadcast %555 : vector<1x16x128xf32> to vector<8x16x128xf32>
    %558 = arith.mulf %556, %557 : vector<8x16x128xf32>
    %559 = arith.addf %549, %558 : vector<8x16x128xf32>
    %cst_28 = arith.constant dense<0.000000e+00> : vector<128xf32>
    %560 = vector.multi_reduction <add>, %559, %cst_28 [0, 1] : vector<8x16x128xf32> to vector<128xf32>
    %561 = vector.shape_cast %560 : vector<128xf32> to vector<1x1x128xf32>
    %562 = arith.mulf %559, %559 : vector<8x16x128xf32>
    %cst_29 = arith.constant dense<0.000000e+00> : vector<128xf32>
    %563 = vector.multi_reduction <add>, %562, %cst_29 [0, 1] : vector<8x16x128xf32> to vector<128xf32>
    %564 = vector.shape_cast %563 : vector<128xf32> to vector<1x1x128xf32>
    %cst_30 = arith.constant 7.812500e-03 : f32
    %565 = vector.broadcast %cst_30 : f32 to vector<1x1x128xf32>
    %566 = arith.mulf %561, %565 : vector<1x1x128xf32>
    %cst_31 = arith.constant 7.812500e-03 : f32
    %567 = vector.broadcast %cst_31 : f32 to vector<1x1x128xf32>
    %568 = arith.mulf %564, %567 : vector<1x1x128xf32>
    %569 = arith.mulf %566, %566 : vector<1x1x128xf32>
    %570 = arith.subf %568, %569 : vector<1x1x128xf32>
    %571 = vector.broadcast %566 : vector<1x1x128xf32> to vector<8x16x128xf32>
    %572 = arith.subf %559, %571 : vector<8x16x128xf32>
    %cst_32 = arith.constant 9.99999974E-6 : f32
    %573 = vector.broadcast %cst_32 : f32 to vector<1x1x128xf32>
    %574 = arith.addf %570, %573 : vector<1x1x128xf32>
    %575 = math.rsqrt %574 : vector<1x1x128xf32>
    %576 = vector.broadcast %575 : vector<1x1x128xf32> to vector<8x16x128xf32>
    %577 = arith.mulf %572, %576 : vector<8x16x128xf32>
    %cst_33 = arith.constant 0.000000e+00 : f32
    %578 = vector.broadcast %cst_33 : f32 to vector<8x16x128xf32>
    %579 = arith.maximumf %577, %578 : vector<8x16x128xf32>
    %580 = vector.shape_cast %579 : vector<8x16x128xf32> to vector<128x128xf32>
    %581 = vector.extract_strided_slice %8 {offsets = [128, 0], sizes = [128, 32], strides = [1, 1]} : vector<256x32xf32> to vector<128x32xf32>
    %cst_34 = arith.constant dense<0.000000e+00> : vector<128x32xf32>
    %582 = tpu.matmul %580, %581, %cst_34 {dimension_numbers = #tpu.dot_dimension_numbers<[0], [0], [1], [1], [0, 1, 1, 1], [], []>} : vector<128x128xf32>, vector<128x32xf32>, vector<128x32xf32> -> vector<128x32xf32>
    %583 = arith.addf %295, %582 : vector<128x32xf32>
    %c0_35 = arith.constant 0 : index
    %c0_36 = arith.constant 0 : index
    %584 = vector.load %arg6[%c0_35, %c0_36] : memref<1x32xf32, #tpu.memory_space<vmem>>, vector<1x32xf32>
    %585 = vector.broadcast %584 : vector<1x32xf32> to vector<128x32xf32>
    %586 = arith.addf %583, %585 : vector<128x32xf32>
    %587 = arith.addf %0, %586 : vector<128x32xf32>
    %c0_37 = arith.constant 0 : index
    %c0_38 = arith.constant 0 : index
    %588 = vector.load %arg7[%c0_37, %c0_38] : memref<128x32xf32, #tpu.memory_space<vmem>>, vector<128x32xf32>
    tpu.vector_store %arg7[%c0_37, %c0_38], %587 {strides = array<i32>} : memref<128x32xf32, #tpu.memory_space<vmem>>, vector<128x32xf32>,
    return
  }
  func.func @transform_0(%arg0: i32) -> (i32, i32) {
    %c0_i32 = arith.constant 0 : i32
    %c0_i32_0 = arith.constant 0 : i32
    return %arg0, %c0_i32 : i32, i32
  }
  func.func @transform_1(%arg0: i32) -> (i32, i32) {
    %c0_i32 = arith.constant 0 : i32
    %c0_i32_0 = arith.constant 0 : i32
    return %arg0, %c0_i32 : i32, i32
  }
  func.func @transform_2(%arg0: i32) -> (i32, i32) {
    %c0_i32 = arith.constant 0 : i32
    %c0_i32_0 = arith.constant 0 : i32
    %c0_i32_1 = arith.constant 0 : i32
    return %c0_i32, %c0_i32_0 : i32, i32
  }
  func.func @transform_3(%arg0: i32) -> (i32, i32) {
    %c0_i32 = arith.constant 0 : i32
    %c0_i32_0 = arith.constant 0 : i32
    %c0_i32_1 = arith.constant 0 : i32
    return %c0_i32, %c0_i32_0 : i32, i32
  }
  func.func @transform_4(%arg0: i32) -> (i32, i32) {
    %c0_i32 = arith.constant 0 : i32
    %c0_i32_0 = arith.constant 0 : i32
    %c0_i32_1 = arith.constant 0 : i32
    return %c0_i32, %c0_i32_0 : i32, i32
  }
  func.func @transform_5(%arg0: i32) -> (i32, i32) {
    %c0_i32 = arith.constant 0 : i32
    %c0_i32_0 = arith.constant 0 : i32
    %c0_i32_1 = arith.constant 0 : i32
    return %c0_i32, %c0_i32_0 : i32, i32
  }
  func.func @transform_6(%arg0: i32) -> (i32, i32) {
    %c0_i32 = arith.constant 0 : i32
    %c0_i32_0 = arith.constant 0 : i32
    return %arg0, %c0_i32 : i32, i32
  }
}

</mosaic_0001>

<llo_original>
// kernel: adaptive_mixing.1
$region0: #{adaptive_mixing.1}
  #allocation0 [shape = 'u32[]', space=smem, size = 0x4, offset = 0x4, fixed_abs, tag = 'smem constant byte address 0x4 - core index']
  #allocation1 [shape = 'u32[72,128]{1,0:T(1,128)}', space=vmem, size = 0x9000, scoped, tag = 'internal scratch']
  %s0 = inlined_call_operand.vmem [shape: f32[128,256], index: 0, kind: input, shape index: {}]
  %s1 = inlined_call_operand.vmem [shape: f32[128,32], index: 1, kind: input, shape index: {}]
  %s2 = inlined_call_operand.vmem [shape: f32[640,32], index: 2, kind: input, shape index: {}]
  %s3 = inlined_call_operand.vmem [shape: f32[640,1], index: 3, kind: input, shape index: {}]
  %s4 = inlined_call_operand.vmem [shape: f32[256,32], index: 4, kind: input, shape index: {}]
  %s5 = inlined_call_operand.vmem [shape: f32[1,32], index: 5, kind: input, shape index: {}]
  %s6 = inlined_call_operand.vmem [shape: f32[128,32], index: 6, kind: output, shape index: {}]
  %s7 = sld [smem:[#allocation0]]
  $region34: #{adaptive_mixing.1} parent=0
    _
  %s9 = ssub.s32 1, %s7
  %s10 = scalar_select 0, %s9, %s7
  // Predicated region
  $region2: #{adaptive_mixing.1} parent=0 // pred_check
    _
  $region3: #{adaptive_mixing.1} parent=0 // pred_check_branch
    %12 = sbr.rel (0) target = $region5
  $region4: #{adaptive_mixing.1} parent=0 // pred_region
    _
  $region5: #{adaptive_mixing.1} parent=0 // pred_fallthru
    _
  // Predicated region
  $region6: #{adaptive_mixing.1} parent=0 // pred_check
    _
  $region7: #{adaptive_mixing.1} parent=0 // pred_check_branch
    %14 = sbr.rel (0) target = $region9
  $region8: #{adaptive_mixing.1} parent=0 // pred_region
    _
  $region9: #{adaptive_mixing.1} parent=0 // pred_fallthru
    _
  // Predicated region
  $region10: #{adaptive_mixing.1} parent=0 // pred_check
    _
  $region11: #{adaptive_mixing.1} parent=0 // pred_check_branch
    %16 = sbr.rel (0) target = $region13
  $region12: #{adaptive_mixing.1} parent=0 // pred_region
    _
  $region13: #{adaptive_mixing.1} parent=0 // pred_fallthru
    _
  // Predicated region
  $region14: #{adaptive_mixing.1} parent=0 // pred_check
    _
  $region15: #{adaptive_mixing.1} parent=0 // pred_check_branch
    %18 = sbr.rel (0) target = $region17
  $region16: #{adaptive_mixing.1} parent=0 // pred_region
    _
  $region17: #{adaptive_mixing.1} parent=0 // pred_fallthru
    _
  // Predicated region
  $region18: #{adaptive_mixing.1} parent=0 // pred_check
    _
  $region19: #{adaptive_mixing.1} parent=0 // pred_check_branch
    %20 = sbr.rel (0) target = $region21
  $region20: #{adaptive_mixing.1} parent=0 // pred_region
    _
  $region21: #{adaptive_mixing.1} parent=0 // pred_fallthru
    _
  // Predicated region
  $region22: #{adaptive_mixing.1} parent=0 // pred_check
    _
  $region23: #{adaptive_mixing.1} parent=0 // pred_check_branch
    %22 = sbr.rel (0) target = $region25
  $region24: #{adaptive_mixing.1} parent=0 // pred_region
    _
  $region25: #{adaptive_mixing.1} parent=0 // pred_fallthru
    _
  %v23 = vld [vmem:[%s1] sm:$0xff]
  %v24 = vld [vmem:[%s1 + $0x8] sm:$0xff]
  %v25 = vld [vmem:[%s1 + $0x10] sm:$0xff]
  %v26 = vld [vmem:[%s1 + $0x18] sm:$0xff]
  %v27 = vld [vmem:[%s1 + $0x20] sm:$0xff]
  %v28 = vld [vmem:[%s1 + $0x28] sm:$0xff]
  %v29 = vld [vmem:[%s1 + $0x30] sm:$0xff]
  %v30 = vld [vmem:[%s1 + $0x38] sm:$0xff]
  %v31 = vld [vmem:[%s1 + $0x40] sm:$0xff]
  %v32 = vld [vmem:[%s1 + $0x48] sm:$0xff]
  %v33 = vld [vmem:[%s1 + $0x50] sm:$0xff]
  %v34 = vld [vmem:[%s1 + $0x58] sm:$0xff]
  %v35 = vld [vmem:[%s1 + $0x60] sm:$0xff]
  %v36 = vld [vmem:[%s1 + $0x68] sm:$0xff]
  %v37 = vld [vmem:[%s1 + $0x70] sm:$0xff]
  %v38 = vld [vmem:[%s1 + $0x78] sm:$0xff]
  %v39 = vld [vmem:[%s2] sm:$0xff]
  %v40 = vld [vmem:[%s2 + $0x8] sm:$0xff]
  %v41 = vld [vmem:[%s2 + $0x10] sm:$0xff]
  %v42 = vld [vmem:[%s2 + $0x18] sm:$0xff]
  %v43 = vld [vmem:[%s2 + $0x20] sm:$0xff]
  %v44 = vld [vmem:[%s2 + $0x28] sm:$0xff]
  %v45 = vld [vmem:[%s2 + $0x30] sm:$0xff]
  %v46 = vld [vmem:[%s2 + $0x38] sm:$0xff]
  %v47 = vld [vmem:[%s2 + $0x40] sm:$0xff]
  %v48 = vld [vmem:[%s2 + $0x48] sm:$0xff]
  %v49 = vld [vmem:[%s2 + $0x50] sm:$0xff]
  %v50 = vld [vmem:[%s2 + $0x58] sm:$0xff]
  %v51 = vld [vmem:[%s2 + $0x60] sm:$0xff]
  %v52 = vld [vmem:[%s2 + $0x68] sm:$0xff]
  %v53 = vld [vmem:[%s2 + $0x70] sm:$0xff]
  %v54 = vld [vmem:[%s2 + $0x78] sm:$0xff]
  %v55 = vld [vmem:[%s2 + $0x80] sm:$0xff]
  %v56 = vld [vmem:[%s2 + $0x88] sm:$0xff]
  %v57 = vld [vmem:[%s2 + $0x90] sm:$0xff]
  %v58 = vld [vmem:[%s2 + $0x98] sm:$0xff]
  %v59 = vld [vmem:[%s2 + $0xa0] sm:$0xff]
  %v60 = vld [vmem:[%s2 + $0xa8] sm:$0xff]
  %v61 = vld [vmem:[%s2 + $0xb0] sm:$0xff]
  %v62 = vld [vmem:[%s2 + $0xb8] sm:$0xff]
  %v63 = vld [vmem:[%s2 + $0xc0] sm:$0xff]
  %v64 = vld [vmem:[%s2 + $0xc8] sm:$0xff]
  %v65 = vld [vmem:[%s2 + $0xd0] sm:$0xff]
  %v66 = vld [vmem:[%s2 + $0xd8] sm:$0xff]
  %v67 = vld [vmem:[%s2 + $0xe0] sm:$0xff]
  %v68 = vld [vmem:[%s2 + $0xe8] sm:$0xff]
  %v69 = vld [vmem:[%s2 + $0xf0] sm:$0xff]
  %v70 = vld [vmem:[%s2 + $0xf8] sm:$0xff]
  %v71 = vld [vmem:[%s2 + $0x100] sm:$0xff]
  %v72 = vld [vmem:[%s2 + $0x108] sm:$0xff]
  %v73 = vld [vmem:[%s2 + $0x110] sm:$0xff]
  %v74 = vld [vmem:[%s2 + $0x118] sm:$0xff]
  %v75 = vld [vmem:[%s2 + $0x120] sm:$0xff]
  %v76 = vld [vmem:[%s2 + $0x128] sm:$0xff]
  %v77 = vld [vmem:[%s2 + $0x130] sm:$0xff]
  %v78 = vld [vmem:[%s2 + $0x138] sm:$0xff]
  %v79 = vld [vmem:[%s2 + $0x140] sm:$0xff]
  %v80 = vld [vmem:[%s2 + $0x148] sm:$0xff]
  %v81 = vld [vmem:[%s2 + $0x150] sm:$0xff]
  %v82 = vld [vmem:[%s2 + $0x158] sm:$0xff]
  %v83 = vld [vmem:[%s2 + $0x160] sm:$0xff]
  %v84 = vld [vmem:[%s2 + $0x168] sm:$0xff]
  %v85 = vld [vmem:[%s2 + $0x170] sm:$0xff]
  %v86 = vld [vmem:[%s2 + $0x178] sm:$0xff]
  %v87 = vld [vmem:[%s2 + $0x180] sm:$0xff]
  %v88 = vld [vmem:[%s2 + $0x188] sm:$0xff]
  %v89 = vld [vmem:[%s2 + $0x190] sm:$0xff]
  %v90 = vld [vmem:[%s2 + $0x198] sm:$0xff]
  %v91 = vld [vmem:[%s2 + $0x1a0] sm:$0xff]
  %v92 = vld [vmem:[%s2 + $0x1a8] sm:$0xff]
  %v93 = vld [vmem:[%s2 + $0x1b0] sm:$0xff]
  %v94 = vld [vmem:[%s2 + $0x1b8] sm:$0xff]
  %v95 = vld [vmem:[%s2 + $0x1c0] sm:$0xff]
  %v96 = vld [vmem:[%s2 + $0x1c8] sm:$0xff]
  %v97 = vld [vmem:[%s2 + $0x1d0] sm:$0xff]
  %v98 = vld [vmem:[%s2 + $0x1d8] sm:$0xff]
  %v99 = vld [vmem:[%s2 + $0x1e0] sm:$0xff]
  %v100 = vld [vmem:[%s2 + $0x1e8] sm:$0xff]
  %v101 = vld [vmem:[%s2 + $0x1f0] sm:$0xff]
  %v102 = vld [vmem:[%s2 + $0x1f8] sm:$0xff]
  %v103 = vld [vmem:[%s2 + $0x200] sm:$0xff]
  %v104 = vld [vmem:[%s2 + $0x208] sm:$0xff]
  %v105 = vld [vmem:[%s2 + $0x210] sm:$0xff]
  %v106 = vld [vmem:[%s2 + $0x218] sm:$0xff]
  %v107 = vld [vmem:[%s2 + $0x220] sm:$0xff]
  %v108 = vld [vmem:[%s2 + $0x228] sm:$0xff]
  %v109 = vld [vmem:[%s2 + $0x230] sm:$0xff]
  %v110 = vld [vmem:[%s2 + $0x238] sm:$0xff]
  %v111 = vld [vmem:[%s2 + $0x240] sm:$0xff]
  %v112 = vld [vmem:[%s2 + $0x248] sm:$0xff]
  %v113 = vld [vmem:[%s2 + $0x250] sm:$0xff]
  %v114 = vld [vmem:[%s2 + $0x258] sm:$0xff]
  %v115 = vld [vmem:[%s2 + $0x260] sm:$0xff]
  %v116 = vld [vmem:[%s2 + $0x268] sm:$0xff]
  %v117 = vld [vmem:[%s2 + $0x270] sm:$0xff]
  %v118 = vld [vmem:[%s2 + $0x278] sm:$0xff]
  %v119 = vld [vmem:[%s3] sm:$0xff]
  %v120 = vld [vmem:[%s3 + $0x8] sm:$0xff]
  %v121 = vld [vmem:[%s3 + $0x10] sm:$0xff]
  %v122 = vld [vmem:[%s3 + $0x18] sm:$0xff]
  %v123 = vld [vmem:[%s3 + $0x20] sm:$0xff]
  %v124 = vld [vmem:[%s3 + $0x28] sm:$0xff]
  %v125 = vld [vmem:[%s3 + $0x30] sm:$0xff]
  %v126 = vld [vmem:[%s3 + $0x38] sm:$0xff]
  %v127 = vld [vmem:[%s3 + $0x40] sm:$0xff]
  %v128 = vld [vmem:[%s3 + $0x48] sm:$0xff]
  %v129 = vld [vmem:[%s3 + $0x50] sm:$0xff]
  %v130 = vld [vmem:[%s3 + $0x58] sm:$0xff]
  %v131 = vld [vmem:[%s3 + $0x60] sm:$0xff]
  %v132 = vld [vmem:[%s3 + $0x68] sm:$0xff]
  %v133 = vld [vmem:[%s3 + $0x70] sm:$0xff]
  %v134 = vld [vmem:[%s3 + $0x78] sm:$0xff]
  %v135 = vld [vmem:[%s3 + $0x80] sm:$0xff]
  %v136 = vld [vmem:[%s3 + $0x88] sm:$0xff]
  %v137 = vld [vmem:[%s3 + $0x90] sm:$0xff]
  %v138 = vld [vmem:[%s3 + $0x98] sm:$0xff]
  %v139 = vld [vmem:[%s3 + $0xa0] sm:$0xff]
  %v140 = vld [vmem:[%s3 + $0xa8] sm:$0xff]
  %v141 = vld [vmem:[%s3 + $0xb0] sm:$0xff]
  %v142 = vld [vmem:[%s3 + $0xb8] sm:$0xff]
  %v143 = vld [vmem:[%s3 + $0xc0] sm:$0xff]
  %v144 = vld [vmem:[%s3 + $0xc8] sm:$0xff]
  %v145 = vld [vmem:[%s3 + $0xd0] sm:$0xff]
  %v146 = vld [vmem:[%s3 + $0xd8] sm:$0xff]
  %v147 = vld [vmem:[%s3 + $0xe0] sm:$0xff]
  %v148 = vld [vmem:[%s3 + $0xe8] sm:$0xff]
  %v149 = vld [vmem:[%s3 + $0xf0] sm:$0xff]
  %v150 = vld [vmem:[%s3 + $0xf8] sm:$0xff]
  %v151 = vld [vmem:[%s3 + $0x100] sm:$0xff]
  %v152 = vld [vmem:[%s3 + $0x108] sm:$0xff]
  %v153 = vld [vmem:[%s3 + $0x110] sm:$0xff]
  %v154 = vld [vmem:[%s3 + $0x118] sm:$0xff]
  %v155 = vld [vmem:[%s3 + $0x120] sm:$0xff]
  %v156 = vld [vmem:[%s3 + $0x128] sm:$0xff]
  %v157 = vld [vmem:[%s3 + $0x130] sm:$0xff]
  %v158 = vld [vmem:[%s3 + $0x138] sm:$0xff]
  %v159 = vld [vmem:[%s3 + $0x140] sm:$0xff]
  %v160 = vld [vmem:[%s3 + $0x148] sm:$0xff]
  %v161 = vld [vmem:[%s3 + $0x150] sm:$0xff]
  %v162 = vld [vmem:[%s3 + $0x158] sm:$0xff]
  %v163 = vld [vmem:[%s3 + $0x160] sm:$0xff]
  %v164 = vld [vmem:[%s3 + $0x168] sm:$0xff]
  %v165 = vld [vmem:[%s3 + $0x170] sm:$0xff]
  %v166 = vld [vmem:[%s3 + $0x178] sm:$0xff]
  %v167 = vld [vmem:[%s3 + $0x180] sm:$0xff]
  %v168 = vld [vmem:[%s3 + $0x188] sm:$0xff]
  %v169 = vld [vmem:[%s3 + $0x190] sm:$0xff]
  %v170 = vld [vmem:[%s3 + $0x198] sm:$0xff]
  %v171 = vld [vmem:[%s3 + $0x1a0] sm:$0xff]
  %v172 = vld [vmem:[%s3 + $0x1a8] sm:$0xff]
  %v173 = vld [vmem:[%s3 + $0x1b0] sm:$0xff]
  %v174 = vld [vmem:[%s3 + $0x1b8] sm:$0xff]
  %v175 = vld [vmem:[%s3 + $0x1c0] sm:$0xff]
  %v176 = vld [vmem:[%s3 + $0x1c8] sm:$0xff]
  %v177 = vld [vmem:[%s3 + $0x1d0] sm:$0xff]
  %v178 = vld [vmem:[%s3 + $0x1d8] sm:$0xff]
  %v179 = vld [vmem:[%s3 + $0x1e0] sm:$0xff]
  %v180 = vld [vmem:[%s3 + $0x1e8] sm:$0xff]
  %v181 = vld [vmem:[%s3 + $0x1f0] sm:$0xff]
  %v182 = vld [vmem:[%s3 + $0x1f8] sm:$0xff]
  %v183 = vld [vmem:[%s3 + $0x200] sm:$0xff]
  %v184 = vld [vmem:[%s3 + $0x208] sm:$0xff]
  %v185 = vld [vmem:[%s3 + $0x210] sm:$0xff]
  %v186 = vld [vmem:[%s3 + $0x218] sm:$0xff]
  %v187 = vld [vmem:[%s3 + $0x220] sm:$0xff]
  %v188 = vld [vmem:[%s3 + $0x228] sm:$0xff]
  %v189 = vld [vmem:[%s3 + $0x230] sm:$0xff]
  %v190 = vld [vmem:[%s3 + $0x238] sm:$0xff]
  %v191 = vld [vmem:[%s3 + $0x240] sm:$0xff]
  %v192 = vld [vmem:[%s3 + $0x248] sm:$0xff]
  %v193 = vld [vmem:[%s3 + $0x250] sm:$0xff]
  %v194 = vld [vmem:[%s3 + $0x258] sm:$0xff]
  %v195 = vld [vmem:[%s3 + $0x260] sm:$0xff]
  %v196 = vld [vmem:[%s3 + $0x268] sm:$0xff]
  %v197 = vld [vmem:[%s3 + $0x270] sm:$0xff]
  %v198 = vld [vmem:[%s3 + $0x278] sm:$0xff]
  %200 = vset.pattern.permute.xlu0 0
  %201 = vperm.xlu0 %200, %v119
  %v202 = vpop.permute.xlu0 %201
  %205 = vset.pattern.permute.xlu0 0
  %206 = vperm.xlu0 %205, %v120
  %v207 = vpop.permute.xlu0 %206
  %210 = vset.pattern.permute.xlu0 0
  %211 = vperm.xlu0 %210, %v121
  %v212 = vpop.permute.xlu0 %211
  %215 = vset.pattern.permute.xlu0 0
  %216 = vperm.xlu0 %215, %v122
  %v217 = vpop.permute.xlu0 %216
  %220 = vset.pattern.permute.xlu0 0
  %221 = vperm.xlu0 %220, %v123
  %v222 = vpop.permute.xlu0 %221
  %225 = vset.pattern.permute.xlu0 0
  %226 = vperm.xlu0 %225, %v124
  %v227 = vpop.permute.xlu0 %226
  %230 = vset.pattern.permute.xlu0 0
  %231 = vperm.xlu0 %230, %v125
  %v232 = vpop.permute.xlu0 %231
  %235 = vset.pattern.permute.xlu0 0
  %236 = vperm.xlu0 %235, %v126
  %v237 = vpop.permute.xlu0 %236
  %240 = vset.pattern.permute.xlu0 0
  %241 = vperm.xlu0 %240, %v127
  %v242 = vpop.permute.xlu0 %241
  %245 = vset.pattern.permute.xlu0 0
  %246 = vperm.xlu0 %245, %v128
  %v247 = vpop.permute.xlu0 %246
  %250 = vset.pattern.permute.xlu0 0
  %251 = vperm.xlu0 %250, %v129
  %v252 = vpop.permute.xlu0 %251
  %255 = vset.pattern.permute.xlu0 0
  %256 = vperm.xlu0 %255, %v130
  %v257 = vpop.permute.xlu0 %256
  %260 = vset.pattern.permute.xlu0 0
  %261 = vperm.xlu0 %260, %v131
  %v262 = vpop.permute.xlu0 %261
  %265 = vset.pattern.permute.xlu0 0
  %266 = vperm.xlu0 %265, %v132
  %v267 = vpop.permute.xlu0 %266
  %270 = vset.pattern.permute.xlu0 0
  %271 = vperm.xlu0 %270, %v133
  %v272 = vpop.permute.xlu0 %271
  %275 = vset.pattern.permute.xlu0 0
  %276 = vperm.xlu0 %275, %v134
  %v277 = vpop.permute.xlu0 %276
  %280 = vset.pattern.permute.xlu0 0
  %281 = vperm.xlu0 %280, %v135
  %v282 = vpop.permute.xlu0 %281
  %285 = vset.pattern.permute.xlu0 0
  %286 = vperm.xlu0 %285, %v136
  %v287 = vpop.permute.xlu0 %286
  %290 = vset.pattern.permute.xlu0 0
  %291 = vperm.xlu0 %290, %v137
  %v292 = vpop.permute.xlu0 %291
  %295 = vset.pattern.permute.xlu0 0
  %296 = vperm.xlu0 %295, %v138
  %v297 = vpop.permute.xlu0 %296
  %300 = vset.pattern.permute.xlu0 0
  %301 = vperm.xlu0 %300, %v139
  %v302 = vpop.permute.xlu0 %301
  %305 = vset.pattern.permute.xlu0 0
  %306 = vperm.xlu0 %305, %v140
  %v307 = vpop.permute.xlu0 %306
  %310 = vset.pattern.permute.xlu0 0
  %311 = vperm.xlu0 %310, %v141
  %v312 = vpop.permute.xlu0 %311
  %315 = vset.pattern.permute.xlu0 0
  %316 = vperm.xlu0 %315, %v142
  %v317 = vpop.permute.xlu0 %316
  %320 = vset.pattern.permute.xlu0 0
  %321 = vperm.xlu0 %320, %v143
  %v322 = vpop.permute.xlu0 %321
  %325 = vset.pattern.permute.xlu0 0
  %326 = vperm.xlu0 %325, %v144
  %v327 = vpop.permute.xlu0 %326
  %330 = vset.pattern.permute.xlu0 0
  %331 = vperm.xlu0 %330, %v145
  %v332 = vpop.permute.xlu0 %331
  %335 = vset.pattern.permute.xlu0 0
  %336 = vperm.xlu0 %335, %v146
  %v337 = vpop.permute.xlu0 %336
  %340 = vset.pattern.permute.xlu0 0
  %341 = vperm.xlu0 %340, %v147
  %v342 = vpop.permute.xlu0 %341
  %345 = vset.pattern.permute.xlu0 0
  %346 = vperm.xlu0 %345, %v148
  %v347 = vpop.permute.xlu0 %346
  %350 = vset.pattern.permute.xlu0 0
  %351 = vperm.xlu0 %350, %v149
  %v352 = vpop.permute.xlu0 %351
  %355 = vset.pattern.permute.xlu0 0
  %356 = vperm.xlu0 %355, %v150
  %v357 = vpop.permute.xlu0 %356
  %360 = vset.pattern.permute.xlu0 0
  %361 = vperm.xlu0 %360, %v151
  %v362 = vpop.permute.xlu0 %361
  %365 = vset.pattern.permute.xlu0 0
  %366 = vperm.xlu0 %365, %v152
  %v367 = vpop.permute.xlu0 %366
  %370 = vset.pattern.permute.xlu0 0
  %371 = vperm.xlu0 %370, %v153
  %v372 = vpop.permute.xlu0 %371
  %375 = vset.pattern.permute.xlu0 0
  %376 = vperm.xlu0 %375, %v154
  %v377 = vpop.permute.xlu0 %376
  %380 = vset.pattern.permute.xlu0 0
  %381 = vperm.xlu0 %380, %v155
  %v382 = vpop.permute.xlu0 %381
  %385 = vset.pattern.permute.xlu0 0
  %386 = vperm.xlu0 %385, %v156
  %v387 = vpop.permute.xlu0 %386
  %390 = vset.pattern.permute.xlu0 0
  %391 = vperm.xlu0 %390, %v157
  %v392 = vpop.permute.xlu0 %391
  %395 = vset.pattern.permute.xlu0 0
  %396 = vperm.xlu0 %395, %v158
  %v397 = vpop.permute.xlu0 %396
  %400 = vset.pattern.permute.xlu0 0
  %401 = vperm.xlu0 %400, %v159
  %v402 = vpop.permute.xlu0 %401
  %405 = vset.pattern.permute.xlu0 0
  %406 = vperm.xlu0 %405, %v160
  %v407 = vpop.permute.xlu0 %406
  %410 = vset.pattern.permute.xlu0 0
  %411 = vperm.xlu0 %410, %v161
  %v412 = vpop.permute.xlu0 %411
  %415 = vset.pattern.permute.xlu0 0
  %416 = vperm.xlu0 %415, %v162
  %v417 = vpop.permute.xlu0 %416
  %420 = vset.pattern.permute.xlu0 0
  %421 = vperm.xlu0 %420, %v163
  %v422 = vpop.permute.xlu0 %421
  %425 = vset.pattern.permute.xlu0 0
  %426 = vperm.xlu0 %425, %v164
  %v427 = vpop.permute.xlu0 %426
  %430 = vset.pattern.permute.xlu0 0
  %431 = vperm.xlu0 %430, %v165
  %v432 = vpop.permute.xlu0 %431
  %435 = vset.pattern.permute.xlu0 0
  %436 = vperm.xlu0 %435, %v166
  %v437 = vpop.permute.xlu0 %436
  %440 = vset.pattern.permute.xlu0 0
  %441 = vperm.xlu0 %440, %v167
  %v442 = vpop.permute.xlu0 %441
  %445 = vset.pattern.permute.xlu0 0
  %446 = vperm.xlu0 %445, %v168
  %v447 = vpop.permute.xlu0 %446
  %450 = vset.pattern.permute.xlu0 0
  %451 = vperm.xlu0 %450, %v169
  %v452 = vpop.permute.xlu0 %451
  %455 = vset.pattern.permute.xlu0 0
  %456 = vperm.xlu0 %455, %v170
  %v457 = vpop.permute.xlu0 %456
  %460 = vset.pattern.permute.xlu0 0
  %461 = vperm.xlu0 %460, %v171
  %v462 = vpop.permute.xlu0 %461
  %465 = vset.pattern.permute.xlu0 0
  %466 = vperm.xlu0 %465, %v172
  %v467 = vpop.permute.xlu0 %466
  %470 = vset.pattern.permute.xlu0 0
  %471 = vperm.xlu0 %470, %v173
  %v472 = vpop.permute.xlu0 %471
  %475 = vset.pattern.permute.xlu0 0
  %476 = vperm.xlu0 %475, %v174
  %v477 = vpop.permute.xlu0 %476
  %480 = vset.pattern.permute.xlu0 0
  %481 = vperm.xlu0 %480, %v175
  %v482 = vpop.permute.xlu0 %481
  %485 = vset.pattern.permute.xlu0 0
  %486 = vperm.xlu0 %485, %v176
  %v487 = vpop.permute.xlu0 %486
  %490 = vset.pattern.permute.xlu0 0
  %491 = vperm.xlu0 %490, %v177
  %v492 = vpop.permute.xlu0 %491
  %495 = vset.pattern.permute.xlu0 0
  %496 = vperm.xlu0 %495, %v178
  %v497 = vpop.permute.xlu0 %496
  %500 = vset.pattern.permute.xlu0 0
  %501 = vperm.xlu0 %500, %v179
  %v502 = vpop.permute.xlu0 %501
  %505 = vset.pattern.permute.xlu0 0
  %506 = vperm.xlu0 %505, %v180
  %v507 = vpop.permute.xlu0 %506
  %510 = vset.pattern.permute.xlu0 0
  %511 = vperm.xlu0 %510, %v181
  %v512 = vpop.permute.xlu0 %511
  %515 = vset.pattern.permute.xlu0 0
  %516 = vperm.xlu0 %515, %v182
  %v517 = vpop.permute.xlu0 %516
  %520 = vset.pattern.permute.xlu0 0
  %521 = vperm.xlu0 %520, %v183
  %v522 = vpop.permute.xlu0 %521
  %525 = vset.pattern.permute.xlu0 0
  %526 = vperm.xlu0 %525, %v184
  %v527 = vpop.permute.xlu0 %526
  %530 = vset.pattern.permute.xlu0 0
  %531 = vperm.xlu0 %530, %v185
  %v532 = vpop.permute.xlu0 %531
  %535 = vset.pattern.permute.xlu0 0
  %536 = vperm.xlu0 %535, %v186
  %v537 = vpop.permute.xlu0 %536
  %540 = vset.pattern.permute.xlu0 0
  %541 = vperm.xlu0 %540, %v187
  %v542 = vpop.permute.xlu0 %541
  %545 = vset.pattern.permute.xlu0 0
  %546 = vperm.xlu0 %545, %v188
  %v547 = vpop.permute.xlu0 %546
  %550 = vset.pattern.permute.xlu0 0
  %551 = vperm.xlu0 %550, %v189
  %v552 = vpop.permute.xlu0 %551
  %555 = vset.pattern.permute.xlu0 0
  %556 = vperm.xlu0 %555, %v190
  %v557 = vpop.permute.xlu0 %556
  %560 = vset.pattern.permute.xlu0 0
  %561 = vperm.xlu0 %560, %v191
  %v562 = vpop.permute.xlu0 %561
  %565 = vset.pattern.permute.xlu0 0
  %566 = vperm.xlu0 %565, %v192
  %v567 = vpop.permute.xlu0 %566
  %570 = vset.pattern.permute.xlu0 0
  %571 = vperm.xlu0 %570, %v193
  %v572 = vpop.permute.xlu0 %571
  %575 = vset.pattern.permute.xlu0 0
  %576 = vperm.xlu0 %575, %v194
  %v577 = vpop.permute.xlu0 %576
  %580 = vset.pattern.permute.xlu0 0
  %581 = vperm.xlu0 %580, %v195
  %v582 = vpop.permute.xlu0 %581
  %585 = vset.pattern.permute.xlu0 0
  %586 = vperm.xlu0 %585, %v196
  %v587 = vpop.permute.xlu0 %586
  %590 = vset.pattern.permute.xlu0 0
  %591 = vperm.xlu0 %590, %v197
  %v592 = vpop.permute.xlu0 %591
  %595 = vset.pattern.permute.xlu0 0
  %596 = vperm.xlu0 %595, %v198
  %v597 = vpop.permute.xlu0 %596
  %vm599 = vcmask 261120
  %v601 = vsel %vm599, %v39, 0
  %v604 = vsel %vm599, %v40, 0
  %v607 = vsel %vm599, %v41, 0
  %v610 = vsel %vm599, %v42, 0
  %v613 = vsel %vm599, %v43, 0
  %v616 = vsel %vm599, %v44, 0
  %v619 = vsel %vm599, %v45, 0
  %v622 = vsel %vm599, %v46, 0
  %v625 = vsel %vm599, %v47, 0
  %v628 = vsel %vm599, %v48, 0
  %v631 = vsel %vm599, %v49, 0
  %v634 = vsel %vm599, %v50, 0
  %v637 = vsel %vm599, %v51, 0
  %v640 = vsel %vm599, %v52, 0
  %v643 = vsel %vm599, %v53, 0
  %v646 = vsel %vm599, %v54, 0
  %v649 = vsel %vm599, %v55, 0
  %v652 = vsel %vm599, %v56, 0
  %v655 = vsel %vm599, %v57, 0
  %v658 = vsel %vm599, %v58, 0
  %v661 = vsel %vm599, %v59, 0
  %v664 = vsel %vm599, %v60, 0
  %v667 = vsel %vm599, %v61, 0
  %v670 = vsel %vm599, %v62, 0
  %v673 = vsel %vm599, %v63, 0
  %v676 = vsel %vm599, %v64, 0
  %v679 = vsel %vm599, %v65, 0
  %v682 = vsel %vm599, %v66, 0
  %v685 = vsel %vm599, %v67, 0
  %v688 = vsel %vm599, %v68, 0
  %v691 = vsel %vm599, %v69, 0
  %v694 = vsel %vm599, %v70, 0
  %v697 = vsel %vm599, %v71, 0
  %v700 = vsel %vm599, %v72, 0
  %v703 = vsel %vm599, %v73, 0
  %v706 = vsel %vm599, %v74, 0
  %v709 = vsel %vm599, %v75, 0
  %v712 = vsel %vm599, %v76, 0
  %v715 = vsel %vm599, %v77, 0
  %v718 = vsel %vm599, %v78, 0
  %v721 = vsel %vm599, %v79, 0
  %v724 = vsel %vm599, %v80, 0
  %v727 = vsel %vm599, %v81, 0
  %v730 = vsel %vm599, %v82, 0
  %v733 = vsel %vm599, %v83, 0
  %v736 = vsel %vm599, %v84, 0
  %v739 = vsel %vm599, %v85, 0
  %v742 = vsel %vm599, %v86, 0
  %v745 = vsel %vm599, %v87, 0
  %v748 = vsel %vm599, %v88, 0
  %v751 = vsel %vm599, %v89, 0
  %v754 = vsel %vm599, %v90, 0
  %v757 = vsel %vm599, %v91, 0
  %v760 = vsel %vm599, %v92, 0
  %v763 = vsel %vm599, %v93, 0
  %v766 = vsel %vm599, %v94, 0
  %v769 = vsel %vm599, %v95, 0
  %v772 = vsel %vm599, %v96, 0
  %v775 = vsel %vm599, %v97, 0
  %v778 = vsel %vm599, %v98, 0
  %v781 = vsel %vm599, %v99, 0
  %v784 = vsel %vm599, %v100, 0
  %v787 = vsel %vm599, %v101, 0
  %v790 = vsel %vm599, %v102, 0
  %v793 = vsel %vm599, %v103, 0
  %v796 = vsel %vm599, %v104, 0
  %v799 = vsel %vm599, %v105, 0
  %v802 = vsel %vm599, %v106, 0
  %v805 = vsel %vm599, %v107, 0
  %v808 = vsel %vm599, %v108, 0
  %v811 = vsel %vm599, %v109, 0
  %v814 = vsel %vm599, %v110, 0
  %v817 = vsel %vm599, %v111, 0
  %v820 = vsel %vm599, %v112, 0
  %v823 = vsel %vm599, %v113, 0
  %v826 = vsel %vm599, %v114, 0
  %v829 = vsel %vm599, %v115, 0
  %v832 = vsel %vm599, %v116, 0
  %v835 = vsel %vm599, %v117, 0
  %v838 = vsel %vm599, %v118, 0
  %v841 = vsel %vm599, %v23, 0
  %v844 = vsel %vm599, %v24, 0
  %v847 = vsel %vm599, %v25, 0
  %v850 = vsel %vm599, %v26, 0
  %v853 = vsel %vm599, %v27, 0
  %v856 = vsel %vm599, %v28, 0
  %v859 = vsel %vm599, %v29, 0
  %v862 = vsel %vm599, %v30, 0
  %v865 = vsel %vm599, %v31, 0
  %v868 = vsel %vm599, %v32, 0
  %v871 = vsel %vm599, %v33, 0
  %v874 = vsel %vm599, %v34, 0
  %v877 = vsel %vm599, %v35, 0
  %v880 = vsel %vm599, %v36, 0
  %v883 = vsel %vm599, %v37, 0
  %v886 = vsel %vm599, %v38, 0
  %888 = vmatpush.xpose.msra.mxu0 %v886
  %889 = vmatpush.xpose.msra.mxu0 %v883
  %890 = vmatpush.xpose.msra.mxu0 %v880
  %891 = vmatpush.xpose.msra.mxu0 %v877
  %892 = vmatpush.xpose.msra.mxu0 %v874
  %893 = vmatpush.xpose.msra.mxu0 %v871
  %894 = vmatpush.xpose.msra.mxu0 %v868
  %895 = vmatpush.xpose.msra.mxu0 %v865
  %896 = vmatpush.xpose.msra.mxu0 %v862
  %897 = vmatpush.xpose.msra.mxu0 %v859
  %898 = vmatpush.xpose.msra.mxu0 %v856
  %899 = vmatpush.xpose.msra.mxu0 %v853
  %900 = vmatpush.xpose.msra.mxu0 %v850
  %901 = vmatpush.xpose.msra.mxu0 %v847
  %902 = vmatpush.xpose.msra.mxu0 %v844
  %903 = vmatpush.xpose.msra.mxu0 %v841
  %904 = vmatmul.f32.gmra.mxu0 %v601
  %v905 = vpop.f32.mrf.mxu0
  %v906 = vadd.f32 %v202, %v905
  %907 = vmatmul.f32.gmra.mxu0 %v604
  %v908 = vpop.f32.mrf.mxu0
  %v909 = vadd.f32 %v207, %v908
  %910 = vmatmul.f32.gmra.mxu0 %v607
  %v911 = vpop.f32.mrf.mxu0
  %v912 = vadd.f32 %v212, %v911
  %913 = vmatmul.f32.gmra.mxu0 %v610
  %v914 = vpop.f32.mrf.mxu0
  %v915 = vadd.f32 %v217, %v914
  %916 = vmatmul.f32.gmra.mxu0 %v613
  %v917 = vpop.f32.mrf.mxu0
  %v918 = vadd.f32 %v222, %v917
  %919 = vmatmul.f32.gmra.mxu0 %v616
  %v920 = vpop.f32.mrf.mxu0
  %v921 = vadd.f32 %v227, %v920
  %922 = vmatmul.f32.gmra.mxu0 %v619
  %v923 = vpop.f32.mrf.mxu0
  %v924 = vadd.f32 %v232, %v923
  %925 = vmatmul.f32.gmra.mxu0 %v622
  %v926 = vpop.f32.mrf.mxu0
  %v927 = vadd.f32 %v237, %v926
  %928 = vmatmul.f32.gmra.mxu0 %v625
  %v929 = vpop.f32.mrf.mxu0
  %v930 = vadd.f32 %v242, %v929
  %931 = vmatmul.f32.gmra.mxu0 %v628
  %v932 = vpop.f32.mrf.mxu0
  %v933 = vadd.f32 %v247, %v932
  %934 = vmatmul.f32.gmra.mxu0 %v631
  %v935 = vpop.f32.mrf.mxu0
  %v936 = vadd.f32 %v252, %v935
  %937 = vmatmul.f32.gmra.mxu0 %v634
  %v938 = vpop.f32.mrf.mxu0
  %v939 = vadd.f32 %v257, %v938
  %940 = vmatmul.f32.gmra.mxu0 %v637
  %v941 = vpop.f32.mrf.mxu0
  %v942 = vadd.f32 %v262, %v941
  %943 = vmatmul.f32.gmra.mxu0 %v640
  %v944 = vpop.f32.mrf.mxu0
  %v945 = vadd.f32 %v267, %v944
  %946 = vmatmul.f32.gmra.mxu0 %v643
  %v947 = vpop.f32.mrf.mxu0
  %v948 = vadd.f32 %v272, %v947
  %949 = vmatmul.f32.gmra.mxu0 %v646
  %v950 = vpop.f32.mrf.mxu0
  %v951 = vadd.f32 %v277, %v950
  %952 = vmatmul.f32.gmra.mxu0 %v649
  %v953 = vpop.f32.mrf.mxu0
  %v954 = vadd.f32 %v282, %v953
  %955 = vmatmul.f32.gmra.mxu0 %v652
  %v956 = vpop.f32.mrf.mxu0
  %v957 = vadd.f32 %v287, %v956
  %958 = vmatmul.f32.gmra.mxu0 %v655
  %v959 = vpop.f32.mrf.mxu0
  %v960 = vadd.f32 %v292, %v959
  %961 = vmatmul.f32.gmra.mxu0 %v658
  %v962 = vpop.f32.mrf.mxu0
  %v963 = vadd.f32 %v297, %v962
  %964 = vmatmul.f32.gmra.mxu0 %v661
  %v965 = vpop.f32.mrf.mxu0
  %v966 = vadd.f32 %v302, %v965
  %967 = vmatmul.f32.gmra.mxu0 %v664
  %v968 = vpop.f32.mrf.mxu0
  %v969 = vadd.f32 %v307, %v968
  %970 = vmatmul.f32.gmra.mxu0 %v667
  %v971 = vpop.f32.mrf.mxu0
  %v972 = vadd.f32 %v312, %v971
  %973 = vmatmul.f32.gmra.mxu0 %v670
  %v974 = vpop.f32.mrf.mxu0
  %v975 = vadd.f32 %v317, %v974
  %976 = vmatmul.f32.gmra.mxu0 %v673
  %v977 = vpop.f32.mrf.mxu0
  %v978 = vadd.f32 %v322, %v977
  %979 = vmatmul.f32.gmra.mxu0 %v676
  %v980 = vpop.f32.mrf.mxu0
  %v981 = vadd.f32 %v327, %v980
  %982 = vmatmul.f32.gmra.mxu0 %v679
  %v983 = vpop.f32.mrf.mxu0
  %v984 = vadd.f32 %v332, %v983
  %985 = vmatmul.f32.gmra.mxu0 %v682
  %v986 = vpop.f32.mrf.mxu0
  %v987 = vadd.f32 %v337, %v986
  %988 = vmatmul.f32.gmra.mxu0 %v685
  %v989 = vpop.f32.mrf.mxu0
  %v990 = vadd.f32 %v342, %v989
  %991 = vmatmul.f32.gmra.mxu0 %v688
  %v992 = vpop.f32.mrf.mxu0
  %v993 = vadd.f32 %v347, %v992
  %994 = vmatmul.f32.gmra.mxu0 %v691
  %v995 = vpop.f32.mrf.mxu0
  %v996 = vadd.f32 %v352, %v995
  %997 = vmatmul.f32.gmra.mxu0 %v694
  %v998 = vpop.f32.mrf.mxu0
  %v999 = vadd.f32 %v357, %v998
  %1000 = vmatmul.f32.gmra.mxu0 %v697
  %v1001 = vpop.f32.mrf.mxu0
  %v1002 = vadd.f32 %v362, %v1001
  %1003 = vmatmul.f32.gmra.mxu0 %v700
  %v1004 = vpop.f32.mrf.mxu0
  %v1005 = vadd.f32 %v367, %v1004
  %1006 = vmatmul.f32.gmra.mxu0 %v703
  %v1007 = vpop.f32.mrf.mxu0
  %v1008 = vadd.f32 %v372, %v1007
  %1009 = vmatmul.f32.gmra.mxu0 %v706
  %v1010 = vpop.f32.mrf.mxu0
  %v1011 = vadd.f32 %v377, %v1010
  %1012 = vmatmul.f32.gmra.mxu0 %v709
  %v1013 = vpop.f32.mrf.mxu0
  %v1014 = vadd.f32 %v382, %v1013
  %1015 = vmatmul.f32.gmra.mxu0 %v712
  %v1016 = vpop.f32.mrf.mxu0
  %v1017 = vadd.f32 %v387, %v1016
  %1018 = vmatmul.f32.gmra.mxu0 %v715
  %v1019 = vpop.f32.mrf.mxu0
  %v1020 = vadd.f32 %v392, %v1019
  %1021 = vmatmul.f32.gmra.mxu0 %v718
  %v1022 = vpop.f32.mrf.mxu0
  %v1023 = vadd.f32 %v397, %v1022
  %1024 = vmatmul.f32.gmra.mxu0 %v721
  %v1025 = vpop.f32.mrf.mxu0
  %v1026 = vadd.f32 %v402, %v1025
  %1027 = vmatmul.f32.gmra.mxu0 %v724
  %v1028 = vpop.f32.mrf.mxu0
  %v1029 = vadd.f32 %v407, %v1028
  %1030 = vmatmul.f32.gmra.mxu0 %v727
  %v1031 = vpop.f32.mrf.mxu0
  %v1032 = vadd.f32 %v412, %v1031
  %1033 = vmatmul.f32.gmra.mxu0 %v730
  %v1034 = vpop.f32.mrf.mxu0
  %v1035 = vadd.f32 %v417, %v1034
  %1036 = vmatmul.f32.gmra.mxu0 %v733
  %v1037 = vpop.f32.mrf.mxu0
  %v1038 = vadd.f32 %v422, %v1037
  %1039 = vmatmul.f32.gmra.mxu0 %v736
  %v1040 = vpop.f32.mrf.mxu0
  %v1041 = vadd.f32 %v427, %v1040
  %1042 = vmatmul.f32.gmra.mxu0 %v739
  %v1043 = vpop.f32.mrf.mxu0
  %v1044 = vadd.f32 %v432, %v1043
  %1045 = vmatmul.f32.gmra.mxu0 %v742
  %v1046 = vpop.f32.mrf.mxu0
  %v1047 = vadd.f32 %v437, %v1046
  %1048 = vmatmul.f32.gmra.mxu0 %v745
  %v1049 = vpop.f32.mrf.mxu0
  %v1050 = vadd.f32 %v442, %v1049
  %1051 = vmatmul.f32.gmra.mxu0 %v748
  %v1052 = vpop.f32.mrf.mxu0
  %v1053 = vadd.f32 %v447, %v1052
  %1054 = vmatmul.f32.gmra.mxu0 %v751
  %v1055 = vpop.f32.mrf.mxu0
  %v1056 = vadd.f32 %v452, %v1055
  %1057 = vmatmul.f32.gmra.mxu0 %v754
  %v1058 = vpop.f32.mrf.mxu0
  %v1059 = vadd.f32 %v457, %v1058
  %1060 = vmatmul.f32.gmra.mxu0 %v757
  %v1061 = vpop.f32.mrf.mxu0
  %v1062 = vadd.f32 %v462, %v1061
  %1063 = vmatmul.f32.gmra.mxu0 %v760
  %v1064 = vpop.f32.mrf.mxu0
  %v1065 = vadd.f32 %v467, %v1064
  %1066 = vmatmul.f32.gmra.mxu0 %v763
  %v1067 = vpop.f32.mrf.mxu0
  %v1068 = vadd.f32 %v472, %v1067
  %1069 = vmatmul.f32.gmra.mxu0 %v766
  %v1070 = vpop.f32.mrf.mxu0
  %v1071 = vadd.f32 %v477, %v1070
  %1072 = vmatmul.f32.gmra.mxu0 %v769
  %v1073 = vpop.f32.mrf.mxu0
  %v1074 = vadd.f32 %v482, %v1073
  %1075 = vmatmul.f32.gmra.mxu0 %v772
  %v1076 = vpop.f32.mrf.mxu0
  %v1077 = vadd.f32 %v487, %v1076
  %1078 = vmatmul.f32.gmra.mxu0 %v775
  %v1079 = vpop.f32.mrf.mxu0
  %v1080 = vadd.f32 %v492, %v1079
  %1081 = vmatmul.f32.gmra.mxu0 %v778
  %v1082 = vpop.f32.mrf.mxu0
  %v1083 = vadd.f32 %v497, %v1082
  %1084 = vmatmul.f32.gmra.mxu0 %v781
  %v1085 = vpop.f32.mrf.mxu0
  %v1086 = vadd.f32 %v502, %v1085
  %1087 = vmatmul.f32.gmra.mxu0 %v784
  %v1088 = vpop.f32.mrf.mxu0
  %v1089 = vadd.f32 %v507, %v1088
  %1090 = vmatmul.f32.gmra.mxu0 %v787
  %v1091 = vpop.f32.mrf.mxu0
  %v1092 = vadd.f32 %v512, %v1091
  %1093 = vmatmul.f32.gmra.mxu0 %v790
  %v1094 = vpop.f32.mrf.mxu0
  %v1095 = vadd.f32 %v517, %v1094
  %1096 = vmatmul.f32.gmra.mxu0 %v793
  %v1097 = vpop.f32.mrf.mxu0
  %v1098 = vadd.f32 %v522, %v1097
  %1099 = vmatmul.f32.gmra.mxu0 %v796
  %v1100 = vpop.f32.mrf.mxu0
  %v1101 = vadd.f32 %v527, %v1100
  %1102 = vmatmul.f32.gmra.mxu0 %v799
  %v1103 = vpop.f32.mrf.mxu0
  %v1104 = vadd.f32 %v532, %v1103
  %1105 = vmatmul.f32.gmra.mxu0 %v802
  %v1106 = vpop.f32.mrf.mxu0
  %v1107 = vadd.f32 %v537, %v1106
  %1108 = vmatmul.f32.gmra.mxu0 %v805
  %v1109 = vpop.f32.mrf.mxu0
  %v1110 = vadd.f32 %v542, %v1109
  %1111 = vmatmul.f32.gmra.mxu0 %v808
  %v1112 = vpop.f32.mrf.mxu0
  %v1113 = vadd.f32 %v547, %v1112
  %1114 = vmatmul.f32.gmra.mxu0 %v811
  %v1115 = vpop.f32.mrf.mxu0
  %v1116 = vadd.f32 %v552, %v1115
  %1117 = vmatmul.f32.gmra.mxu0 %v814
  %v1118 = vpop.f32.mrf.mxu0
  %v1119 = vadd.f32 %v557, %v1118
  %1120 = vmatmul.f32.gmra.mxu0 %v817
  %v1121 = vpop.f32.mrf.mxu0
  %v1122 = vadd.f32 %v562, %v1121
  %1123 = vmatmul.f32.gmra.mxu0 %v820
  %v1124 = vpop.f32.mrf.mxu0
  %v1125 = vadd.f32 %v567, %v1124
  %1126 = vmatmul.f32.gmra.mxu0 %v823
  %v1127 = vpop.f32.mrf.mxu0
  %v1128 = vadd.f32 %v572, %v1127
  %1129 = vmatmul.f32.gmra.mxu0 %v826
  %v1130 = vpop.f32.mrf.mxu0
  %v1131 = vadd.f32 %v577, %v1130
  %1132 = vmatmul.f32.gmra.mxu0 %v829
  %v1133 = vpop.f32.mrf.mxu0
  %v1134 = vadd.f32 %v582, %v1133
  %1135 = vmatmul.f32.gmra.mxu0 %v832
  %v1136 = vpop.f32.mrf.mxu0
  %v1137 = vadd.f32 %v587, %v1136
  %1138 = vmatmul.f32.gmra.mxu0 %v835
  %v1139 = vpop.f32.mrf.mxu0
  %v1140 = vadd.f32 %v592, %v1139
  %1141 = vmatmul.f32.gmra.mxu0 %v838
  %v1142 = vpop.f32.mrf.mxu0
  %v1143 = vadd.f32 %v597, %v1142
  %1144 = vdwg.mxu0
  %v1145 = vld [vmem:[%s0] sm:$0xff]
  %v1146 = vld [vmem:[%s0 + $0x8] sm:$0xff]
  %v1147 = vld [vmem:[%s0 + $0x10] sm:$0xff]
  %v1148 = vld [vmem:[%s0 + $0x18] sm:$0xff]
  %v1149 = vld [vmem:[%s0 + $0x20] sm:$0xff]
  %v1150 = vld [vmem:[%s0 + $0x28] sm:$0xff]
  %v1151 = vld [vmem:[%s0 + $0x30] sm:$0xff]
  %v1152 = vld [vmem:[%s0 + $0x38] sm:$0xff]
  %v1153 = vld [vmem:[%s0 + $0x40] sm:$0xff]
  %v1154 = vld [vmem:[%s0 + $0x48] sm:$0xff]
  %v1155 = vld [vmem:[%s0 + $0x50] sm:$0xff]
  %v1156 = vld [vmem:[%s0 + $0x58] sm:$0xff]
  %v1157 = vld [vmem:[%s0 + $0x60] sm:$0xff]
  %v1158 = vld [vmem:[%s0 + $0x68] sm:$0xff]
  %v1159 = vld [vmem:[%s0 + $0x70] sm:$0xff]
  %v1160 = vld [vmem:[%s0 + $0x78] sm:$0xff]
  %v1161 = vld [vmem:[%s0 + $0x80] sm:$0xff]
  %v1162 = vld [vmem:[%s0 + $0x88] sm:$0xff]
  %v1163 = vld [vmem:[%s0 + $0x90] sm:$0xff]
  %v1164 = vld [vmem:[%s0 + $0x98] sm:$0xff]
  %v1165 = vld [vmem:[%s0 + $0xa0] sm:$0xff]
  %v1166 = vld [vmem:[%s0 + $0xa8] sm:$0xff]
  %v1167 = vld [vmem:[%s0 + $0xb0] sm:$0xff]
  %v1168 = vld [vmem:[%s0 + $0xb8] sm:$0xff]
  %v1169 = vld [vmem:[%s0 + $0xc0] sm:$0xff]
  %v1170 = vld [vmem:[%s0 + $0xc8] sm:$0xff]
  %v1171 = vld [vmem:[%s0 + $0xd0] sm:$0xff]
  %v1172 = vld [vmem:[%s0 + $0xd8] sm:$0xff]
  %v1173 = vld [vmem:[%s0 + $0xe0] sm:$0xff]
  %v1174 = vld [vmem:[%s0 + $0xe8] sm:$0xff]
  %v1175 = vld [vmem:[%s0 + $0xf0] sm:$0xff]
  %v1176 = vld [vmem:[%s0 + $0xf8] sm:$0xff]
  %1177 = vxpose.xlu0.b32.start [1/16] %v1145, 128
  %1178 = vxpose.xlu0.b32.cont [2/16] %v1147, 128
  %1179 = vxpose.xlu0.b32.cont [3/16] %v1149, 128
  %1180 = vxpose.xlu0.b32.cont [4/16] %v1151, 128
  %1181 = vxpose.xlu0.b32.cont [5/16] %v1153, 128
  %1182 = vxpose.xlu0.b32.cont [6/16] %v1155, 128
  %1183 = vxpose.xlu0.b32.cont [7/16] %v1157, 128
  %1184 = vxpose.xlu0.b32.cont [8/16] %v1159, 128
  %1185 = vxpose.xlu0.b32.cont [9/16] %v1161, 128
  %1186 = vxpose.xlu0.b32.cont [10/16] %v1163, 128
  %1187 = vxpose.xlu0.b32.cont [11/16] %v1165, 128
  %1188 = vxpose.xlu0.b32.cont [12/16] %v1167, 128
  %1189 = vxpose.xlu0.b32.cont [13/16] %v1169, 128
  %1190 = vxpose.xlu0.b32.cont [14/16] %v1171, 128
  %1191 = vxpose.xlu0.b32.cont [15/16] %v1173, 128
  %1192 = vxpose.xlu0.b32.end [16/16] %v1175, 128
  %v1193 = vpop.trf.xlu0
  %v1194 = vpop.trf.xlu0
  %v1195 = vpop.trf.xlu0
  %v1196 = vpop.trf.xlu0
  %v1197 = vpop.trf.xlu0
  %v1198 = vpop.trf.xlu0
  %v1199 = vpop.trf.xlu0
  %v1200 = vpop.trf.xlu0
  %v1201 = vpop.trf.xlu0
  %v1202 = vpop.trf.xlu0
  %v1203 = vpop.trf.xlu0
  %v1204 = vpop.trf.xlu0
  %v1205 = vpop.trf.xlu0
  %v1206 = vpop.trf.xlu0
  %v1207 = vpop.trf.xlu0
  %v1208 = vpop.trf.xlu0
  %1209 = vxpose.xlu0.b32.start [1/16] %v1146, 128
  %1210 = vxpose.xlu0.b32.cont [2/16] %v1148, 128
  %1211 = vxpose.xlu0.b32.cont [3/16] %v1150, 128
  %1212 = vxpose.xlu0.b32.cont [4/16] %v1152, 128
  %1213 = vxpose.xlu0.b32.cont [5/16] %v1154, 128
  %1214 = vxpose.xlu0.b32.cont [6/16] %v1156, 128
  %1215 = vxpose.xlu0.b32.cont [7/16] %v1158, 128
  %1216 = vxpose.xlu0.b32.cont [8/16] %v1160, 128
  %1217 = vxpose.xlu0.b32.cont [9/16] %v1162, 128
  %1218 = vxpose.xlu0.b32.cont [10/16] %v1164, 128
  %1219 = vxpose.xlu0.b32.cont [11/16] %v1166, 128
  %1220 = vxpose.xlu0.b32.cont [12/16] %v1168, 128
  %1221 = vxpose.xlu0.b32.cont [13/16] %v1170, 128
  %1222 = vxpose.xlu0.b32.cont [14/16] %v1172, 128
  %1223 = vxpose.xlu0.b32.cont [15/16] %v1174, 128
  %1224 = vxpose.xlu0.b32.end [16/16] %v1176, 128
  %v1225 = vpop.trf.xlu0
  %v1226 = vpop.trf.xlu0
  %v1227 = vpop.trf.xlu0
  %v1228 = vpop.trf.xlu0
  %v1229 = vpop.trf.xlu0
  %v1230 = vpop.trf.xlu0
  %v1231 = vpop.trf.xlu0
  %v1232 = vpop.trf.xlu0
  %v1233 = vpop.trf.xlu0
  %v1234 = vpop.trf.xlu0
  %v1235 = vpop.trf.xlu0
  %v1236 = vpop.trf.xlu0
  %v1237 = vpop.trf.xlu0
  %v1238 = vpop.trf.xlu0
  %v1239 = vpop.trf.xlu0
  %v1240 = vpop.trf.xlu0
  %v1241 = vld [vmem:[%s4] sm:$0xff]
  %v1242 = vld [vmem:[%s4 + $0x8] sm:$0xff]
  %v1243 = vld [vmem:[%s4 + $0x10] sm:$0xff]
  %v1244 = vld [vmem:[%s4 + $0x18] sm:$0xff]
  %v1245 = vld [vmem:[%s4 + $0x20] sm:$0xff]
  %v1246 = vld [vmem:[%s4 + $0x28] sm:$0xff]
  %v1247 = vld [vmem:[%s4 + $0x30] sm:$0xff]
  %v1248 = vld [vmem:[%s4 + $0x38] sm:$0xff]
  %v1249 = vld [vmem:[%s4 + $0x40] sm:$0xff]
  %v1250 = vld [vmem:[%s4 + $0x48] sm:$0xff]
  %v1251 = vld [vmem:[%s4 + $0x50] sm:$0xff]
  %v1252 = vld [vmem:[%s4 + $0x58] sm:$0xff]
  %v1253 = vld [vmem:[%s4 + $0x60] sm:$0xff]
  %v1254 = vld [vmem:[%s4 + $0x68] sm:$0xff]
  %v1255 = vld [vmem:[%s4 + $0x70] sm:$0xff]
  %v1256 = vld [vmem:[%s4 + $0x78] sm:$0xff]
  %v1257 = vld [vmem:[%s4 + $0x80] sm:$0xff]
  %v1258 = vld [vmem:[%s4 + $0x88] sm:$0xff]
  %v1259 = vld [vmem:[%s4 + $0x90] sm:$0xff]
  %v1260 = vld [vmem:[%s4 + $0x98] sm:$0xff]
  %v1261 = vld [vmem:[%s4 + $0xa0] sm:$0xff]
  %v1262 = vld [vmem:[%s4 + $0xa8] sm:$0xff]
  %v1263 = vld [vmem:[%s4 + $0xb0] sm:$0xff]
  %v1264 = vld [vmem:[%s4 + $0xb8] sm:$0xff]
  %v1265 = vld [vmem:[%s4 + $0xc0] sm:$0xff]
  %v1266 = vld [vmem:[%s4 + $0xc8] sm:$0xff]
  %v1267 = vld [vmem:[%s4 + $0xd0] sm:$0xff]
  %v1268 = vld [vmem:[%s4 + $0xd8] sm:$0xff]
  %v1269 = vld [vmem:[%s4 + $0xe0] sm:$0xff]
  %v1270 = vld [vmem:[%s4 + $0xe8] sm:$0xff]
  %v1271 = vld [vmem:[%s4 + $0xf0] sm:$0xff]
  %v1272 = vld [vmem:[%s4 + $0xf8] sm:$0xff]
  %v1273 = vperm.slane %v1193, 0
  %v1274 = vperm.slane %v1195, 0
  %v1275 = vperm.slane %v1197, 0
  %v1276 = vperm.slane %v1199, 0
  %v1277 = vperm.slane %v1201, 0
  %v1278 = vperm.slane %v1203, 0
  %v1279 = vperm.slane %v1205, 0
  %v1280 = vperm.slane %v1207, 0
  %v1281 = vmul.f32 %v1273, %v906
  %v1282 = vmul.f32 %v1273, %v909
  %v1283 = vmul.f32 %v1274, %v906
  %v1284 = vmul.f32 %v1274, %v909
  %v1285 = vmul.f32 %v1275, %v906
  %v1286 = vmul.f32 %v1275, %v909
  %v1287 = vmul.f32 %v1276, %v906
  %v1288 = vmul.f32 %v1276, %v909
  %v1289 = vmul.f32 %v1277, %v906
  %v1290 = vmul.f32 %v1277, %v909
  %v1291 = vmul.f32 %v1278, %v906
  %v1292 = vmul.f32 %v1278, %v909
  %v1293 = vmul.f32 %v1279, %v906
  %v1294 = vmul.f32 %v1279, %v909
  %v1295 = vmul.f32 %v1280, %v906
  %v1296 = vmul.f32 %v1280, %v909
  %v1297 = vperm.slane %v1193, 1
  %v1298 = vperm.slane %v1195, 1
  %v1299 = vperm.slane %v1197, 1
  %v1300 = vperm.slane %v1199, 1
  %v1301 = vperm.slane %v1201, 1
  %v1302 = vperm.slane %v1203, 1
  %v1303 = vperm.slane %v1205, 1
  %v1304 = vperm.slane %v1207, 1
  %v1305 = vmul.f32 %v1297, %v912
  %v1306 = vmul.f32 %v1297, %v915
  %v1307 = vmul.f32 %v1298, %v912
  %v1308 = vmul.f32 %v1298, %v915
  %v1309 = vmul.f32 %v1299, %v912
  %v1310 = vmul.f32 %v1299, %v915
  %v1311 = vmul.f32 %v1300, %v912
  %v1312 = vmul.f32 %v1300, %v915
  %v1313 = vmul.f32 %v1301, %v912
  %v1314 = vmul.f32 %v1301, %v915
  %v1315 = vmul.f32 %v1302, %v912
  %v1316 = vmul.f32 %v1302, %v915
  %v1317 = vmul.f32 %v1303, %v912
  %v1318 = vmul.f32 %v1303, %v915
  %v1319 = vmul.f32 %v1304, %v912
  %v1320 = vmul.f32 %v1304, %v915
  %v1321 = vadd.f32 %v1281, %v1305
  %v1322 = vadd.f32 %v1282, %v1306
  %v1323 = vadd.f32 %v1283, %v1307
  %v1324 = vadd.f32 %v1284, %v1308
  %v1325 = vadd.f32 %v1285, %v1309
  %v1326 = vadd.f32 %v1286, %v1310
  %v1327 = vadd.f32 %v1287, %v1311
  %v1328 = vadd.f32 %v1288, %v1312
  %v1329 = vadd.f32 %v1289, %v1313
  %v1330 = vadd.f32 %v1290, %v1314
  %v1331 = vadd.f32 %v1291, %v1315
  %v1332 = vadd.f32 %v1292, %v1316
  %v1333 = vadd.f32 %v1293, %v1317
  %v1334 = vadd.f32 %v1294, %v1318
  %v1335 = vadd.f32 %v1295, %v1319
  %v1336 = vadd.f32 %v1296, %v1320
  %v1337 = vperm.slane %v1193, 2
  %v1338 = vperm.slane %v1195, 2
  %v1339 = vperm.slane %v1197, 2
  %v1340 = vperm.slane %v1199, 2
  %v1341 = vperm.slane %v1201, 2
  %v1342 = vperm.slane %v1203, 2
  %v1343 = vperm.slane %v1205, 2
  %v1344 = vperm.slane %v1207, 2
  %v1345 = vmul.f32 %v1337, %v918
  %v1346 = vmul.f32 %v1337, %v921
  %v1347 = vmul.f32 %v1338, %v918
  %v1348 = vmul.f32 %v1338, %v921
  %v1349 = vmul.f32 %v1339, %v918
  %v1350 = vmul.f32 %v1339, %v921
  %v1351 = vmul.f32 %v1340, %v918
  %v1352 = vmul.f32 %v1340, %v921
  %v1353 = vmul.f32 %v1341, %v918
  %v1354 = vmul.f32 %v1341, %v921
  %v1355 = vmul.f32 %v1342, %v918
  %v1356 = vmul.f32 %v1342, %v921
  %v1357 = vmul.f32 %v1343, %v918
  %v1358 = vmul.f32 %v1343, %v921
  %v1359 = vmul.f32 %v1344, %v918
  %v1360 = vmul.f32 %v1344, %v921
  %v1361 = vadd.f32 %v1321, %v1345
  %v1362 = vadd.f32 %v1322, %v1346
  %v1363 = vadd.f32 %v1323, %v1347
  %v1364 = vadd.f32 %v1324, %v1348
  %v1365 = vadd.f32 %v1325, %v1349
  %v1366 = vadd.f32 %v1326, %v1350
  %v1367 = vadd.f32 %v1327, %v1351
  %v1368 = vadd.f32 %v1328, %v1352
  %v1369 = vadd.f32 %v1329, %v1353
  %v1370 = vadd.f32 %v1330, %v1354
  %v1371 = vadd.f32 %v1331, %v1355
  %v1372 = vadd.f32 %v1332, %v1356
  %v1373 = vadd.f32 %v1333, %v1357
  %v1374 = vadd.f32 %v1334, %v1358
  %v1375 = vadd.f32 %v1335, %v1359
  %v1376 = vadd.f32 %v1336, %v1360
  %v1377 = vperm.slane %v1193, 3
  %v1378 = vperm.slane %v1195, 3
  %v1379 = vperm.slane %v1197, 3
  %v1380 = vperm.slane %v1199, 3
  %v1381 = vperm.slane %v1201, 3
  %v1382 = vperm.slane %v1203, 3
  %v1383 = vperm.slane %v1205, 3
  %v1384 = vperm.slane %v1207, 3
  %v1385 = vmul.f32 %v1377, %v924
  %v1386 = vmul.f32 %v1377, %v927
  %v1387 = vmul.f32 %v1378, %v924
  %v1388 = vmul.f32 %v1378, %v927
  %v1389 = vmul.f32 %v1379, %v924
  %v1390 = vmul.f32 %v1379, %v927
  %v1391 = vmul.f32 %v1380, %v924
  %v1392 = vmul.f32 %v1380, %v927
  %v1393 = vmul.f32 %v1381, %v924
  %v1394 = vmul.f32 %v1381, %v927
  %v1395 = vmul.f32 %v1382, %v924
  %v1396 = vmul.f32 %v1382, %v927
  %v1397 = vmul.f32 %v1383, %v924
  %v1398 = vmul.f32 %v1383, %v927
  %v1399 = vmul.f32 %v1384, %v924
  %v1400 = vmul.f32 %v1384, %v927
  %v1401 = vadd.f32 %v1361, %v1385
  %v1402 = vadd.f32 %v1362, %v1386
  %v1403 = vadd.f32 %v1363, %v1387
  %v1404 = vadd.f32 %v1364, %v1388
  %v1405 = vadd.f32 %v1365, %v1389
  %v1406 = vadd.f32 %v1366, %v1390
  %v1407 = vadd.f32 %v1367, %v1391
  %v1408 = vadd.f32 %v1368, %v1392
  %v1409 = vadd.f32 %v1369, %v1393
  %v1410 = vadd.f32 %v1370, %v1394
  %v1411 = vadd.f32 %v1371, %v1395
  %v1412 = vadd.f32 %v1372, %v1396
  %v1413 = vadd.f32 %v1373, %v1397
  %v1414 = vadd.f32 %v1374, %v1398
  %v1415 = vadd.f32 %v1375, %v1399
  %v1416 = vadd.f32 %v1376, %v1400
  %v1417 = vperm.slane %v1193, 4
  %v1418 = vperm.slane %v1195, 4
  %v1419 = vperm.slane %v1197, 4
  %v1420 = vperm.slane %v1199, 4
  %v1421 = vperm.slane %v1201, 4
  %v1422 = vperm.slane %v1203, 4
  %v1423 = vperm.slane %v1205, 4
  %v1424 = vperm.slane %v1207, 4
  %v1425 = vmul.f32 %v1417, %v930
  %v1426 = vmul.f32 %v1417, %v933
  %v1427 = vmul.f32 %v1418, %v930
  %v1428 = vmul.f32 %v1418, %v933
  %v1429 = vmul.f32 %v1419, %v930
  %v1430 = vmul.f32 %v1419, %v933
  %v1431 = vmul.f32 %v1420, %v930
  %v1432 = vmul.f32 %v1420, %v933
  %v1433 = vmul.f32 %v1421, %v930
  %v1434 = vmul.f32 %v1421, %v933
  %v1435 = vmul.f32 %v1422, %v930
  %v1436 = vmul.f32 %v1422, %v933
  %v1437 = vmul.f32 %v1423, %v930
  %v1438 = vmul.f32 %v1423, %v933
  %v1439 = vmul.f32 %v1424, %v930
  %v1440 = vmul.f32 %v1424, %v933
  %v1441 = vadd.f32 %v1401, %v1425
  %v1442 = vadd.f32 %v1402, %v1426
  %v1443 = vadd.f32 %v1403, %v1427
  %v1444 = vadd.f32 %v1404, %v1428
  %v1445 = vadd.f32 %v1405, %v1429
  %v1446 = vadd.f32 %v1406, %v1430
  %v1447 = vadd.f32 %v1407, %v1431
  %v1448 = vadd.f32 %v1408, %v1432
  %v1449 = vadd.f32 %v1409, %v1433
  %v1450 = vadd.f32 %v1410, %v1434
  %v1451 = vadd.f32 %v1411, %v1435
  %v1452 = vadd.f32 %v1412, %v1436
  %v1453 = vadd.f32 %v1413, %v1437
  %v1454 = vadd.f32 %v1414, %v1438
  %v1455 = vadd.f32 %v1415, %v1439
  %v1456 = vadd.f32 %v1416, %v1440
  %v1457 = vperm.slane %v1193, 5
  %v1458 = vperm.slane %v1195, 5
  %v1459 = vperm.slane %v1197, 5
  %v1460 = vperm.slane %v1199, 5
  %v1461 = vperm.slane %v1201, 5
  %v1462 = vperm.slane %v1203, 5
  %v1463 = vperm.slane %v1205, 5
  %v1464 = vperm.slane %v1207, 5
  %v1465 = vmul.f32 %v1457, %v936
  %v1466 = vmul.f32 %v1457, %v939
  %v1467 = vmul.f32 %v1458, %v936
  %v1468 = vmul.f32 %v1458, %v939
  %v1469 = vmul.f32 %v1459, %v936
  %v1470 = vmul.f32 %v1459, %v939
  %v1471 = vmul.f32 %v1460, %v936
  %v1472 = vmul.f32 %v1460, %v939
  %v1473 = vmul.f32 %v1461, %v936
  %v1474 = vmul.f32 %v1461, %v939
  %v1475 = vmul.f32 %v1462, %v936
  %v1476 = vmul.f32 %v1462, %v939
  %v1477 = vmul.f32 %v1463, %v936
  %v1478 = vmul.f32 %v1463, %v939
  %v1479 = vmul.f32 %v1464, %v936
  %v1480 = vmul.f32 %v1464, %v939
  %v1481 = vadd.f32 %v1441, %v1465
  %v1482 = vadd.f32 %v1442, %v1466
  %v1483 = vadd.f32 %v1443, %v1467
  %v1484 = vadd.f32 %v1444, %v1468
  %v1485 = vadd.f32 %v1445, %v1469
  %v1486 = vadd.f32 %v1446, %v1470
  %v1487 = vadd.f32 %v1447, %v1471
  %v1488 = vadd.f32 %v1448, %v1472
  %v1489 = vadd.f32 %v1449, %v1473
  %v1490 = vadd.f32 %v1450, %v1474
  %v1491 = vadd.f32 %v1451, %v1475
  %v1492 = vadd.f32 %v1452, %v1476
  %v1493 = vadd.f32 %v1453, %v1477
  %v1494 = vadd.f32 %v1454, %v1478
  %v1495 = vadd.f32 %v1455, %v1479
  %v1496 = vadd.f32 %v1456, %v1480
  %v1497 = vperm.slane %v1193, 6
  %v1498 = vperm.slane %v1195, 6
  %v1499 = vperm.slane %v1197, 6
  %v1500 = vperm.slane %v1199, 6
  %v1501 = vperm.slane %v1201, 6
  %v1502 = vperm.slane %v1203, 6
  %v1503 = vperm.slane %v1205, 6
  %v1504 = vperm.slane %v1207, 6
  %v1505 = vmul.f32 %v1497, %v942
  %v1506 = vmul.f32 %v1497, %v945
  %v1507 = vmul.f32 %v1498, %v942
  %v1508 = vmul.f32 %v1498, %v945
  %v1509 = vmul.f32 %v1499, %v942
  %v1510 = vmul.f32 %v1499, %v945
  %v1511 = vmul.f32 %v1500, %v942
  %v1512 = vmul.f32 %v1500, %v945
  %v1513 = vmul.f32 %v1501, %v942
  %v1514 = vmul.f32 %v1501, %v945
  %v1515 = vmul.f32 %v1502, %v942
  %v1516 = vmul.f32 %v1502, %v945
  %v1517 = vmul.f32 %v1503, %v942
  %v1518 = vmul.f32 %v1503, %v945
  %v1519 = vmul.f32 %v1504, %v942
  %v1520 = vmul.f32 %v1504, %v945
  %v1521 = vadd.f32 %v1481, %v1505
  %v1522 = vadd.f32 %v1482, %v1506
  %v1523 = vadd.f32 %v1483, %v1507
  %v1524 = vadd.f32 %v1484, %v1508
  %v1525 = vadd.f32 %v1485, %v1509
  %v1526 = vadd.f32 %v1486, %v1510
  %v1527 = vadd.f32 %v1487, %v1511
  %v1528 = vadd.f32 %v1488, %v1512
  %v1529 = vadd.f32 %v1489, %v1513
  %v1530 = vadd.f32 %v1490, %v1514
  %v1531 = vadd.f32 %v1491, %v1515
  %v1532 = vadd.f32 %v1492, %v1516
  %v1533 = vadd.f32 %v1493, %v1517
  %v1534 = vadd.f32 %v1494, %v1518
  %v1535 = vadd.f32 %v1495, %v1519
  %v1536 = vadd.f32 %v1496, %v1520
  %v1537 = vperm.slane %v1193, 7
  %v1538 = vperm.slane %v1195, 7
  %v1539 = vperm.slane %v1197, 7
  %v1540 = vperm.slane %v1199, 7
  %v1541 = vperm.slane %v1201, 7
  %v1542 = vperm.slane %v1203, 7
  %v1543 = vperm.slane %v1205, 7
  %v1544 = vperm.slane %v1207, 7
  %v1545 = vmul.f32 %v1537, %v948
  %v1546 = vmul.f32 %v1537, %v951
  %v1547 = vmul.f32 %v1538, %v948
  %v1548 = vmul.f32 %v1538, %v951
  %v1549 = vmul.f32 %v1539, %v948
  %v1550 = vmul.f32 %v1539, %v951
  %v1551 = vmul.f32 %v1540, %v948
  %v1552 = vmul.f32 %v1540, %v951
  %v1553 = vmul.f32 %v1541, %v948
  %v1554 = vmul.f32 %v1541, %v951
  %v1555 = vmul.f32 %v1542, %v948
  %v1556 = vmul.f32 %v1542, %v951
  %v1557 = vmul.f32 %v1543, %v948
  %v1558 = vmul.f32 %v1543, %v951
  %v1559 = vmul.f32 %v1544, %v948
  %v1560 = vmul.f32 %v1544, %v951
  %v1561 = vadd.f32 %v1521, %v1545
  %v1562 = vadd.f32 %v1522, %v1546
  %v1563 = vadd.f32 %v1523, %v1547
  %v1564 = vadd.f32 %v1524, %v1548
  %v1565 = vadd.f32 %v1525, %v1549
  %v1566 = vadd.f32 %v1526, %v1550
  %v1567 = vadd.f32 %v1527, %v1551
  %v1568 = vadd.f32 %v1528, %v1552
  %v1569 = vadd.f32 %v1529, %v1553
  %v1570 = vadd.f32 %v1530, %v1554
  %v1571 = vadd.f32 %v1531, %v1555
  %v1572 = vadd.f32 %v1532, %v1556
  %v1573 = vadd.f32 %v1533, %v1557
  %v1574 = vadd.f32 %v1534, %v1558
  %v1575 = vadd.f32 %v1535, %v1559
  %v1576 = vadd.f32 %v1536, %v1560
  %v1577 = vperm.slane %v1194, 0
  %v1578 = vperm.slane %v1196, 0
  %v1579 = vperm.slane %v1198, 0
  %v1580 = vperm.slane %v1200, 0
  %v1581 = vperm.slane %v1202, 0
  %v1582 = vperm.slane %v1204, 0
  %v1583 = vperm.slane %v1206, 0
  %v1584 = vperm.slane %v1208, 0
  %v1585 = vmul.f32 %v1577, %v954
  %v1586 = vmul.f32 %v1577, %v957
  %v1587 = vmul.f32 %v1578, %v954
  %v1588 = vmul.f32 %v1578, %v957
  %v1589 = vmul.f32 %v1579, %v954
  %v1590 = vmul.f32 %v1579, %v957
  %v1591 = vmul.f32 %v1580, %v954
  %v1592 = vmul.f32 %v1580, %v957
  %v1593 = vmul.f32 %v1581, %v954
  %v1594 = vmul.f32 %v1581, %v957
  %v1595 = vmul.f32 %v1582, %v954
  %v1596 = vmul.f32 %v1582, %v957
  %v1597 = vmul.f32 %v1583, %v954
  %v1598 = vmul.f32 %v1583, %v957
  %v1599 = vmul.f32 %v1584, %v954
  %v1600 = vmul.f32 %v1584, %v957
  %v1601 = vadd.f32 %v1561, %v1585
  %v1602 = vadd.f32 %v1562, %v1586
  %v1603 = vadd.f32 %v1563, %v1587
  %v1604 = vadd.f32 %v1564, %v1588
  %v1605 = vadd.f32 %v1565, %v1589
  %v1606 = vadd.f32 %v1566, %v1590
  %v1607 = vadd.f32 %v1567, %v1591
  %v1608 = vadd.f32 %v1568, %v1592
  %v1609 = vadd.f32 %v1569, %v1593
  %v1610 = vadd.f32 %v1570, %v1594
  %v1611 = vadd.f32 %v1571, %v1595
  %v1612 = vadd.f32 %v1572, %v1596
  %v1613 = vadd.f32 %v1573, %v1597
  %v1614 = vadd.f32 %v1574, %v1598
  %v1615 = vadd.f32 %v1575, %v1599
  %v1616 = vadd.f32 %v1576, %v1600
  %v1617 = vperm.slane %v1194, 1
  %v1618 = vperm.slane %v1196, 1
  %v1619 = vperm.slane %v1198, 1
  %v1620 = vperm.slane %v1200, 1
  %v1621 = vperm.slane %v1202, 1
  %v1622 = vperm.slane %v1204, 1
  %v1623 = vperm.slane %v1206, 1
  %v1624 = vperm.slane %v1208, 1
  %v1625 = vmul.f32 %v1617, %v960
  %v1626 = vmul.f32 %v1617, %v963
  %v1627 = vmul.f32 %v1618, %v960
  %v1628 = vmul.f32 %v1618, %v963
  %v1629 = vmul.f32 %v1619, %v960
  %v1630 = vmul.f32 %v1619, %v963
  %v1631 = vmul.f32 %v1620, %v960
  %v1632 = vmul.f32 %v1620, %v963
  %v1633 = vmul.f32 %v1621, %v960
  %v1634 = vmul.f32 %v1621, %v963
  %v1635 = vmul.f32 %v1622, %v960
  %v1636 = vmul.f32 %v1622, %v963
  %v1637 = vmul.f32 %v1623, %v960
  %v1638 = vmul.f32 %v1623, %v963
  %v1639 = vmul.f32 %v1624, %v960
  %v1640 = vmul.f32 %v1624, %v963
  %v1641 = vadd.f32 %v1601, %v1625
  %v1642 = vadd.f32 %v1602, %v1626
  %v1643 = vadd.f32 %v1603, %v1627
  %v1644 = vadd.f32 %v1604, %v1628
  %v1645 = vadd.f32 %v1605, %v1629
  %v1646 = vadd.f32 %v1606, %v1630
  %v1647 = vadd.f32 %v1607, %v1631
  %v1648 = vadd.f32 %v1608, %v1632
  %v1649 = vadd.f32 %v1609, %v1633
  %v1650 = vadd.f32 %v1610, %v1634
  %v1651 = vadd.f32 %v1611, %v1635
  %v1652 = vadd.f32 %v1612, %v1636
  %v1653 = vadd.f32 %v1613, %v1637
  %v1654 = vadd.f32 %v1614, %v1638
  %v1655 = vadd.f32 %v1615, %v1639
  %v1656 = vadd.f32 %v1616, %v1640
  %v1657 = vperm.slane %v1194, 2
  %v1658 = vperm.slane %v1196, 2
  %v1659 = vperm.slane %v1198, 2
  %v1660 = vperm.slane %v1200, 2
  %v1661 = vperm.slane %v1202, 2
  %v1662 = vperm.slane %v1204, 2
  %v1663 = vperm.slane %v1206, 2
  %v1664 = vperm.slane %v1208, 2
  %v1665 = vmul.f32 %v1657, %v966
  %v1666 = vmul.f32 %v1657, %v969
  %v1667 = vmul.f32 %v1658, %v966
  %v1668 = vmul.f32 %v1658, %v969
  %v1669 = vmul.f32 %v1659, %v966
  %v1670 = vmul.f32 %v1659, %v969
  %v1671 = vmul.f32 %v1660, %v966
  %v1672 = vmul.f32 %v1660, %v969
  %v1673 = vmul.f32 %v1661, %v966
  %v1674 = vmul.f32 %v1661, %v969
  %v1675 = vmul.f32 %v1662, %v966
  %v1676 = vmul.f32 %v1662, %v969
  %v1677 = vmul.f32 %v1663, %v966
  %v1678 = vmul.f32 %v1663, %v969
  %v1679 = vmul.f32 %v1664, %v966
  %v1680 = vmul.f32 %v1664, %v969
  %v1681 = vadd.f32 %v1641, %v1665
  %v1682 = vadd.f32 %v1642, %v1666
  %v1683 = vadd.f32 %v1643, %v1667
  %v1684 = vadd.f32 %v1644, %v1668
  %v1685 = vadd.f32 %v1645, %v1669
  %v1686 = vadd.f32 %v1646, %v1670
  %v1687 = vadd.f32 %v1647, %v1671
  %v1688 = vadd.f32 %v1648, %v1672
  %v1689 = vadd.f32 %v1649, %v1673
  %v1690 = vadd.f32 %v1650, %v1674
  %v1691 = vadd.f32 %v1651, %v1675
  %v1692 = vadd.f32 %v1652, %v1676
  %v1693 = vadd.f32 %v1653, %v1677
  %v1694 = vadd.f32 %v1654, %v1678
  %v1695 = vadd.f32 %v1655, %v1679
  %v1696 = vadd.f32 %v1656, %v1680
  %v1697 = vperm.slane %v1194, 3
  %v1698 = vperm.slane %v1196, 3
  %v1699 = vperm.slane %v1198, 3
  %v1700 = vperm.slane %v1200, 3
  %v1701 = vperm.slane %v1202, 3
  %v1702 = vperm.slane %v1204, 3
  %v1703 = vperm.slane %v1206, 3
  %v1704 = vperm.slane %v1208, 3
  %v1705 = vmul.f32 %v1697, %v972
  %v1706 = vmul.f32 %v1697, %v975
  %v1707 = vmul.f32 %v1698, %v972
  %v1708 = vmul.f32 %v1698, %v975
  %v1709 = vmul.f32 %v1699, %v972
  %v1710 = vmul.f32 %v1699, %v975
  %v1711 = vmul.f32 %v1700, %v972
  %v1712 = vmul.f32 %v1700, %v975
  %v1713 = vmul.f32 %v1701, %v972
  %v1714 = vmul.f32 %v1701, %v975
  %v1715 = vmul.f32 %v1702, %v972
  %v1716 = vmul.f32 %v1702, %v975
  %v1717 = vmul.f32 %v1703, %v972
  %v1718 = vmul.f32 %v1703, %v975
  %v1719 = vmul.f32 %v1704, %v972
  %v1720 = vmul.f32 %v1704, %v975
  %v1721 = vadd.f32 %v1681, %v1705
  %v1722 = vadd.f32 %v1682, %v1706
  %v1723 = vadd.f32 %v1683, %v1707
  %v1724 = vadd.f32 %v1684, %v1708
  %v1725 = vadd.f32 %v1685, %v1709
  %v1726 = vadd.f32 %v1686, %v1710
  %v1727 = vadd.f32 %v1687, %v1711
  %v1728 = vadd.f32 %v1688, %v1712
  %v1729 = vadd.f32 %v1689, %v1713
  %v1730 = vadd.f32 %v1690, %v1714
  %v1731 = vadd.f32 %v1691, %v1715
  %v1732 = vadd.f32 %v1692, %v1716
  %v1733 = vadd.f32 %v1693, %v1717
  %v1734 = vadd.f32 %v1694, %v1718
  %v1735 = vadd.f32 %v1695, %v1719
  %v1736 = vadd.f32 %v1696, %v1720
  %v1737 = vperm.slane %v1194, 4
  %v1738 = vperm.slane %v1196, 4
  %v1739 = vperm.slane %v1198, 4
  %v1740 = vperm.slane %v1200, 4
  %v1741 = vperm.slane %v1202, 4
  %v1742 = vperm.slane %v1204, 4
  %v1743 = vperm.slane %v1206, 4
  %v1744 = vperm.slane %v1208, 4
  %v1745 = vmul.f32 %v1737, %v978
  %v1746 = vmul.f32 %v1737, %v981
  %v1747 = vmul.f32 %v1738, %v978
  %v1748 = vmul.f32 %v1738, %v981
  %v1749 = vmul.f32 %v1739, %v978
  %v1750 = vmul.f32 %v1739, %v981
  %v1751 = vmul.f32 %v1740, %v978
  %v1752 = vmul.f32 %v1740, %v981
  %v1753 = vmul.f32 %v1741, %v978
  %v1754 = vmul.f32 %v1741, %v981
  %v1755 = vmul.f32 %v1742, %v978
  %v1756 = vmul.f32 %v1742, %v981
  %v1757 = vmul.f32 %v1743, %v978
  %v1758 = vmul.f32 %v1743, %v981
  %v1759 = vmul.f32 %v1744, %v978
  %v1760 = vmul.f32 %v1744, %v981
  %v1761 = vadd.f32 %v1721, %v1745
  %v1762 = vadd.f32 %v1722, %v1746
  %v1763 = vadd.f32 %v1723, %v1747
  %v1764 = vadd.f32 %v1724, %v1748
  %v1765 = vadd.f32 %v1725, %v1749
  %v1766 = vadd.f32 %v1726, %v1750
  %v1767 = vadd.f32 %v1727, %v1751
  %v1768 = vadd.f32 %v1728, %v1752
  %v1769 = vadd.f32 %v1729, %v1753
  %v1770 = vadd.f32 %v1730, %v1754
  %v1771 = vadd.f32 %v1731, %v1755
  %v1772 = vadd.f32 %v1732, %v1756
  %v1773 = vadd.f32 %v1733, %v1757
  %v1774 = vadd.f32 %v1734, %v1758
  %v1775 = vadd.f32 %v1735, %v1759
  %v1776 = vadd.f32 %v1736, %v1760
  %v1777 = vperm.slane %v1194, 5
  %v1778 = vperm.slane %v1196, 5
  %v1779 = vperm.slane %v1198, 5
  %v1780 = vperm.slane %v1200, 5
  %v1781 = vperm.slane %v1202, 5
  %v1782 = vperm.slane %v1204, 5
  %v1783 = vperm.slane %v1206, 5
  %v1784 = vperm.slane %v1208, 5
  %v1785 = vmul.f32 %v1777, %v984
  %v1786 = vmul.f32 %v1777, %v987
  %v1787 = vmul.f32 %v1778, %v984
  %v1788 = vmul.f32 %v1778, %v987
  %v1789 = vmul.f32 %v1779, %v984
  %v1790 = vmul.f32 %v1779, %v987
  %v1791 = vmul.f32 %v1780, %v984
  %v1792 = vmul.f32 %v1780, %v987
  %v1793 = vmul.f32 %v1781, %v984
  %v1794 = vmul.f32 %v1781, %v987
  %v1795 = vmul.f32 %v1782, %v984
  %v1796 = vmul.f32 %v1782, %v987
  %v1797 = vmul.f32 %v1783, %v984
  %v1798 = vmul.f32 %v1783, %v987
  %v1799 = vmul.f32 %v1784, %v984
  %v1800 = vmul.f32 %v1784, %v987
  %v1801 = vadd.f32 %v1761, %v1785
  %v1802 = vadd.f32 %v1762, %v1786
  %v1803 = vadd.f32 %v1763, %v1787
  %v1804 = vadd.f32 %v1764, %v1788
  %v1805 = vadd.f32 %v1765, %v1789
  %v1806 = vadd.f32 %v1766, %v1790
  %v1807 = vadd.f32 %v1767, %v1791
  %v1808 = vadd.f32 %v1768, %v1792
  %v1809 = vadd.f32 %v1769, %v1793
  %v1810 = vadd.f32 %v1770, %v1794
  %v1811 = vadd.f32 %v1771, %v1795
  %v1812 = vadd.f32 %v1772, %v1796
  %v1813 = vadd.f32 %v1773, %v1797
  %v1814 = vadd.f32 %v1774, %v1798
  %v1815 = vadd.f32 %v1775, %v1799
  %v1816 = vadd.f32 %v1776, %v1800
  %v1817 = vperm.slane %v1194, 6
  %v1818 = vperm.slane %v1196, 6
  %v1819 = vperm.slane %v1198, 6
  %v1820 = vperm.slane %v1200, 6
  %v1821 = vperm.slane %v1202, 6
  %v1822 = vperm.slane %v1204, 6
  %v1823 = vperm.slane %v1206, 6
  %v1824 = vperm.slane %v1208, 6
  %v1825 = vmul.f32 %v1817, %v990
  %v1826 = vmul.f32 %v1817, %v993
  %v1827 = vmul.f32 %v1818, %v990
  %v1828 = vmul.f32 %v1818, %v993
  %v1829 = vmul.f32 %v1819, %v990
  %v1830 = vmul.f32 %v1819, %v993
  %v1831 = vmul.f32 %v1820, %v990
  %v1832 = vmul.f32 %v1820, %v993
  %v1833 = vmul.f32 %v1821, %v990
  %v1834 = vmul.f32 %v1821, %v993
  %v1835 = vmul.f32 %v1822, %v990
  %v1836 = vmul.f32 %v1822, %v993
  %v1837 = vmul.f32 %v1823, %v990
  %v1838 = vmul.f32 %v1823, %v993
  %v1839 = vmul.f32 %v1824, %v990
  %v1840 = vmul.f32 %v1824, %v993
  %v1841 = vadd.f32 %v1801, %v1825
  %v1842 = vadd.f32 %v1802, %v1826
  %v1843 = vadd.f32 %v1803, %v1827
  %v1844 = vadd.f32 %v1804, %v1828
  %v1845 = vadd.f32 %v1805, %v1829
  %v1846 = vadd.f32 %v1806, %v1830
  %v1847 = vadd.f32 %v1807, %v1831
  %v1848 = vadd.f32 %v1808, %v1832
  %v1849 = vadd.f32 %v1809, %v1833
  %v1850 = vadd.f32 %v1810, %v1834
  %v1851 = vadd.f32 %v1811, %v1835
  %v1852 = vadd.f32 %v1812, %v1836
  %v1853 = vadd.f32 %v1813, %v1837
  %v1854 = vadd.f32 %v1814, %v1838
  %v1855 = vadd.f32 %v1815, %v1839
  %v1856 = vadd.f32 %v1816, %v1840
  %v1857 = vperm.slane %v1194, 7
  %v1858 = vperm.slane %v1196, 7
  %v1859 = vperm.slane %v1198, 7
  %v1860 = vperm.slane %v1200, 7
  %v1861 = vperm.slane %v1202, 7
  %v1862 = vperm.slane %v1204, 7
  %v1863 = vperm.slane %v1206, 7
  %v1864 = vperm.slane %v1208, 7
  %v1865 = vmul.f32 %v1857, %v996
  %v1866 = vmul.f32 %v1857, %v999
  %v1867 = vmul.f32 %v1858, %v996
  %v1868 = vmul.f32 %v1858, %v999
  %v1869 = vmul.f32 %v1859, %v996
  %v1870 = vmul.f32 %v1859, %v999
  %v1871 = vmul.f32 %v1860, %v996
  %v1872 = vmul.f32 %v1860, %v999
  %v1873 = vmul.f32 %v1861, %v996
  %v1874 = vmul.f32 %v1861, %v999
  %v1875 = vmul.f32 %v1862, %v996
  %v1876 = vmul.f32 %v1862, %v999
  %v1877 = vmul.f32 %v1863, %v996
  %v1878 = vmul.f32 %v1863, %v999
  %v1879 = vmul.f32 %v1864, %v996
  %v1880 = vmul.f32 %v1864, %v999
  %v1881 = vadd.f32 %v1841, %v1865
  %v1882 = vadd.f32 %v1842, %v1866
  %v1883 = vadd.f32 %v1843, %v1867
  %v1884 = vadd.f32 %v1844, %v1868
  %v1885 = vadd.f32 %v1845, %v1869
  %v1886 = vadd.f32 %v1846, %v1870
  %v1887 = vadd.f32 %v1847, %v1871
  %v1888 = vadd.f32 %v1848, %v1872
  %v1889 = vadd.f32 %v1849, %v1873
  %v1890 = vadd.f32 %v1850, %v1874
  %v1891 = vadd.f32 %v1851, %v1875
  %v1892 = vadd.f32 %v1852, %v1876
  %v1893 = vadd.f32 %v1853, %v1877
  %v1894 = vadd.f32 %v1854, %v1878
  %v1895 = vadd.f32 %v1855, %v1879
  %v1896 = vadd.f32 %v1856, %v1880
  %v1897 = vadd.f32 %v1881, %v1882
  %v1898 = vadd.f32 %v1897, %v1883
  %v1899 = vadd.f32 %v1898, %v1884
  %v1900 = vadd.f32 %v1899, %v1885
  %v1901 = vadd.f32 %v1900, %v1886
  %v1902 = vadd.f32 %v1901, %v1887
  %v1903 = vadd.f32 %v1902, %v1888
  %v1904 = vadd.f32 %v1903, %v1889
  %v1905 = vadd.f32 %v1904, %v1890
  %v1906 = vadd.f32 %v1905, %v1891
  %v1907 = vadd.f32 %v1906, %v1892
  %v1908 = vadd.f32 %v1907, %v1893
  %v1909 = vadd.f32 %v1908, %v1894
  %v1910 = vadd.f32 %v1909, %v1895
  %v1911 = vadd.f32 %v1910, %v1896
  %v1912 = vrot.slane %v1911, 4
  %v1913 = vadd.f32 %v1911, %v1912
  %v1914 = vrot.slane %v1913, 2
  %v1915 = vadd.f32 %v1913, %v1914
  %v1916 = vrot.slane %v1915, 1
  %v1917 = vadd.f32 %v1915, %v1916
  %v1918 = vmul.f32 %v1881, %v1881
  %v1919 = vmul.f32 %v1882, %v1882
  %v1920 = vmul.f32 %v1883, %v1883
  %v1921 = vmul.f32 %v1884, %v1884
  %v1922 = vmul.f32 %v1885, %v1885
  %v1923 = vmul.f32 %v1886, %v1886
  %v1924 = vmul.f32 %v1887, %v1887
  %v1925 = vmul.f32 %v1888, %v1888
  %v1926 = vmul.f32 %v1889, %v1889
  %v1927 = vmul.f32 %v1890, %v1890
  %v1928 = vmul.f32 %v1891, %v1891
  %v1929 = vmul.f32 %v1892, %v1892
  %v1930 = vmul.f32 %v1893, %v1893
  %v1931 = vmul.f32 %v1894, %v1894
  %v1932 = vmul.f32 %v1895, %v1895
  %v1933 = vmul.f32 %v1896, %v1896
  %v1934 = vadd.f32 %v1918, %v1919
  %v1935 = vadd.f32 %v1934, %v1920
  %v1936 = vadd.f32 %v1935, %v1921
  %v1937 = vadd.f32 %v1936, %v1922
  %v1938 = vadd.f32 %v1937, %v1923
  %v1939 = vadd.f32 %v1938, %v1924
  %v1940 = vadd.f32 %v1939, %v1925
  %v1941 = vadd.f32 %v1940, %v1926
  %v1942 = vadd.f32 %v1941, %v1927
  %v1943 = vadd.f32 %v1942, %v1928
  %v1944 = vadd.f32 %v1943, %v1929
  %v1945 = vadd.f32 %v1944, %v1930
  %v1946 = vadd.f32 %v1945, %v1931
  %v1947 = vadd.f32 %v1946, %v1932
  %v1948 = vadd.f32 %v1947, %v1933
  %v1949 = vrot.slane %v1948, 4
  %v1950 = vadd.f32 %v1948, %v1949
  %v1951 = vrot.slane %v1950, 2
  %v1952 = vadd.f32 %v1950, %v1951
  %v1953 = vrot.slane %v1952, 1
  %v1954 = vadd.f32 %v1952, %v1953
  %v1955 = vmul.f32 %v1917, 0.0078125
  %v1956 = vmul.f32 %v1954, 0.0078125
  %v1957 = vmul.f32 %v1955, %v1955
  %v1958 = vsub.f32 %v1956, %v1957
  %v1959 = vsub.f32 %v1881, %v1955
  %v1960 = vsub.f32 %v1882, %v1955
  %v1961 = vsub.f32 %v1883, %v1955
  %v1962 = vsub.f32 %v1884, %v1955
  %v1963 = vsub.f32 %v1885, %v1955
  %v1964 = vsub.f32 %v1886, %v1955
  %v1965 = vsub.f32 %v1887, %v1955
  %v1966 = vsub.f32 %v1888, %v1955
  %v1967 = vsub.f32 %v1889, %v1955
  %v1968 = vsub.f32 %v1890, %v1955
  %v1969 = vsub.f32 %v1891, %v1955
  %v1970 = vsub.f32 %v1892, %v1955
  %v1971 = vsub.f32 %v1893, %v1955
  %v1972 = vsub.f32 %v1894, %v1955
  %v1973 = vsub.f32 %v1895, %v1955
  %v1974 = vsub.f32 %v1896, %v1955
  %v1975 = vadd.f32 %v1958, 1e-05
  %v1976 = vrsqrt.pop %v1975
  %v1977 = vmul.f32 %v1976, %v1975
  %v1978 = vmul.f32 %v1977, %v1976
  %v1979 = vmul.f32 0.5, %v1978
  %v1980 = vsub.f32 1.5, %v1979
  %v1981 = vmul.f32 %v1976, %v1980
  %vm1982 = vweird.f32 %v1975
  %vm1983 = vweird.f32 %v1976
  %vm1984 = vmor %vm1982, %vm1983
  %v1985 = vsel %vm1984, %v1976, %v1981
  %v1986 = vmul.f32 %v1959, %v1985
  %v1987 = vmul.f32 %v1960, %v1985
  %v1988 = vmul.f32 %v1961, %v1985
  %v1989 = vmul.f32 %v1962, %v1985
  %v1990 = vmul.f32 %v1963, %v1985
  %v1991 = vmul.f32 %v1964, %v1985
  %v1992 = vmul.f32 %v1965, %v1985
  %v1993 = vmul.f32 %v1966, %v1985
  %v1994 = vmul.f32 %v1967, %v1985
  %v1995 = vmul.f32 %v1968, %v1985
  %v1996 = vmul.f32 %v1969, %v1985
  %v1997 = vmul.f32 %v1970, %v1985
  %v1998 = vmul.f32 %v1971, %v1985
  %v1999 = vmul.f32 %v1972, %v1985
  %v2000 = vmul.f32 %v1973, %v1985
  %v2001 = vmul.f32 %v1974, %v1985
  %v2002 = vmax.f32 %v1986, 0.0
  %v2003 = vmax.f32 %v1987, 0.0
  %v2004 = vmax.f32 %v1988, 0.0
  %v2005 = vmax.f32 %v1989, 0.0
  %v2006 = vmax.f32 %v1990, 0.0
  %v2007 = vmax.f32 %v1991, 0.0
  %v2008 = vmax.f32 %v1992, 0.0
  %v2009 = vmax.f32 %v1993, 0.0
  %v2010 = vmax.f32 %v1994, 0.0
  %v2011 = vmax.f32 %v1995, 0.0
  %v2012 = vmax.f32 %v1996, 0.0
  %v2013 = vmax.f32 %v1997, 0.0
  %v2014 = vmax.f32 %v1998, 0.0
  %v2015 = vmax.f32 %v1999, 0.0
  %v2016 = vmax.f32 %v2000, 0.0
  %v2017 = vmax.f32 %v2001, 0.0
  %v2018 = vperm.slane %v1002, 0
  %v2019 = vperm.slane %v1005, 0
  %v2020 = vperm.slane %v1008, 0
  %v2021 = vperm.slane %v1011, 0
  %v2022 = vperm.slane %v1014, 0
  %v2023 = vperm.slane %v1017, 0
  %v2024 = vperm.slane %v1020, 0
  %v2025 = vperm.slane %v1023, 0
  %v2026 = vmul.f32 %v2018, %v2002
  %v2027 = vmul.f32 %v2018, %v2003
  %v2028 = vmul.f32 %v2019, %v2002
  %v2029 = vmul.f32 %v2019, %v2003
  %v2030 = vmul.f32 %v2020, %v2002
  %v2031 = vmul.f32 %v2020, %v2003
  %v2032 = vmul.f32 %v2021, %v2002
  %v2033 = vmul.f32 %v2021, %v2003
  %v2034 = vmul.f32 %v2022, %v2002
  %v2035 = vmul.f32 %v2022, %v2003
  %v2036 = vmul.f32 %v2023, %v2002
  %v2037 = vmul.f32 %v2023, %v2003
  %v2038 = vmul.f32 %v2024, %v2002
  %v2039 = vmul.f32 %v2024, %v2003
  %v2040 = vmul.f32 %v2025, %v2002
  %v2041 = vmul.f32 %v2025, %v2003
  %v2042 = vperm.slane %v1002, 1
  %v2043 = vperm.slane %v1005, 1
  %v2044 = vperm.slane %v1008, 1
  %v2045 = vperm.slane %v1011, 1
  %v2046 = vperm.slane %v1014, 1
  %v2047 = vperm.slane %v1017, 1
  %v2048 = vperm.slane %v1020, 1
  %v2049 = vperm.slane %v1023, 1
  %v2050 = vmul.f32 %v2042, %v2004
  %v2051 = vmul.f32 %v2042, %v2005
  %v2052 = vmul.f32 %v2043, %v2004
  %v2053 = vmul.f32 %v2043, %v2005
  %v2054 = vmul.f32 %v2044, %v2004
  %v2055 = vmul.f32 %v2044, %v2005
  %v2056 = vmul.f32 %v2045, %v2004
  %v2057 = vmul.f32 %v2045, %v2005
  %v2058 = vmul.f32 %v2046, %v2004
  %v2059 = vmul.f32 %v2046, %v2005
  %v2060 = vmul.f32 %v2047, %v2004
  %v2061 = vmul.f32 %v2047, %v2005
  %v2062 = vmul.f32 %v2048, %v2004
  %v2063 = vmul.f32 %v2048, %v2005
  %v2064 = vmul.f32 %v2049, %v2004
  %v2065 = vmul.f32 %v2049, %v2005
  %v2066 = vadd.f32 %v2026, %v2050
  %v2067 = vadd.f32 %v2027, %v2051
  %v2068 = vadd.f32 %v2028, %v2052
  %v2069 = vadd.f32 %v2029, %v2053
  %v2070 = vadd.f32 %v2030, %v2054
  %v2071 = vadd.f32 %v2031, %v2055
  %v2072 = vadd.f32 %v2032, %v2056
  %v2073 = vadd.f32 %v2033, %v2057
  %v2074 = vadd.f32 %v2034, %v2058
  %v2075 = vadd.f32 %v2035, %v2059
  %v2076 = vadd.f32 %v2036, %v2060
  %v2077 = vadd.f32 %v2037, %v2061
  %v2078 = vadd.f32 %v2038, %v2062
  %v2079 = vadd.f32 %v2039, %v2063
  %v2080 = vadd.f32 %v2040, %v2064
  %v2081 = vadd.f32 %v2041, %v2065
  %v2082 = vperm.slane %v1002, 2
  %v2083 = vperm.slane %v1005, 2
  %v2084 = vperm.slane %v1008, 2
  %v2085 = vperm.slane %v1011, 2
  %v2086 = vperm.slane %v1014, 2
  %v2087 = vperm.slane %v1017, 2
  %v2088 = vperm.slane %v1020, 2
  %v2089 = vperm.slane %v1023, 2
  %v2090 = vmul.f32 %v2082, %v2006
  %v2091 = vmul.f32 %v2082, %v2007
  %v2092 = vmul.f32 %v2083, %v2006
  %v2093 = vmul.f32 %v2083, %v2007
  %v2094 = vmul.f32 %v2084, %v2006
  %v2095 = vmul.f32 %v2084, %v2007
  %v2096 = vmul.f32 %v2085, %v2006
  %v2097 = vmul.f32 %v2085, %v2007
  %v2098 = vmul.f32 %v2086, %v2006
  %v2099 = vmul.f32 %v2086, %v2007
  %v2100 = vmul.f32 %v2087, %v2006
  %v2101 = vmul.f32 %v2087, %v2007
  %v2102 = vmul.f32 %v2088, %v2006
  %v2103 = vmul.f32 %v2088, %v2007
  %v2104 = vmul.f32 %v2089, %v2006
  %v2105 = vmul.f32 %v2089, %v2007
  %v2106 = vadd.f32 %v2066, %v2090
  %v2107 = vadd.f32 %v2067, %v2091
  %v2108 = vadd.f32 %v2068, %v2092
  %v2109 = vadd.f32 %v2069, %v2093
  %v2110 = vadd.f32 %v2070, %v2094
  %v2111 = vadd.f32 %v2071, %v2095
  %v2112 = vadd.f32 %v2072, %v2096
  %v2113 = vadd.f32 %v2073, %v2097
  %v2114 = vadd.f32 %v2074, %v2098
  %v2115 = vadd.f32 %v2075, %v2099
  %v2116 = vadd.f32 %v2076, %v2100
  %v2117 = vadd.f32 %v2077, %v2101
  %v2118 = vadd.f32 %v2078, %v2102
  %v2119 = vadd.f32 %v2079, %v2103
  %v2120 = vadd.f32 %v2080, %v2104
  %v2121 = vadd.f32 %v2081, %v2105
  %v2122 = vperm.slane %v1002, 3
  %v2123 = vperm.slane %v1005, 3
  %v2124 = vperm.slane %v1008, 3
  %v2125 = vperm.slane %v1011, 3
  %v2126 = vperm.slane %v1014, 3
  %v2127 = vperm.slane %v1017, 3
  %v2128 = vperm.slane %v1020, 3
  %v2129 = vperm.slane %v1023, 3
  %v2130 = vmul.f32 %v2122, %v2008
  %v2131 = vmul.f32 %v2122, %v2009
  %v2132 = vmul.f32 %v2123, %v2008
  %v2133 = vmul.f32 %v2123, %v2009
  %v2134 = vmul.f32 %v2124, %v2008
  %v2135 = vmul.f32 %v2124, %v2009
  %v2136 = vmul.f32 %v2125, %v2008
  %v2137 = vmul.f32 %v2125, %v2009
  %v2138 = vmul.f32 %v2126, %v2008
  %v2139 = vmul.f32 %v2126, %v2009
  %v2140 = vmul.f32 %v2127, %v2008
  %v2141 = vmul.f32 %v2127, %v2009
  %v2142 = vmul.f32 %v2128, %v2008
  %v2143 = vmul.f32 %v2128, %v2009
  %v2144 = vmul.f32 %v2129, %v2008
  %v2145 = vmul.f32 %v2129, %v2009
  %v2146 = vadd.f32 %v2106, %v2130
  %v2147 = vadd.f32 %v2107, %v2131
  %v2148 = vadd.f32 %v2108, %v2132
  %v2149 = vadd.f32 %v2109, %v2133
  %v2150 = vadd.f32 %v2110, %v2134
  %v2151 = vadd.f32 %v2111, %v2135
  %v2152 = vadd.f32 %v2112, %v2136
  %v2153 = vadd.f32 %v2113, %v2137
  %v2154 = vadd.f32 %v2114, %v2138
  %v2155 = vadd.f32 %v2115, %v2139
  %v2156 = vadd.f32 %v2116, %v2140
  %v2157 = vadd.f32 %v2117, %v2141
  %v2158 = vadd.f32 %v2118, %v2142
  %v2159 = vadd.f32 %v2119, %v2143
  %v2160 = vadd.f32 %v2120, %v2144
  %v2161 = vadd.f32 %v2121, %v2145
  %v2162 = vperm.slane %v1002, 4
  %v2163 = vperm.slane %v1005, 4
  %v2164 = vperm.slane %v1008, 4
  %v2165 = vperm.slane %v1011, 4
  %v2166 = vperm.slane %v1014, 4
  %v2167 = vperm.slane %v1017, 4
  %v2168 = vperm.slane %v1020, 4
  %v2169 = vperm.slane %v1023, 4
  %v2170 = vmul.f32 %v2162, %v2010
  %v2171 = vmul.f32 %v2162, %v2011
  %v2172 = vmul.f32 %v2163, %v2010
  %v2173 = vmul.f32 %v2163, %v2011
  %v2174 = vmul.f32 %v2164, %v2010
  %v2175 = vmul.f32 %v2164, %v2011
  %v2176 = vmul.f32 %v2165, %v2010
  %v2177 = vmul.f32 %v2165, %v2011
  %v2178 = vmul.f32 %v2166, %v2010
  %v2179 = vmul.f32 %v2166, %v2011
  %v2180 = vmul.f32 %v2167, %v2010
  %v2181 = vmul.f32 %v2167, %v2011
  %v2182 = vmul.f32 %v2168, %v2010
  %v2183 = vmul.f32 %v2168, %v2011
  %v2184 = vmul.f32 %v2169, %v2010
  %v2185 = vmul.f32 %v2169, %v2011
  %v2186 = vadd.f32 %v2146, %v2170
  %v2187 = vadd.f32 %v2147, %v2171
  %v2188 = vadd.f32 %v2148, %v2172
  %v2189 = vadd.f32 %v2149, %v2173
  %v2190 = vadd.f32 %v2150, %v2174
  %v2191 = vadd.f32 %v2151, %v2175
  %v2192 = vadd.f32 %v2152, %v2176
  %v2193 = vadd.f32 %v2153, %v2177
  %v2194 = vadd.f32 %v2154, %v2178
  %v2195 = vadd.f32 %v2155, %v2179
  %v2196 = vadd.f32 %v2156, %v2180
  %v2197 = vadd.f32 %v2157, %v2181
  %v2198 = vadd.f32 %v2158, %v2182
  %v2199 = vadd.f32 %v2159, %v2183
  %v2200 = vadd.f32 %v2160, %v2184
  %v2201 = vadd.f32 %v2161, %v2185
  %v2202 = vperm.slane %v1002, 5
  %v2203 = vperm.slane %v1005, 5
  %v2204 = vperm.slane %v1008, 5
  %v2205 = vperm.slane %v1011, 5
  %v2206 = vperm.slane %v1014, 5
  %v2207 = vperm.slane %v1017, 5
  %v2208 = vperm.slane %v1020, 5
  %v2209 = vperm.slane %v1023, 5
  %v2210 = vmul.f32 %v2202, %v2012
  %v2211 = vmul.f32 %v2202, %v2013
  %v2212 = vmul.f32 %v2203, %v2012
  %v2213 = vmul.f32 %v2203, %v2013
  %v2214 = vmul.f32 %v2204, %v2012
  %v2215 = vmul.f32 %v2204, %v2013
  %v2216 = vmul.f32 %v2205, %v2012
  %v2217 = vmul.f32 %v2205, %v2013
  %v2218 = vmul.f32 %v2206, %v2012
  %v2219 = vmul.f32 %v2206, %v2013
  %v2220 = vmul.f32 %v2207, %v2012
  %v2221 = vmul.f32 %v2207, %v2013
  %v2222 = vmul.f32 %v2208, %v2012
  %v2223 = vmul.f32 %v2208, %v2013
  %v2224 = vmul.f32 %v2209, %v2012
  %v2225 = vmul.f32 %v2209, %v2013
  %v2226 = vadd.f32 %v2186, %v2210
  %v2227 = vadd.f32 %v2187, %v2211
  %v2228 = vadd.f32 %v2188, %v2212
  %v2229 = vadd.f32 %v2189, %v2213
  %v2230 = vadd.f32 %v2190, %v2214
  %v2231 = vadd.f32 %v2191, %v2215
  %v2232 = vadd.f32 %v2192, %v2216
  %v2233 = vadd.f32 %v2193, %v2217
  %v2234 = vadd.f32 %v2194, %v2218
  %v2235 = vadd.f32 %v2195, %v2219
  %v2236 = vadd.f32 %v2196, %v2220
  %v2237 = vadd.f32 %v2197, %v2221
  %v2238 = vadd.f32 %v2198, %v2222
  %v2239 = vadd.f32 %v2199, %v2223
  %v2240 = vadd.f32 %v2200, %v2224
  %v2241 = vadd.f32 %v2201, %v2225
  %v2242 = vperm.slane %v1002, 6
  %v2243 = vperm.slane %v1005, 6
  %v2244 = vperm.slane %v1008, 6
  %v2245 = vperm.slane %v1011, 6
  %v2246 = vperm.slane %v1014, 6
  %v2247 = vperm.slane %v1017, 6
  %v2248 = vperm.slane %v1020, 6
  %v2249 = vperm.slane %v1023, 6
  %v2250 = vmul.f32 %v2242, %v2014
  %v2251 = vmul.f32 %v2242, %v2015
  %v2252 = vmul.f32 %v2243, %v2014
  %v2253 = vmul.f32 %v2243, %v2015
  %v2254 = vmul.f32 %v2244, %v2014
  %v2255 = vmul.f32 %v2244, %v2015
  %v2256 = vmul.f32 %v2245, %v2014
  %v2257 = vmul.f32 %v2245, %v2015
  %v2258 = vmul.f32 %v2246, %v2014
  %v2259 = vmul.f32 %v2246, %v2015
  %v2260 = vmul.f32 %v2247, %v2014
  %v2261 = vmul.f32 %v2247, %v2015
  %v2262 = vmul.f32 %v2248, %v2014
  %v2263 = vmul.f32 %v2248, %v2015
  %v2264 = vmul.f32 %v2249, %v2014
  %v2265 = vmul.f32 %v2249, %v2015
  %v2266 = vadd.f32 %v2226, %v2250
  %v2267 = vadd.f32 %v2227, %v2251
  %v2268 = vadd.f32 %v2228, %v2252
  %v2269 = vadd.f32 %v2229, %v2253
  %v2270 = vadd.f32 %v2230, %v2254
  %v2271 = vadd.f32 %v2231, %v2255
  %v2272 = vadd.f32 %v2232, %v2256
  %v2273 = vadd.f32 %v2233, %v2257
  %v2274 = vadd.f32 %v2234, %v2258
  %v2275 = vadd.f32 %v2235, %v2259
  %v2276 = vadd.f32 %v2236, %v2260
  %v2277 = vadd.f32 %v2237, %v2261
  %v2278 = vadd.f32 %v2238, %v2262
  %v2279 = vadd.f32 %v2239, %v2263
  %v2280 = vadd.f32 %v2240, %v2264
  %v2281 = vadd.f32 %v2241, %v2265
  %v2282 = vperm.slane %v1002, 7
  %v2283 = vperm.slane %v1005, 7
  %v2284 = vperm.slane %v1008, 7
  %v2285 = vperm.slane %v1011, 7
  %v2286 = vperm.slane %v1014, 7
  %v2287 = vperm.slane %v1017, 7
  %v2288 = vperm.slane %v1020, 7
  %v2289 = vperm.slane %v1023, 7
  %v2290 = vmul.f32 %v2282, %v2016
  %v2291 = vmul.f32 %v2282, %v2017
  %v2292 = vmul.f32 %v2283, %v2016
  %v2293 = vmul.f32 %v2283, %v2017
  %v2294 = vmul.f32 %v2284, %v2016
  %v2295 = vmul.f32 %v2284, %v2017
  %v2296 = vmul.f32 %v2285, %v2016
  %v2297 = vmul.f32 %v2285, %v2017
  %v2298 = vmul.f32 %v2286, %v2016
  %v2299 = vmul.f32 %v2286, %v2017
  %v2300 = vmul.f32 %v2287, %v2016
  %v2301 = vmul.f32 %v2287, %v2017
  %v2302 = vmul.f32 %v2288, %v2016
  %v2303 = vmul.f32 %v2288, %v2017
  %v2304 = vmul.f32 %v2289, %v2016
  %v2305 = vmul.f32 %v2289, %v2017
  %v2306 = vadd.f32 %v2266, %v2290
  %v2307 = vadd.f32 %v2267, %v2291
  %v2308 = vadd.f32 %v2268, %v2292
  %v2309 = vadd.f32 %v2269, %v2293
  %v2310 = vadd.f32 %v2270, %v2294
  %v2311 = vadd.f32 %v2271, %v2295
  %v2312 = vadd.f32 %v2272, %v2296
  %v2313 = vadd.f32 %v2273, %v2297
  %v2314 = vadd.f32 %v2274, %v2298
  %v2315 = vadd.f32 %v2275, %v2299
  %v2316 = vadd.f32 %v2276, %v2300
  %v2317 = vadd.f32 %v2277, %v2301
  %v2318 = vadd.f32 %v2278, %v2302
  %v2319 = vadd.f32 %v2279, %v2303
  %v2320 = vadd.f32 %v2280, %v2304
  %v2321 = vadd.f32 %v2281, %v2305
  %v2322 = vadd.f32 %v2306, %v2307
  %v2323 = vadd.f32 %v2322, %v2308
  %v2324 = vadd.f32 %v2323, %v2309
  %v2325 = vadd.f32 %v2324, %v2310
  %v2326 = vadd.f32 %v2325, %v2311
  %v2327 = vadd.f32 %v2326, %v2312
  %v2328 = vadd.f32 %v2327, %v2313
  %v2329 = vadd.f32 %v2328, %v2314
  %v2330 = vadd.f32 %v2329, %v2315
  %v2331 = vadd.f32 %v2330, %v2316
  %v2332 = vadd.f32 %v2331, %v2317
  %v2333 = vadd.f32 %v2332, %v2318
  %v2334 = vadd.f32 %v2333, %v2319
  %v2335 = vadd.f32 %v2334, %v2320
  %v2336 = vadd.f32 %v2335, %v2321
  %v2337 = vrot.slane %v2336, 4
  %v2338 = vadd.f32 %v2336, %v2337
  %v2339 = vrot.slane %v2338, 2
  %v2340 = vadd.f32 %v2338, %v2339
  %v2341 = vrot.slane %v2340, 1
  %v2342 = vadd.f32 %v2340, %v2341
  %v2343 = vmul.f32 %v2306, %v2306
  %v2344 = vmul.f32 %v2307, %v2307
  %v2345 = vmul.f32 %v2308, %v2308
  %v2346 = vmul.f32 %v2309, %v2309
  %v2347 = vmul.f32 %v2310, %v2310
  %v2348 = vmul.f32 %v2311, %v2311
  %v2349 = vmul.f32 %v2312, %v2312
  %v2350 = vmul.f32 %v2313, %v2313
  %v2351 = vmul.f32 %v2314, %v2314
  %v2352 = vmul.f32 %v2315, %v2315
  %v2353 = vmul.f32 %v2316, %v2316
  %v2354 = vmul.f32 %v2317, %v2317
  %v2355 = vmul.f32 %v2318, %v2318
  %v2356 = vmul.f32 %v2319, %v2319
  %v2357 = vmul.f32 %v2320, %v2320
  %v2358 = vmul.f32 %v2321, %v2321
  %v2359 = vadd.f32 %v2343, %v2344
  %v2360 = vadd.f32 %v2359, %v2345
  %v2361 = vadd.f32 %v2360, %v2346
  %v2362 = vadd.f32 %v2361, %v2347
  %v2363 = vadd.f32 %v2362, %v2348
  %v2364 = vadd.f32 %v2363, %v2349
  %v2365 = vadd.f32 %v2364, %v2350
  %v2366 = vadd.f32 %v2365, %v2351
  %v2367 = vadd.f32 %v2366, %v2352
  %v2368 = vadd.f32 %v2367, %v2353
  %v2369 = vadd.f32 %v2368, %v2354
  %v2370 = vadd.f32 %v2369, %v2355
  %v2371 = vadd.f32 %v2370, %v2356
  %v2372 = vadd.f32 %v2371, %v2357
  %v2373 = vadd.f32 %v2372, %v2358
  %v2374 = vrot.slane %v2373, 4
  %v2375 = vadd.f32 %v2373, %v2374
  %v2376 = vrot.slane %v2375, 2
  %v2377 = vadd.f32 %v2375, %v2376
  %v2378 = vrot.slane %v2377, 1
  %v2379 = vadd.f32 %v2377, %v2378
  %v2380 = vmul.f32 %v2342, 0.0078125
  %v2381 = vmul.f32 %v2379, 0.0078125
  %v2382 = vmul.f32 %v2380, %v2380
  %v2383 = vsub.f32 %v2381, %v2382
  %v2384 = vsub.f32 %v2306, %v2380
  %v2385 = vsub.f32 %v2307, %v2380
  %v2386 = vsub.f32 %v2308, %v2380
  %v2387 = vsub.f32 %v2309, %v2380
  %v2388 = vsub.f32 %v2310, %v2380
  %v2389 = vsub.f32 %v2311, %v2380
  %v2390 = vsub.f32 %v2312, %v2380
  %v2391 = vsub.f32 %v2313, %v2380
  %v2392 = vsub.f32 %v2314, %v2380
  %v2393 = vsub.f32 %v2315, %v2380
  %v2394 = vsub.f32 %v2316, %v2380
  %v2395 = vsub.f32 %v2317, %v2380
  %v2396 = vsub.f32 %v2318, %v2380
  %v2397 = vsub.f32 %v2319, %v2380
  %v2398 = vsub.f32 %v2320, %v2380
  %v2399 = vsub.f32 %v2321, %v2380
  %v2400 = vadd.f32 %v2383, 1e-05
  %v2401 = vrsqrt.pop %v2400
  %v2402 = vmul.f32 %v2401, %v2400
  %v2403 = vmul.f32 %v2402, %v2401
  %v2404 = vmul.f32 0.5, %v2403
  %v2405 = vsub.f32 1.5, %v2404
  %v2406 = vmul.f32 %v2401, %v2405
  %vm2407 = vweird.f32 %v2400
  %vm2408 = vweird.f32 %v2401
  %vm2409 = vmor %vm2407, %vm2408
  %v2410 = vsel %vm2409, %v2401, %v2406
  %v2411 = vmul.f32 %v2384, %v2410
  %v2412 = vmul.f32 %v2385, %v2410
  %v2413 = vmul.f32 %v2386, %v2410
  %v2414 = vmul.f32 %v2387, %v2410
  %v2415 = vmul.f32 %v2388, %v2410
  %v2416 = vmul.f32 %v2389, %v2410
  %v2417 = vmul.f32 %v2390, %v2410
  %v2418 = vmul.f32 %v2391, %v2410
  %v2419 = vmul.f32 %v2392, %v2410
  %v2420 = vmul.f32 %v2393, %v2410
  %v2421 = vmul.f32 %v2394, %v2410
  %v2422 = vmul.f32 %v2395, %v2410
  %v2423 = vmul.f32 %v2396, %v2410
  %v2424 = vmul.f32 %v2397, %v2410
  %v2425 = vmul.f32 %v2398, %v2410
  %v2426 = vmul.f32 %v2399, %v2410
  %v2427 = vmax.f32 %v2411, 0.0
  %v2428 = vmax.f32 %v2412, 0.0
  %v2429 = vmax.f32 %v2413, 0.0
  %v2430 = vmax.f32 %v2414, 0.0
  %v2431 = vmax.f32 %v2415, 0.0
  %v2432 = vmax.f32 %v2416, 0.0
  %v2433 = vmax.f32 %v2417, 0.0
  %v2434 = vmax.f32 %v2418, 0.0
  %v2435 = vmax.f32 %v2419, 0.0
  %v2436 = vmax.f32 %v2420, 0.0
  %v2437 = vmax.f32 %v2421, 0.0
  %v2438 = vmax.f32 %v2422, 0.0
  %v2439 = vmax.f32 %v2423, 0.0
  %v2440 = vmax.f32 %v2424, 0.0
  %v2441 = vmax.f32 %v2425, 0.0
  %v2442 = vmax.f32 %v2426, 0.0
  %v2443 = vperm.slane %v1225, 0
  %v2444 = vperm.slane %v1227, 0
  %v2445 = vperm.slane %v1229, 0
  %v2446 = vperm.slane %v1231, 0
  %v2447 = vperm.slane %v1233, 0
  %v2448 = vperm.slane %v1235, 0
  %v2449 = vperm.slane %v1237, 0
  %v2450 = vperm.slane %v1239, 0
  %v2451 = vmul.f32 %v2443, %v1026
  %v2452 = vmul.f32 %v2443, %v1029
  %v2453 = vmul.f32 %v2444, %v1026
  %v2454 = vmul.f32 %v2444, %v1029
  %v2455 = vmul.f32 %v2445, %v1026
  %v2456 = vmul.f32 %v2445, %v1029
  %v2457 = vmul.f32 %v2446, %v1026
  %v2458 = vmul.f32 %v2446, %v1029
  %v2459 = vmul.f32 %v2447, %v1026
  %v2460 = vmul.f32 %v2447, %v1029
  %v2461 = vmul.f32 %v2448, %v1026
  %v2462 = vmul.f32 %v2448, %v1029
  %v2463 = vmul.f32 %v2449, %v1026
  %v2464 = vmul.f32 %v2449, %v1029
  %v2465 = vmul.f32 %v2450, %v1026
  %v2466 = vmul.f32 %v2450, %v1029
  %v2467 = vperm.slane %v1225, 1
  %v2468 = vperm.slane %v1227, 1
  %v2469 = vperm.slane %v1229, 1
  %v2470 = vperm.slane %v1231, 1
  %v2471 = vperm.slane %v1233, 1
  %v2472 = vperm.slane %v1235, 1
  %v2473 = vperm.slane %v1237, 1
  %v2474 = vperm.slane %v1239, 1
  %v2475 = vmul.f32 %v2467, %v1032
  %v2476 = vmul.f32 %v2467, %v1035
  %v2477 = vmul.f32 %v2468, %v1032
  %v2478 = vmul.f32 %v2468, %v1035
  %v2479 = vmul.f32 %v2469, %v1032
  %v2480 = vmul.f32 %v2469, %v1035
  %v2481 = vmul.f32 %v2470, %v1032
  %v2482 = vmul.f32 %v2470, %v1035
  %v2483 = vmul.f32 %v2471, %v1032
  %v2484 = vmul.f32 %v2471, %v1035
  %v2485 = vmul.f32 %v2472, %v1032
  %v2486 = vmul.f32 %v2472, %v1035
  %v2487 = vmul.f32 %v2473, %v1032
  %v2488 = vmul.f32 %v2473, %v1035
  %v2489 = vmul.f32 %v2474, %v1032
  %v2490 = vmul.f32 %v2474, %v1035
  %v2491 = vadd.f32 %v2451, %v2475
  %v2492 = vadd.f32 %v2452, %v2476
  %v2493 = vadd.f32 %v2453, %v2477
  %v2494 = vadd.f32 %v2454, %v2478
  %v2495 = vadd.f32 %v2455, %v2479
  %v2496 = vadd.f32 %v2456, %v2480
  %v2497 = vadd.f32 %v2457, %v2481
  %v2498 = vadd.f32 %v2458, %v2482
  %v2499 = vadd.f32 %v2459, %v2483
  %v2500 = vadd.f32 %v2460, %v2484
  %v2501 = vadd.f32 %v2461, %v2485
  %v2502 = vadd.f32 %v2462, %v2486
  %v2503 = vadd.f32 %v2463, %v2487
  %v2504 = vadd.f32 %v2464, %v2488
  %v2505 = vadd.f32 %v2465, %v2489
  %v2506 = vadd.f32 %v2466, %v2490
  %v2507 = vperm.slane %v1225, 2
  %v2508 = vperm.slane %v1227, 2
  %v2509 = vperm.slane %v1229, 2
  %v2510 = vperm.slane %v1231, 2
  %v2511 = vperm.slane %v1233, 2
  %v2512 = vperm.slane %v1235, 2
  %v2513 = vperm.slane %v1237, 2
  %v2514 = vperm.slane %v1239, 2
  %v2515 = vmul.f32 %v2507, %v1038
  %v2516 = vmul.f32 %v2507, %v1041
  %v2517 = vmul.f32 %v2508, %v1038
  %v2518 = vmul.f32 %v2508, %v1041
  %v2519 = vmul.f32 %v2509, %v1038
  %v2520 = vmul.f32 %v2509, %v1041
  %v2521 = vmul.f32 %v2510, %v1038
  %v2522 = vmul.f32 %v2510, %v1041
  %v2523 = vmul.f32 %v2511, %v1038
  %v2524 = vmul.f32 %v2511, %v1041
  %v2525 = vmul.f32 %v2512, %v1038
  %v2526 = vmul.f32 %v2512, %v1041
  %v2527 = vmul.f32 %v2513, %v1038
  %v2528 = vmul.f32 %v2513, %v1041
  %v2529 = vmul.f32 %v2514, %v1038
  %v2530 = vmul.f32 %v2514, %v1041
  %v2531 = vadd.f32 %v2491, %v2515
  %v2532 = vadd.f32 %v2492, %v2516
  %v2533 = vadd.f32 %v2493, %v2517
  %v2534 = vadd.f32 %v2494, %v2518
  %v2535 = vadd.f32 %v2495, %v2519
  %v2536 = vadd.f32 %v2496, %v2520
  %v2537 = vadd.f32 %v2497, %v2521
  %v2538 = vadd.f32 %v2498, %v2522
  %v2539 = vadd.f32 %v2499, %v2523
  %v2540 = vadd.f32 %v2500, %v2524
  %v2541 = vadd.f32 %v2501, %v2525
  %v2542 = vadd.f32 %v2502, %v2526
  %v2543 = vadd.f32 %v2503, %v2527
  %v2544 = vadd.f32 %v2504, %v2528
  %v2545 = vadd.f32 %v2505, %v2529
  %v2546 = vadd.f32 %v2506, %v2530
  %v2547 = vperm.slane %v1225, 3
  %v2548 = vperm.slane %v1227, 3
  %v2549 = vperm.slane %v1229, 3
  %v2550 = vperm.slane %v1231, 3
  %v2551 = vperm.slane %v1233, 3
  %v2552 = vperm.slane %v1235, 3
  %v2553 = vperm.slane %v1237, 3
  %v2554 = vperm.slane %v1239, 3
  %v2555 = vmul.f32 %v2547, %v1044
  %v2556 = vmul.f32 %v2547, %v1047
  %v2557 = vmul.f32 %v2548, %v1044
  %v2558 = vmul.f32 %v2548, %v1047
  %v2559 = vmul.f32 %v2549, %v1044
  %v2560 = vmul.f32 %v2549, %v1047
  %v2561 = vmul.f32 %v2550, %v1044
  %v2562 = vmul.f32 %v2550, %v1047
  %v2563 = vmul.f32 %v2551, %v1044
  %v2564 = vmul.f32 %v2551, %v1047
  %v2565 = vmul.f32 %v2552, %v1044
  %v2566 = vmul.f32 %v2552, %v1047
  %v2567 = vmul.f32 %v2553, %v1044
  %v2568 = vmul.f32 %v2553, %v1047
  %v2569 = vmul.f32 %v2554, %v1044
  %v2570 = vmul.f32 %v2554, %v1047
  %v2571 = vadd.f32 %v2531, %v2555
  %v2572 = vadd.f32 %v2532, %v2556
  %v2573 = vadd.f32 %v2533, %v2557
  %v2574 = vadd.f32 %v2534, %v2558
  %v2575 = vadd.f32 %v2535, %v2559
  %v2576 = vadd.f32 %v2536, %v2560
  %v2577 = vadd.f32 %v2537, %v2561
  %v2578 = vadd.f32 %v2538, %v2562
  %v2579 = vadd.f32 %v2539, %v2563
  %v2580 = vadd.f32 %v2540, %v2564
  %v2581 = vadd.f32 %v2541, %v2565
  %v2582 = vadd.f32 %v2542, %v2566
  %v2583 = vadd.f32 %v2543, %v2567
  %v2584 = vadd.f32 %v2544, %v2568
  %v2585 = vadd.f32 %v2545, %v2569
  %v2586 = vadd.f32 %v2546, %v2570
  %v2587 = vperm.slane %v1225, 4
  %v2588 = vperm.slane %v1227, 4
  %v2589 = vperm.slane %v1229, 4
  %v2590 = vperm.slane %v1231, 4
  %v2591 = vperm.slane %v1233, 4
  %v2592 = vperm.slane %v1235, 4
  %v2593 = vperm.slane %v1237, 4
  %v2594 = vperm.slane %v1239, 4
  %v2595 = vmul.f32 %v2587, %v1050
  %v2596 = vmul.f32 %v2587, %v1053
  %v2597 = vmul.f32 %v2588, %v1050
  %v2598 = vmul.f32 %v2588, %v1053
  %v2599 = vmul.f32 %v2589, %v1050
  %v2600 = vmul.f32 %v2589, %v1053
  %v2601 = vmul.f32 %v2590, %v1050
  %v2602 = vmul.f32 %v2590, %v1053
  %v2603 = vmul.f32 %v2591, %v1050
  %v2604 = vmul.f32 %v2591, %v1053
  %v2605 = vmul.f32 %v2592, %v1050
  %v2606 = vmul.f32 %v2592, %v1053
  %v2607 = vmul.f32 %v2593, %v1050
  %v2608 = vmul.f32 %v2593, %v1053
  %v2609 = vmul.f32 %v2594, %v1050
  %v2610 = vmul.f32 %v2594, %v1053
  %v2611 = vadd.f32 %v2571, %v2595
  %v2612 = vadd.f32 %v2572, %v2596
  %v2613 = vadd.f32 %v2573, %v2597
  %v2614 = vadd.f32 %v2574, %v2598
  %v2615 = vadd.f32 %v2575, %v2599
  %v2616 = vadd.f32 %v2576, %v2600
  %v2617 = vadd.f32 %v2577, %v2601
  %v2618 = vadd.f32 %v2578, %v2602
  %v2619 = vadd.f32 %v2579, %v2603
  %v2620 = vadd.f32 %v2580, %v2604
  %v2621 = vadd.f32 %v2581, %v2605
  %v2622 = vadd.f32 %v2582, %v2606
  %v2623 = vadd.f32 %v2583, %v2607
  %v2624 = vadd.f32 %v2584, %v2608
  %v2625 = vadd.f32 %v2585, %v2609
  %v2626 = vadd.f32 %v2586, %v2610
  %v2627 = vperm.slane %v1225, 5
  %v2628 = vperm.slane %v1227, 5
  %v2629 = vperm.slane %v1229, 5
  %v2630 = vperm.slane %v1231, 5
  %v2631 = vperm.slane %v1233, 5
  %v2632 = vperm.slane %v1235, 5
  %v2633 = vperm.slane %v1237, 5
  %v2634 = vperm.slane %v1239, 5
  %v2635 = vmul.f32 %v2627, %v1056
  %v2636 = vmul.f32 %v2627, %v1059
  %v2637 = vmul.f32 %v2628, %v1056
  %v2638 = vmul.f32 %v2628, %v1059
  %v2639 = vmul.f32 %v2629, %v1056
  %v2640 = vmul.f32 %v2629, %v1059
  %v2641 = vmul.f32 %v2630, %v1056
  %v2642 = vmul.f32 %v2630, %v1059
  %v2643 = vmul.f32 %v2631, %v1056
  %v2644 = vmul.f32 %v2631, %v1059
  %v2645 = vmul.f32 %v2632, %v1056
  %v2646 = vmul.f32 %v2632, %v1059
  %v2647 = vmul.f32 %v2633, %v1056
  %v2648 = vmul.f32 %v2633, %v1059
  %v2649 = vmul.f32 %v2634, %v1056
  %v2650 = vmul.f32 %v2634, %v1059
  %v2651 = vadd.f32 %v2611, %v2635
  %v2652 = vadd.f32 %v2612, %v2636
  %v2653 = vadd.f32 %v2613, %v2637
  %v2654 = vadd.f32 %v2614, %v2638
  %v2655 = vadd.f32 %v2615, %v2639
  %v2656 = vadd.f32 %v2616, %v2640
  %v2657 = vadd.f32 %v2617, %v2641
  %v2658 = vadd.f32 %v2618, %v2642
  %v2659 = vadd.f32 %v2619, %v2643
  %v2660 = vadd.f32 %v2620, %v2644
  %v2661 = vadd.f32 %v2621, %v2645
  %v2662 = vadd.f32 %v2622, %v2646
  %v2663 = vadd.f32 %v2623, %v2647
  %v2664 = vadd.f32 %v2624, %v2648
  %v2665 = vadd.f32 %v2625, %v2649
  %v2666 = vadd.f32 %v2626, %v2650
  %v2667 = vperm.slane %v1225, 6
  %v2668 = vperm.slane %v1227, 6
  %v2669 = vperm.slane %v1229, 6
  %v2670 = vperm.slane %v1231, 6
  %v2671 = vperm.slane %v1233, 6
  %v2672 = vperm.slane %v1235, 6
  %v2673 = vperm.slane %v1237, 6
  %v2674 = vperm.slane %v1239, 6
  %v2675 = vmul.f32 %v2667, %v1062
  %v2676 = vmul.f32 %v2667, %v1065
  %v2677 = vmul.f32 %v2668, %v1062
  %v2678 = vmul.f32 %v2668, %v1065
  %v2679 = vmul.f32 %v2669, %v1062
  %v2680 = vmul.f32 %v2669, %v1065
  %v2681 = vmul.f32 %v2670, %v1062
  %v2682 = vmul.f32 %v2670, %v1065
  %v2683 = vmul.f32 %v2671, %v1062
  %v2684 = vmul.f32 %v2671, %v1065
  %v2685 = vmul.f32 %v2672, %v1062
  %v2686 = vmul.f32 %v2672, %v1065
  %v2687 = vmul.f32 %v2673, %v1062
  %v2688 = vmul.f32 %v2673, %v1065
  %v2689 = vmul.f32 %v2674, %v1062
  %v2690 = vmul.f32 %v2674, %v1065
  %v2691 = vadd.f32 %v2651, %v2675
  %v2692 = vadd.f32 %v2652, %v2676
  %v2693 = vadd.f32 %v2653, %v2677
  %v2694 = vadd.f32 %v2654, %v2678
  %v2695 = vadd.f32 %v2655, %v2679
  %v2696 = vadd.f32 %v2656, %v2680
  %v2697 = vadd.f32 %v2657, %v2681
  %v2698 = vadd.f32 %v2658, %v2682
  %v2699 = vadd.f32 %v2659, %v2683
  %v2700 = vadd.f32 %v2660, %v2684
  %v2701 = vadd.f32 %v2661, %v2685
  %v2702 = vadd.f32 %v2662, %v2686
  %v2703 = vadd.f32 %v2663, %v2687
  %v2704 = vadd.f32 %v2664, %v2688
  %v2705 = vadd.f32 %v2665, %v2689
  %v2706 = vadd.f32 %v2666, %v2690
  %v2707 = vperm.slane %v1225, 7
  %v2708 = vperm.slane %v1227, 7
  %v2709 = vperm.slane %v1229, 7
  %v2710 = vperm.slane %v1231, 7
  %v2711 = vperm.slane %v1233, 7
  %v2712 = vperm.slane %v1235, 7
  %v2713 = vperm.slane %v1237, 7
  %v2714 = vperm.slane %v1239, 7
  %v2715 = vmul.f32 %v2707, %v1068
  %v2716 = vmul.f32 %v2707, %v1071
  %v2717 = vmul.f32 %v2708, %v1068
  %v2718 = vmul.f32 %v2708, %v1071
  %v2719 = vmul.f32 %v2709, %v1068
  %v2720 = vmul.f32 %v2709, %v1071
  %v2721 = vmul.f32 %v2710, %v1068
  %v2722 = vmul.f32 %v2710, %v1071
  %v2723 = vmul.f32 %v2711, %v1068
  %v2724 = vmul.f32 %v2711, %v1071
  %v2725 = vmul.f32 %v2712, %v1068
  %v2726 = vmul.f32 %v2712, %v1071
  %v2727 = vmul.f32 %v2713, %v1068
  %v2728 = vmul.f32 %v2713, %v1071
  %v2729 = vmul.f32 %v2714, %v1068
  %v2730 = vmul.f32 %v2714, %v1071
  %v2731 = vadd.f32 %v2691, %v2715
  %v2732 = vadd.f32 %v2692, %v2716
  %v2733 = vadd.f32 %v2693, %v2717
  %v2734 = vadd.f32 %v2694, %v2718
  %v2735 = vadd.f32 %v2695, %v2719
  %v2736 = vadd.f32 %v2696, %v2720
  %v2737 = vadd.f32 %v2697, %v2721
  %v2738 = vadd.f32 %v2698, %v2722
  %v2739 = vadd.f32 %v2699, %v2723
  %v2740 = vadd.f32 %v2700, %v2724
  %v2741 = vadd.f32 %v2701, %v2725
  %v2742 = vadd.f32 %v2702, %v2726
  %v2743 = vadd.f32 %v2703, %v2727
  %v2744 = vadd.f32 %v2704, %v2728
  %v2745 = vadd.f32 %v2705, %v2729
  %v2746 = vadd.f32 %v2706, %v2730
  %v2747 = vperm.slane %v1226, 0
  %v2748 = vperm.slane %v1228, 0
  %v2749 = vperm.slane %v1230, 0
  %v2750 = vperm.slane %v1232, 0
  %v2751 = vperm.slane %v1234, 0
  %v2752 = vperm.slane %v1236, 0
  %v2753 = vperm.slane %v1238, 0
  %v2754 = vperm.slane %v1240, 0
  %v2755 = vmul.f32 %v2747, %v1074
  %v2756 = vmul.f32 %v2747, %v1077
  %v2757 = vmul.f32 %v2748, %v1074
  %v2758 = vmul.f32 %v2748, %v1077
  %v2759 = vmul.f32 %v2749, %v1074
  %v2760 = vmul.f32 %v2749, %v1077
  %v2761 = vmul.f32 %v2750, %v1074
  %v2762 = vmul.f32 %v2750, %v1077
  %v2763 = vmul.f32 %v2751, %v1074
  %v2764 = vmul.f32 %v2751, %v1077
  %v2765 = vmul.f32 %v2752, %v1074
  %v2766 = vmul.f32 %v2752, %v1077
  %v2767 = vmul.f32 %v2753, %v1074
  %v2768 = vmul.f32 %v2753, %v1077
  %v2769 = vmul.f32 %v2754, %v1074
  %v2770 = vmul.f32 %v2754, %v1077
  %v2771 = vadd.f32 %v2731, %v2755
  %v2772 = vadd.f32 %v2732, %v2756
  %v2773 = vadd.f32 %v2733, %v2757
  %v2774 = vadd.f32 %v2734, %v2758
  %v2775 = vadd.f32 %v2735, %v2759
  %v2776 = vadd.f32 %v2736, %v2760
  %v2777 = vadd.f32 %v2737, %v2761
  %v2778 = vadd.f32 %v2738, %v2762
  %v2779 = vadd.f32 %v2739, %v2763
  %v2780 = vadd.f32 %v2740, %v2764
  %v2781 = vadd.f32 %v2741, %v2765
  %v2782 = vadd.f32 %v2742, %v2766
  %v2783 = vadd.f32 %v2743, %v2767
  %v2784 = vadd.f32 %v2744, %v2768
  %v2785 = vadd.f32 %v2745, %v2769
  %v2786 = vadd.f32 %v2746, %v2770
  %v2787 = vperm.slane %v1226, 1
  %v2788 = vperm.slane %v1228, 1
  %v2789 = vperm.slane %v1230, 1
  %v2790 = vperm.slane %v1232, 1
  %v2791 = vperm.slane %v1234, 1
  %v2792 = vperm.slane %v1236, 1
  %v2793 = vperm.slane %v1238, 1
  %v2794 = vperm.slane %v1240, 1
  %v2795 = vmul.f32 %v2787, %v1080
  %v2796 = vmul.f32 %v2787, %v1083
  %v2797 = vmul.f32 %v2788, %v1080
  %v2798 = vmul.f32 %v2788, %v1083
  %v2799 = vmul.f32 %v2789, %v1080
  %v2800 = vmul.f32 %v2789, %v1083
  %v2801 = vmul.f32 %v2790, %v1080
  %v2802 = vmul.f32 %v2790, %v1083
  %v2803 = vmul.f32 %v2791, %v1080
  %v2804 = vmul.f32 %v2791, %v1083
  %v2805 = vmul.f32 %v2792, %v1080
  %v2806 = vmul.f32 %v2792, %v1083
  %v2807 = vmul.f32 %v2793, %v1080
  %v2808 = vmul.f32 %v2793, %v1083
  %v2809 = vmul.f32 %v2794, %v1080
  %v2810 = vmul.f32 %v2794, %v1083
  %v2811 = vadd.f32 %v2771, %v2795
  %v2812 = vadd.f32 %v2772, %v2796
  %v2813 = vadd.f32 %v2773, %v2797
  %v2814 = vadd.f32 %v2774, %v2798
  %v2815 = vadd.f32 %v2775, %v2799
  %v2816 = vadd.f32 %v2776, %v2800
  %v2817 = vadd.f32 %v2777, %v2801
  %v2818 = vadd.f32 %v2778, %v2802
  %v2819 = vadd.f32 %v2779, %v2803
  %v2820 = vadd.f32 %v2780, %v2804
  %v2821 = vadd.f32 %v2781, %v2805
  %v2822 = vadd.f32 %v2782, %v2806
  %v2823 = vadd.f32 %v2783, %v2807
  %v2824 = vadd.f32 %v2784, %v2808
  %v2825 = vadd.f32 %v2785, %v2809
  %v2826 = vadd.f32 %v2786, %v2810
  %v2827 = vperm.slane %v1226, 2
  %v2828 = vperm.slane %v1228, 2
  %v2829 = vperm.slane %v1230, 2
  %v2830 = vperm.slane %v1232, 2
  %v2831 = vperm.slane %v1234, 2
  %v2832 = vperm.slane %v1236, 2
  %v2833 = vperm.slane %v1238, 2
  %v2834 = vperm.slane %v1240, 2
  %v2835 = vmul.f32 %v2827, %v1086
  %v2836 = vmul.f32 %v2827, %v1089
  %v2837 = vmul.f32 %v2828, %v1086
  %v2838 = vmul.f32 %v2828, %v1089
  %v2839 = vmul.f32 %v2829, %v1086
  %v2840 = vmul.f32 %v2829, %v1089
  %v2841 = vmul.f32 %v2830, %v1086
  %v2842 = vmul.f32 %v2830, %v1089
  %v2843 = vmul.f32 %v2831, %v1086
  %v2844 = vmul.f32 %v2831, %v1089
  %v2845 = vmul.f32 %v2832, %v1086
  %v2846 = vmul.f32 %v2832, %v1089
  %v2847 = vmul.f32 %v2833, %v1086
  %v2848 = vmul.f32 %v2833, %v1089
  %v2849 = vmul.f32 %v2834, %v1086
  %v2850 = vmul.f32 %v2834, %v1089
  %v2851 = vadd.f32 %v2811, %v2835
  %v2852 = vadd.f32 %v2812, %v2836
  %v2853 = vadd.f32 %v2813, %v2837
  %v2854 = vadd.f32 %v2814, %v2838
  %v2855 = vadd.f32 %v2815, %v2839
  %v2856 = vadd.f32 %v2816, %v2840
  %v2857 = vadd.f32 %v2817, %v2841
  %v2858 = vadd.f32 %v2818, %v2842
  %v2859 = vadd.f32 %v2819, %v2843
  %v2860 = vadd.f32 %v2820, %v2844
  %v2861 = vadd.f32 %v2821, %v2845
  %v2862 = vadd.f32 %v2822, %v2846
  %v2863 = vadd.f32 %v2823, %v2847
  %v2864 = vadd.f32 %v2824, %v2848
  %v2865 = vadd.f32 %v2825, %v2849
  %v2866 = vadd.f32 %v2826, %v2850
  %v2867 = vperm.slane %v1226, 3
  %v2868 = vperm.slane %v1228, 3
  %v2869 = vperm.slane %v1230, 3
  %v2870 = vperm.slane %v1232, 3
  %v2871 = vperm.slane %v1234, 3
  %v2872 = vperm.slane %v1236, 3
  %v2873 = vperm.slane %v1238, 3
  %v2874 = vperm.slane %v1240, 3
  %v2875 = vmul.f32 %v2867, %v1092
  %v2876 = vmul.f32 %v2867, %v1095
  %v2877 = vmul.f32 %v2868, %v1092
  %v2878 = vmul.f32 %v2868, %v1095
  %v2879 = vmul.f32 %v2869, %v1092
  %v2880 = vmul.f32 %v2869, %v1095
  %v2881 = vmul.f32 %v2870, %v1092
  %v2882 = vmul.f32 %v2870, %v1095
  %v2883 = vmul.f32 %v2871, %v1092
  %v2884 = vmul.f32 %v2871, %v1095
  %v2885 = vmul.f32 %v2872, %v1092
  %v2886 = vmul.f32 %v2872, %v1095
  %v2887 = vmul.f32 %v2873, %v1092
  %v2888 = vmul.f32 %v2873, %v1095
  %v2889 = vmul.f32 %v2874, %v1092
  %v2890 = vmul.f32 %v2874, %v1095
  %v2891 = vadd.f32 %v2851, %v2875
  %v2892 = vadd.f32 %v2852, %v2876
  %v2893 = vadd.f32 %v2853, %v2877
  %v2894 = vadd.f32 %v2854, %v2878
  %v2895 = vadd.f32 %v2855, %v2879
  %v2896 = vadd.f32 %v2856, %v2880
  %v2897 = vadd.f32 %v2857, %v2881
  %v2898 = vadd.f32 %v2858, %v2882
  %v2899 = vadd.f32 %v2859, %v2883
  %v2900 = vadd.f32 %v2860, %v2884
  %v2901 = vadd.f32 %v2861, %v2885
  %v2902 = vadd.f32 %v2862, %v2886
  %v2903 = vadd.f32 %v2863, %v2887
  %v2904 = vadd.f32 %v2864, %v2888
  %v2905 = vadd.f32 %v2865, %v2889
  %v2906 = vadd.f32 %v2866, %v2890
  %v2907 = vperm.slane %v1226, 4
  %v2908 = vperm.slane %v1228, 4
  %v2909 = vperm.slane %v1230, 4
  %v2910 = vperm.slane %v1232, 4
  %v2911 = vperm.slane %v1234, 4
  %v2912 = vperm.slane %v1236, 4
  %v2913 = vperm.slane %v1238, 4
  %v2914 = vperm.slane %v1240, 4
  %v2915 = vmul.f32 %v2907, %v1098
  %v2916 = vmul.f32 %v2907, %v1101
  %v2917 = vmul.f32 %v2908, %v1098
  %v2918 = vmul.f32 %v2908, %v1101
  %v2919 = vmul.f32 %v2909, %v1098
  %v2920 = vmul.f32 %v2909, %v1101
  %v2921 = vmul.f32 %v2910, %v1098
  %v2922 = vmul.f32 %v2910, %v1101
  %v2923 = vmul.f32 %v2911, %v1098
  %v2924 = vmul.f32 %v2911, %v1101
  %v2925 = vmul.f32 %v2912, %v1098
  %v2926 = vmul.f32 %v2912, %v1101
  %v2927 = vmul.f32 %v2913, %v1098
  %v2928 = vmul.f32 %v2913, %v1101
  %v2929 = vmul.f32 %v2914, %v1098
  %v2930 = vmul.f32 %v2914, %v1101
  %v2931 = vadd.f32 %v2891, %v2915
  %v2932 = vadd.f32 %v2892, %v2916
  %v2933 = vadd.f32 %v2893, %v2917
  %v2934 = vadd.f32 %v2894, %v2918
  %v2935 = vadd.f32 %v2895, %v2919
  %v2936 = vadd.f32 %v2896, %v2920
  %v2937 = vadd.f32 %v2897, %v2921
  %v2938 = vadd.f32 %v2898, %v2922
  %v2939 = vadd.f32 %v2899, %v2923
  %v2940 = vadd.f32 %v2900, %v2924
  %v2941 = vadd.f32 %v2901, %v2925
  %v2942 = vadd.f32 %v2902, %v2926
  %v2943 = vadd.f32 %v2903, %v2927
  %v2944 = vadd.f32 %v2904, %v2928
  %v2945 = vadd.f32 %v2905, %v2929
  %v2946 = vadd.f32 %v2906, %v2930
  %v2947 = vperm.slane %v1226, 5
  %v2948 = vperm.slane %v1228, 5
  %v2949 = vperm.slane %v1230, 5
  %v2950 = vperm.slane %v1232, 5
  %v2951 = vperm.slane %v1234, 5
  %v2952 = vperm.slane %v1236, 5
  %v2953 = vperm.slane %v1238, 5
  %v2954 = vperm.slane %v1240, 5
  %v2955 = vmul.f32 %v2947, %v1104
  %v2956 = vmul.f32 %v2947, %v1107
  %v2957 = vmul.f32 %v2948, %v1104
  %v2958 = vmul.f32 %v2948, %v1107
  %v2959 = vmul.f32 %v2949, %v1104
  %v2960 = vmul.f32 %v2949, %v1107
  %v2961 = vmul.f32 %v2950, %v1104
  %v2962 = vmul.f32 %v2950, %v1107
  %v2963 = vmul.f32 %v2951, %v1104
  %v2964 = vmul.f32 %v2951, %v1107
  %v2965 = vmul.f32 %v2952, %v1104
  %v2966 = vmul.f32 %v2952, %v1107
  %v2967 = vmul.f32 %v2953, %v1104
  %v2968 = vmul.f32 %v2953, %v1107
  %v2969 = vmul.f32 %v2954, %v1104
  %v2970 = vmul.f32 %v2954, %v1107
  %v2971 = vadd.f32 %v2931, %v2955
  %v2972 = vadd.f32 %v2932, %v2956
  %v2973 = vadd.f32 %v2933, %v2957
  %v2974 = vadd.f32 %v2934, %v2958
  %v2975 = vadd.f32 %v2935, %v2959
  %v2976 = vadd.f32 %v2936, %v2960
  %v2977 = vadd.f32 %v2937, %v2961
  %v2978 = vadd.f32 %v2938, %v2962
  %v2979 = vadd.f32 %v2939, %v2963
  %v2980 = vadd.f32 %v2940, %v2964
  %v2981 = vadd.f32 %v2941, %v2965
  %v2982 = vadd.f32 %v2942, %v2966
  %v2983 = vadd.f32 %v2943, %v2967
  %v2984 = vadd.f32 %v2944, %v2968
  %v2985 = vadd.f32 %v2945, %v2969
  %v2986 = vadd.f32 %v2946, %v2970
  %v2987 = vperm.slane %v1226, 6
  %v2988 = vperm.slane %v1228, 6
  %v2989 = vperm.slane %v1230, 6
  %v2990 = vperm.slane %v1232, 6
  %v2991 = vperm.slane %v1234, 6
  %v2992 = vperm.slane %v1236, 6
  %v2993 = vperm.slane %v1238, 6
  %v2994 = vperm.slane %v1240, 6
  %v2995 = vmul.f32 %v2987, %v1110
  %v2996 = vmul.f32 %v2987, %v1113
  %v2997 = vmul.f32 %v2988, %v1110
  %v2998 = vmul.f32 %v2988, %v1113
  %v2999 = vmul.f32 %v2989, %v1110
  %v3000 = vmul.f32 %v2989, %v1113
  %v3001 = vmul.f32 %v2990, %v1110
  %v3002 = vmul.f32 %v2990, %v1113
  %v3003 = vmul.f32 %v2991, %v1110
  %v3004 = vmul.f32 %v2991, %v1113
  %v3005 = vmul.f32 %v2992, %v1110
  %v3006 = vmul.f32 %v2992, %v1113
  %v3007 = vmul.f32 %v2993, %v1110
  %v3008 = vmul.f32 %v2993, %v1113
  %v3009 = vmul.f32 %v2994, %v1110
  %v3010 = vmul.f32 %v2994, %v1113
  %v3011 = vadd.f32 %v2971, %v2995
  %v3012 = vadd.f32 %v2972, %v2996
  %v3013 = vadd.f32 %v2973, %v2997
  %v3014 = vadd.f32 %v2974, %v2998
  %v3015 = vadd.f32 %v2975, %v2999
  %v3016 = vadd.f32 %v2976, %v3000
  %v3017 = vadd.f32 %v2977, %v3001
  %v3018 = vadd.f32 %v2978, %v3002
  %v3019 = vadd.f32 %v2979, %v3003
  %v3020 = vadd.f32 %v2980, %v3004
  %v3021 = vadd.f32 %v2981, %v3005
  %v3022 = vadd.f32 %v2982, %v3006
  %v3023 = vadd.f32 %v2983, %v3007
  %v3024 = vadd.f32 %v2984, %v3008
  %v3025 = vadd.f32 %v2985, %v3009
  %v3026 = vadd.f32 %v2986, %v3010
  %v3027 = vperm.slane %v1226, 7
  %v3028 = vperm.slane %v1228, 7
  %v3029 = vperm.slane %v1230, 7
  %v3030 = vperm.slane %v1232, 7
  %v3031 = vperm.slane %v1234, 7
  %v3032 = vperm.slane %v1236, 7
  %v3033 = vperm.slane %v1238, 7
  %v3034 = vperm.slane %v1240, 7
  %v3035 = vmul.f32 %v3027, %v1116
  %v3036 = vmul.f32 %v3027, %v1119
  %v3037 = vmul.f32 %v3028, %v1116
  %v3038 = vmul.f32 %v3028, %v1119
  %v3039 = vmul.f32 %v3029, %v1116
  %v3040 = vmul.f32 %v3029, %v1119
  %v3041 = vmul.f32 %v3030, %v1116
  %v3042 = vmul.f32 %v3030, %v1119
  %v3043 = vmul.f32 %v3031, %v1116
  %v3044 = vmul.f32 %v3031, %v1119
  %v3045 = vmul.f32 %v3032, %v1116
  %v3046 = vmul.f32 %v3032, %v1119
  %v3047 = vmul.f32 %v3033, %v1116
  %v3048 = vmul.f32 %v3033, %v1119
  %v3049 = vmul.f32 %v3034, %v1116
  %v3050 = vmul.f32 %v3034, %v1119
  %v3051 = vadd.f32 %v3011, %v3035
  %v3052 = vadd.f32 %v3012, %v3036
  %v3053 = vadd.f32 %v3013, %v3037
  %v3054 = vadd.f32 %v3014, %v3038
  %v3055 = vadd.f32 %v3015, %v3039
  %v3056 = vadd.f32 %v3016, %v3040
  %v3057 = vadd.f32 %v3017, %v3041
  %v3058 = vadd.f32 %v3018, %v3042
  %v3059 = vadd.f32 %v3019, %v3043
  %v3060 = vadd.f32 %v3020, %v3044
  %v3061 = vadd.f32 %v3021, %v3045
  %v3062 = vadd.f32 %v3022, %v3046
  %v3063 = vadd.f32 %v3023, %v3047
  %v3064 = vadd.f32 %v3024, %v3048
  %v3065 = vadd.f32 %v3025, %v3049
  %v3066 = vadd.f32 %v3026, %v3050
  %v3067 = vadd.f32 %v3051, %v3052
  %v3068 = vadd.f32 %v3067, %v3053
  %v3069 = vadd.f32 %v3068, %v3054
  %v3070 = vadd.f32 %v3069, %v3055
  %v3071 = vadd.f32 %v3070, %v3056
  %v3072 = vadd.f32 %v3071, %v3057
  %v3073 = vadd.f32 %v3072, %v3058
  %v3074 = vadd.f32 %v3073, %v3059
  %v3075 = vadd.f32 %v3074, %v3060
  %v3076 = vadd.f32 %v3075, %v3061
  %v3077 = vadd.f32 %v3076, %v3062
  %v3078 = vadd.f32 %v3077, %v3063
  %v3079 = vadd.f32 %v3078, %v3064
  %v3080 = vadd.f32 %v3079, %v3065
  %v3081 = vadd.f32 %v3080, %v3066
  %v3082 = vrot.slane %v3081, 4
  %v3083 = vadd.f32 %v3081, %v3082
  %v3084 = vrot.slane %v3083, 2
  %v3085 = vadd.f32 %v3083, %v3084
  %v3086 = vrot.slane %v3085, 1
  %v3087 = vadd.f32 %v3085, %v3086
  %v3088 = vmul.f32 %v3051, %v3051
  %v3089 = vmul.f32 %v3052, %v3052
  %v3090 = vmul.f32 %v3053, %v3053
  %v3091 = vmul.f32 %v3054, %v3054
  %v3092 = vmul.f32 %v3055, %v3055
  %v3093 = vmul.f32 %v3056, %v3056
  %v3094 = vmul.f32 %v3057, %v3057
  %v3095 = vmul.f32 %v3058, %v3058
  %v3096 = vmul.f32 %v3059, %v3059
  %v3097 = vmul.f32 %v3060, %v3060
  %v3098 = vmul.f32 %v3061, %v3061
  %v3099 = vmul.f32 %v3062, %v3062
  %v3100 = vmul.f32 %v3063, %v3063
  %v3101 = vmul.f32 %v3064, %v3064
  %v3102 = vmul.f32 %v3065, %v3065
  %v3103 = vmul.f32 %v3066, %v3066
  %v3104 = vadd.f32 %v3088, %v3089
  %v3105 = vadd.f32 %v3104, %v3090
  %v3106 = vadd.f32 %v3105, %v3091
  %v3107 = vadd.f32 %v3106, %v3092
  %v3108 = vadd.f32 %v3107, %v3093
  %v3109 = vadd.f32 %v3108, %v3094
  %v3110 = vadd.f32 %v3109, %v3095
  %v3111 = vadd.f32 %v3110, %v3096
  %v3112 = vadd.f32 %v3111, %v3097
  %v3113 = vadd.f32 %v3112, %v3098
  %v3114 = vadd.f32 %v3113, %v3099
  %v3115 = vadd.f32 %v3114, %v3100
  %v3116 = vadd.f32 %v3115, %v3101
  %v3117 = vadd.f32 %v3116, %v3102
  %v3118 = vadd.f32 %v3117, %v3103
  %v3119 = vrot.slane %v3118, 4
  %v3120 = vadd.f32 %v3118, %v3119
  %v3121 = vrot.slane %v3120, 2
  %v3122 = vadd.f32 %v3120, %v3121
  %v3123 = vrot.slane %v3122, 1
  %v3124 = vadd.f32 %v3122, %v3123
  %v3125 = vmul.f32 %v3087, 0.0078125
  %v3126 = vmul.f32 %v3124, 0.0078125
  %v3127 = vmul.f32 %v3125, %v3125
  %v3128 = vsub.f32 %v3126, %v3127
  %v3129 = vsub.f32 %v3051, %v3125
  %v3130 = vsub.f32 %v3052, %v3125
  %v3131 = vsub.f32 %v3053, %v3125
  %v3132 = vsub.f32 %v3054, %v3125
  %v3133 = vsub.f32 %v3055, %v3125
  %v3134 = vsub.f32 %v3056, %v3125
  %v3135 = vsub.f32 %v3057, %v3125
  %v3136 = vsub.f32 %v3058, %v3125
  %v3137 = vsub.f32 %v3059, %v3125
  %v3138 = vsub.f32 %v3060, %v3125
  %v3139 = vsub.f32 %v3061, %v3125
  %v3140 = vsub.f32 %v3062, %v3125
  %v3141 = vsub.f32 %v3063, %v3125
  %v3142 = vsub.f32 %v3064, %v3125
  %v3143 = vsub.f32 %v3065, %v3125
  %v3144 = vsub.f32 %v3066, %v3125
  %v3145 = vadd.f32 %v3128, 1e-05
  %v3146 = vrsqrt.pop %v3145
  %v3147 = vmul.f32 %v3146, %v3145
  %v3148 = vmul.f32 %v3147, %v3146
  %v3149 = vmul.f32 0.5, %v3148
  %v3150 = vsub.f32 1.5, %v3149
  %v3151 = vmul.f32 %v3146, %v3150
  %vm3152 = vweird.f32 %v3145
  %vm3153 = vweird.f32 %v3146
  %vm3154 = vmor %vm3152, %vm3153
  %v3155 = vsel %vm3154, %v3146, %v3151
  %v3156 = vmul.f32 %v3129, %v3155
  %v3157 = vmul.f32 %v3130, %v3155
  %v3158 = vmul.f32 %v3131, %v3155
  %v3159 = vmul.f32 %v3132, %v3155
  %v3160 = vmul.f32 %v3133, %v3155
  %v3161 = vmul.f32 %v3134, %v3155
  %v3162 = vmul.f32 %v3135, %v3155
  %v3163 = vmul.f32 %v3136, %v3155
  %v3164 = vmul.f32 %v3137, %v3155
  %v3165 = vmul.f32 %v3138, %v3155
  %v3166 = vmul.f32 %v3139, %v3155
  %v3167 = vmul.f32 %v3140, %v3155
  %v3168 = vmul.f32 %v3141, %v3155
  %v3169 = vmul.f32 %v3142, %v3155
  %v3170 = vmul.f32 %v3143, %v3155
  %v3171 = vmul.f32 %v3144, %v3155
  %v3172 = vmax.f32 %v3156, 0.0
  %v3173 = vmax.f32 %v3157, 0.0
  %v3174 = vmax.f32 %v3158, 0.0
  %v3175 = vmax.f32 %v3159, 0.0
  %v3176 = vmax.f32 %v3160, 0.0
  %v3177 = vmax.f32 %v3161, 0.0
  %v3178 = vmax.f32 %v3162, 0.0
  %v3179 = vmax.f32 %v3163, 0.0
  %v3180 = vmax.f32 %v3164, 0.0
  %v3181 = vmax.f32 %v3165, 0.0
  %v3182 = vmax.f32 %v3166, 0.0
  %v3183 = vmax.f32 %v3167, 0.0
  %v3184 = vmax.f32 %v3168, 0.0
  %v3185 = vmax.f32 %v3169, 0.0
  %v3186 = vmax.f32 %v3170, 0.0
  %v3187 = vmax.f32 %v3171, 0.0
  %v3188 = vperm.slane %v1122, 0
  %v3189 = vperm.slane %v1125, 0
  %v3190 = vperm.slane %v1128, 0
  %v3191 = vperm.slane %v1131, 0
  %v3192 = vperm.slane %v1134, 0
  %v3193 = vperm.slane %v1137, 0
  %v3194 = vperm.slane %v1140, 0
  %v3195 = vperm.slane %v1143, 0
  %v3196 = vmul.f32 %v3188, %v3172
  %v3197 = vmul.f32 %v3188, %v3173
  %v3198 = vmul.f32 %v3189, %v3172
  %v3199 = vmul.f32 %v3189, %v3173
  %v3200 = vmul.f32 %v3190, %v3172
  %v3201 = vmul.f32 %v3190, %v3173
  %v3202 = vmul.f32 %v3191, %v3172
  %v3203 = vmul.f32 %v3191, %v3173
  %v3204 = vmul.f32 %v3192, %v3172
  %v3205 = vmul.f32 %v3192, %v3173
  %v3206 = vmul.f32 %v3193, %v3172
  %v3207 = vmul.f32 %v3193, %v3173
  %v3208 = vmul.f32 %v3194, %v3172
  %v3209 = vmul.f32 %v3194, %v3173
  %v3210 = vmul.f32 %v3195, %v3172
  %v3211 = vmul.f32 %v3195, %v3173
  %v3212 = vperm.slane %v1122, 1
  %v3213 = vperm.slane %v1125, 1
  %v3214 = vperm.slane %v1128, 1
  %v3215 = vperm.slane %v1131, 1
  %v3216 = vperm.slane %v1134, 1
  %v3217 = vperm.slane %v1137, 1
  %v3218 = vperm.slane %v1140, 1
  %v3219 = vperm.slane %v1143, 1
  %v3220 = vmul.f32 %v3212, %v3174
  %v3221 = vmul.f32 %v3212, %v3175
  %v3222 = vmul.f32 %v3213, %v3174
  %v3223 = vmul.f32 %v3213, %v3175
  %v3224 = vmul.f32 %v3214, %v3174
  %v3225 = vmul.f32 %v3214, %v3175
  %v3226 = vmul.f32 %v3215, %v3174
  %v3227 = vmul.f32 %v3215, %v3175
  %v3228 = vmul.f32 %v3216, %v3174
  %v3229 = vmul.f32 %v3216, %v3175
  %v3230 = vmul.f32 %v3217, %v3174
  %v3231 = vmul.f32 %v3217, %v3175
  %v3232 = vmul.f32 %v3218, %v3174
  %v3233 = vmul.f32 %v3218, %v3175
  %v3234 = vmul.f32 %v3219, %v3174
  %v3235 = vmul.f32 %v3219, %v3175
  %v3236 = vadd.f32 %v3196, %v3220
  %v3237 = vadd.f32 %v3197, %v3221
  %v3238 = vadd.f32 %v3198, %v3222
  %v3239 = vadd.f32 %v3199, %v3223
  %v3240 = vadd.f32 %v3200, %v3224
  %v3241 = vadd.f32 %v3201, %v3225
  %v3242 = vadd.f32 %v3202, %v3226
  %v3243 = vadd.f32 %v3203, %v3227
  %v3244 = vadd.f32 %v3204, %v3228
  %v3245 = vadd.f32 %v3205, %v3229
  %v3246 = vadd.f32 %v3206, %v3230
  %v3247 = vadd.f32 %v3207, %v3231
  %v3248 = vadd.f32 %v3208, %v3232
  %v3249 = vadd.f32 %v3209, %v3233
  %v3250 = vadd.f32 %v3210, %v3234
  %v3251 = vadd.f32 %v3211, %v3235
  %v3252 = vperm.slane %v1122, 2
  %v3253 = vperm.slane %v1125, 2
  %v3254 = vperm.slane %v1128, 2
  %v3255 = vperm.slane %v1131, 2
  %v3256 = vperm.slane %v1134, 2
  %v3257 = vperm.slane %v1137, 2
  %v3258 = vperm.slane %v1140, 2
  %v3259 = vperm.slane %v1143, 2
  %v3260 = vmul.f32 %v3252, %v3176
  %v3261 = vmul.f32 %v3252, %v3177
  %v3262 = vmul.f32 %v3253, %v3176
  %v3263 = vmul.f32 %v3253, %v3177
  %v3264 = vmul.f32 %v3254, %v3176
  %v3265 = vmul.f32 %v3254, %v3177
  %v3266 = vmul.f32 %v3255, %v3176
  %v3267 = vmul.f32 %v3255, %v3177
  %v3268 = vmul.f32 %v3256, %v3176
  %v3269 = vmul.f32 %v3256, %v3177
  %v3270 = vmul.f32 %v3257, %v3176
  %v3271 = vmul.f32 %v3257, %v3177
  %v3272 = vmul.f32 %v3258, %v3176
  %v3273 = vmul.f32 %v3258, %v3177
  %v3274 = vmul.f32 %v3259, %v3176
  %v3275 = vmul.f32 %v3259, %v3177
  %v3276 = vadd.f32 %v3236, %v3260
  %v3277 = vadd.f32 %v3237, %v3261
  %v3278 = vadd.f32 %v3238, %v3262
  %v3279 = vadd.f32 %v3239, %v3263
  %v3280 = vadd.f32 %v3240, %v3264
  %v3281 = vadd.f32 %v3241, %v3265
  %v3282 = vadd.f32 %v3242, %v3266
  %v3283 = vadd.f32 %v3243, %v3267
  %v3284 = vadd.f32 %v3244, %v3268
  %v3285 = vadd.f32 %v3245, %v3269
  %v3286 = vadd.f32 %v3246, %v3270
  %v3287 = vadd.f32 %v3247, %v3271
  %v3288 = vadd.f32 %v3248, %v3272
  %v3289 = vadd.f32 %v3249, %v3273
  %v3290 = vadd.f32 %v3250, %v3274
  %v3291 = vadd.f32 %v3251, %v3275
  %v3292 = vperm.slane %v1122, 3
  %v3293 = vperm.slane %v1125, 3
  %v3294 = vperm.slane %v1128, 3
  %v3295 = vperm.slane %v1131, 3
  %v3296 = vperm.slane %v1134, 3
  %v3297 = vperm.slane %v1137, 3
  %v3298 = vperm.slane %v1140, 3
  %v3299 = vperm.slane %v1143, 3
  %v3300 = vmul.f32 %v3292, %v3178
  %v3301 = vmul.f32 %v3292, %v3179
  %v3302 = vmul.f32 %v3293, %v3178
  %v3303 = vmul.f32 %v3293, %v3179
  %v3304 = vmul.f32 %v3294, %v3178
  %v3305 = vmul.f32 %v3294, %v3179
  %v3306 = vmul.f32 %v3295, %v3178
  %v3307 = vmul.f32 %v3295, %v3179
  %v3308 = vmul.f32 %v3296, %v3178
  %v3309 = vmul.f32 %v3296, %v3179
  %v3310 = vmul.f32 %v3297, %v3178
  %v3311 = vmul.f32 %v3297, %v3179
  %v3312 = vmul.f32 %v3298, %v3178
  %v3313 = vmul.f32 %v3298, %v3179
  %v3314 = vmul.f32 %v3299, %v3178
  %v3315 = vmul.f32 %v3299, %v3179
  %v3316 = vadd.f32 %v3276, %v3300
  %v3317 = vadd.f32 %v3277, %v3301
  %v3318 = vadd.f32 %v3278, %v3302
  %v3319 = vadd.f32 %v3279, %v3303
  %v3320 = vadd.f32 %v3280, %v3304
  %v3321 = vadd.f32 %v3281, %v3305
  %v3322 = vadd.f32 %v3282, %v3306
  %v3323 = vadd.f32 %v3283, %v3307
  %v3324 = vadd.f32 %v3284, %v3308
  %v3325 = vadd.f32 %v3285, %v3309
  %v3326 = vadd.f32 %v3286, %v3310
  %v3327 = vadd.f32 %v3287, %v3311
  %v3328 = vadd.f32 %v3288, %v3312
  %v3329 = vadd.f32 %v3289, %v3313
  %v3330 = vadd.f32 %v3290, %v3314
  %v3331 = vadd.f32 %v3291, %v3315
  %v3332 = vperm.slane %v1122, 4
  %v3333 = vperm.slane %v1125, 4
  %v3334 = vperm.slane %v1128, 4
  %v3335 = vperm.slane %v1131, 4
  %v3336 = vperm.slane %v1134, 4
  %v3337 = vperm.slane %v1137, 4
  %v3338 = vperm.slane %v1140, 4
  %v3339 = vperm.slane %v1143, 4
  %v3340 = vmul.f32 %v3332, %v3180
  %v3341 = vmul.f32 %v3332, %v3181
  %v3342 = vmul.f32 %v3333, %v3180
  %v3343 = vmul.f32 %v3333, %v3181
  %v3344 = vmul.f32 %v3334, %v3180
  %v3345 = vmul.f32 %v3334, %v3181
  %v3346 = vmul.f32 %v3335, %v3180
  %v3347 = vmul.f32 %v3335, %v3181
  %v3348 = vmul.f32 %v3336, %v3180
  %v3349 = vmul.f32 %v3336, %v3181
  %v3350 = vmul.f32 %v3337, %v3180
  %v3351 = vmul.f32 %v3337, %v3181
  %v3352 = vmul.f32 %v3338, %v3180
  %v3353 = vmul.f32 %v3338, %v3181
  %v3354 = vmul.f32 %v3339, %v3180
  %v3355 = vmul.f32 %v3339, %v3181
  %v3356 = vadd.f32 %v3316, %v3340
  %v3357 = vadd.f32 %v3317, %v3341
  %v3358 = vadd.f32 %v3318, %v3342
  %v3359 = vadd.f32 %v3319, %v3343
  %v3360 = vadd.f32 %v3320, %v3344
  %v3361 = vadd.f32 %v3321, %v3345
  %v3362 = vadd.f32 %v3322, %v3346
  %v3363 = vadd.f32 %v3323, %v3347
  %v3364 = vadd.f32 %v3324, %v3348
  %v3365 = vadd.f32 %v3325, %v3349
  %v3366 = vadd.f32 %v3326, %v3350
  %v3367 = vadd.f32 %v3327, %v3351
  %v3368 = vadd.f32 %v3328, %v3352
  %v3369 = vadd.f32 %v3329, %v3353
  %v3370 = vadd.f32 %v3330, %v3354
  %v3371 = vadd.f32 %v3331, %v3355
  %v3372 = vperm.slane %v1122, 5
  %v3373 = vperm.slane %v1125, 5
  %v3374 = vperm.slane %v1128, 5
  %v3375 = vperm.slane %v1131, 5
  %v3376 = vperm.slane %v1134, 5
  %v3377 = vperm.slane %v1137, 5
  %v3378 = vperm.slane %v1140, 5
  %v3379 = vperm.slane %v1143, 5
  %v3380 = vmul.f32 %v3372, %v3182
  %v3381 = vmul.f32 %v3372, %v3183
  %v3382 = vmul.f32 %v3373, %v3182
  %v3383 = vmul.f32 %v3373, %v3183
  %v3384 = vmul.f32 %v3374, %v3182
  %v3385 = vmul.f32 %v3374, %v3183
  %v3386 = vmul.f32 %v3375, %v3182
  %v3387 = vmul.f32 %v3375, %v3183
  %v3388 = vmul.f32 %v3376, %v3182
  %v3389 = vmul.f32 %v3376, %v3183
  %v3390 = vmul.f32 %v3377, %v3182
  %v3391 = vmul.f32 %v3377, %v3183
  %v3392 = vmul.f32 %v3378, %v3182
  %v3393 = vmul.f32 %v3378, %v3183
  %v3394 = vmul.f32 %v3379, %v3182
  %v3395 = vmul.f32 %v3379, %v3183
  %v3396 = vadd.f32 %v3356, %v3380
  %v3397 = vadd.f32 %v3357, %v3381
  %v3398 = vadd.f32 %v3358, %v3382
  %v3399 = vadd.f32 %v3359, %v3383
  %v3400 = vadd.f32 %v3360, %v3384
  %v3401 = vadd.f32 %v3361, %v3385
  %v3402 = vadd.f32 %v3362, %v3386
  %v3403 = vadd.f32 %v3363, %v3387
  %v3404 = vadd.f32 %v3364, %v3388
  %v3405 = vadd.f32 %v3365, %v3389
  %v3406 = vadd.f32 %v3366, %v3390
  %v3407 = vadd.f32 %v3367, %v3391
  %v3408 = vadd.f32 %v3368, %v3392
  %v3409 = vadd.f32 %v3369, %v3393
  %v3410 = vadd.f32 %v3370, %v3394
  %v3411 = vadd.f32 %v3371, %v3395
  %v3412 = vperm.slane %v1122, 6
  %v3413 = vperm.slane %v1125, 6
  %v3414 = vperm.slane %v1128, 6
  %v3415 = vperm.slane %v1131, 6
  %v3416 = vperm.slane %v1134, 6
  %v3417 = vperm.slane %v1137, 6
  %v3418 = vperm.slane %v1140, 6
  %v3419 = vperm.slane %v1143, 6
  %v3420 = vmul.f32 %v3412, %v3184
  %v3421 = vmul.f32 %v3412, %v3185
  %v3422 = vmul.f32 %v3413, %v3184
  %v3423 = vmul.f32 %v3413, %v3185
  %v3424 = vmul.f32 %v3414, %v3184
  %v3425 = vmul.f32 %v3414, %v3185
  %v3426 = vmul.f32 %v3415, %v3184
  %v3427 = vmul.f32 %v3415, %v3185
  %v3428 = vmul.f32 %v3416, %v3184
  %v3429 = vmul.f32 %v3416, %v3185
  %v3430 = vmul.f32 %v3417, %v3184
  %v3431 = vmul.f32 %v3417, %v3185
  %v3432 = vmul.f32 %v3418, %v3184
  %v3433 = vmul.f32 %v3418, %v3185
  %v3434 = vmul.f32 %v3419, %v3184
  %v3435 = vmul.f32 %v3419, %v3185
  %v3436 = vadd.f32 %v3396, %v3420
  %v3437 = vadd.f32 %v3397, %v3421
  %v3438 = vadd.f32 %v3398, %v3422
  %v3439 = vadd.f32 %v3399, %v3423
  %v3440 = vadd.f32 %v3400, %v3424
  %v3441 = vadd.f32 %v3401, %v3425
  %v3442 = vadd.f32 %v3402, %v3426
  %v3443 = vadd.f32 %v3403, %v3427
  %v3444 = vadd.f32 %v3404, %v3428
  %v3445 = vadd.f32 %v3405, %v3429
  %v3446 = vadd.f32 %v3406, %v3430
  %v3447 = vadd.f32 %v3407, %v3431
  %v3448 = vadd.f32 %v3408, %v3432
  %v3449 = vadd.f32 %v3409, %v3433
  %v3450 = vadd.f32 %v3410, %v3434
  %v3451 = vadd.f32 %v3411, %v3435
  %v3452 = vperm.slane %v1122, 7
  %v3453 = vperm.slane %v1125, 7
  %v3454 = vperm.slane %v1128, 7
  %v3455 = vperm.slane %v1131, 7
  %v3456 = vperm.slane %v1134, 7
  %v3457 = vperm.slane %v1137, 7
  %v3458 = vperm.slane %v1140, 7
  %v3459 = vperm.slane %v1143, 7
  %v3460 = vmul.f32 %v3452, %v3186
  %v3461 = vmul.f32 %v3452, %v3187
  %v3462 = vmul.f32 %v3453, %v3186
  %v3463 = vmul.f32 %v3453, %v3187
  %v3464 = vmul.f32 %v3454, %v3186
  %v3465 = vmul.f32 %v3454, %v3187
  %v3466 = vmul.f32 %v3455, %v3186
  %v3467 = vmul.f32 %v3455, %v3187
  %v3468 = vmul.f32 %v3456, %v3186
  %v3469 = vmul.f32 %v3456, %v3187
  %v3470 = vmul.f32 %v3457, %v3186
  %v3471 = vmul.f32 %v3457, %v3187
  %v3472 = vmul.f32 %v3458, %v3186
  %v3473 = vmul.f32 %v3458, %v3187
  %v3474 = vmul.f32 %v3459, %v3186
  %v3475 = vmul.f32 %v3459, %v3187
  %v3476 = vadd.f32 %v3436, %v3460
  %v3477 = vadd.f32 %v3437, %v3461
  %v3478 = vadd.f32 %v3438, %v3462
  %v3479 = vadd.f32 %v3439, %v3463
  %v3480 = vadd.f32 %v3440, %v3464
  %v3481 = vadd.f32 %v3441, %v3465
  %v3482 = vadd.f32 %v3442, %v3466
  %v3483 = vadd.f32 %v3443, %v3467
  %v3484 = vadd.f32 %v3444, %v3468
  %v3485 = vadd.f32 %v3445, %v3469
  %v3486 = vadd.f32 %v3446, %v3470
  %v3487 = vadd.f32 %v3447, %v3471
  %v3488 = vadd.f32 %v3448, %v3472
  %v3489 = vadd.f32 %v3449, %v3473
  %v3490 = vadd.f32 %v3450, %v3474
  %v3491 = vadd.f32 %v3451, %v3475
  %v3492 = vadd.f32 %v3476, %v3477
  %v3493 = vadd.f32 %v3492, %v3478
  %v3494 = vadd.f32 %v3493, %v3479
  %v3495 = vadd.f32 %v3494, %v3480
  %v3496 = vadd.f32 %v3495, %v3481
  %v3497 = vadd.f32 %v3496, %v3482
  %v3498 = vadd.f32 %v3497, %v3483
  %v3499 = vadd.f32 %v3498, %v3484
  %v3500 = vadd.f32 %v3499, %v3485
  %v3501 = vadd.f32 %v3500, %v3486
  %v3502 = vadd.f32 %v3501, %v3487
  %v3503 = vadd.f32 %v3502, %v3488
  %v3504 = vadd.f32 %v3503, %v3489
  %v3505 = vadd.f32 %v3504, %v3490
  %v3506 = vadd.f32 %v3505, %v3491
  %v3507 = vrot.slane %v3506, 4
  %v3508 = vadd.f32 %v3506, %v3507
  %v3509 = vrot.slane %v3508, 2
  %v3510 = vadd.f32 %v3508, %v3509
  %v3511 = vrot.slane %v3510, 1
  %v3512 = vadd.f32 %v3510, %v3511
  %v3513 = vmul.f32 %v3476, %v3476
  %v3514 = vmul.f32 %v3477, %v3477
  %v3515 = vmul.f32 %v3478, %v3478
  %v3516 = vmul.f32 %v3479, %v3479
  %v3517 = vmul.f32 %v3480, %v3480
  %v3518 = vmul.f32 %v3481, %v3481
  %v3519 = vmul.f32 %v3482, %v3482
  %v3520 = vmul.f32 %v3483, %v3483
  %v3521 = vmul.f32 %v3484, %v3484
  %v3522 = vmul.f32 %v3485, %v3485
  %v3523 = vmul.f32 %v3486, %v3486
  %v3524 = vmul.f32 %v3487, %v3487
  %v3525 = vmul.f32 %v3488, %v3488
  %v3526 = vmul.f32 %v3489, %v3489
  %v3527 = vmul.f32 %v3490, %v3490
  %v3528 = vmul.f32 %v3491, %v3491
  %v3529 = vadd.f32 %v3513, %v3514
  %v3530 = vadd.f32 %v3529, %v3515
  %v3531 = vadd.f32 %v3530, %v3516
  %v3532 = vadd.f32 %v3531, %v3517
  %v3533 = vadd.f32 %v3532, %v3518
  %v3534 = vadd.f32 %v3533, %v3519
  %v3535 = vadd.f32 %v3534, %v3520
  %v3536 = vadd.f32 %v3535, %v3521
  %v3537 = vadd.f32 %v3536, %v3522
  %v3538 = vadd.f32 %v3537, %v3523
  %v3539 = vadd.f32 %v3538, %v3524
  %v3540 = vadd.f32 %v3539, %v3525
  %v3541 = vadd.f32 %v3540, %v3526
  %v3542 = vadd.f32 %v3541, %v3527
  %v3543 = vadd.f32 %v3542, %v3528
  %v3544 = vrot.slane %v3543, 4
  %v3545 = vadd.f32 %v3543, %v3544
  %v3546 = vrot.slane %v3545, 2
  %v3547 = vadd.f32 %v3545, %v3546
  %v3548 = vrot.slane %v3547, 1
  %v3549 = vadd.f32 %v3547, %v3548
  %v3550 = vmul.f32 %v3512, 0.0078125
  %v3551 = vmul.f32 %v3549, 0.0078125
  %v3552 = vmul.f32 %v3550, %v3550
  %v3553 = vsub.f32 %v3551, %v3552
  %v3554 = vsub.f32 %v3476, %v3550
  %v3555 = vsub.f32 %v3477, %v3550
  %v3556 = vsub.f32 %v3478, %v3550
  %v3557 = vsub.f32 %v3479, %v3550
  %v3558 = vsub.f32 %v3480, %v3550
  %v3559 = vsub.f32 %v3481, %v3550
  %v3560 = vsub.f32 %v3482, %v3550
  %v3561 = vsub.f32 %v3483, %v3550
  %v3562 = vsub.f32 %v3484, %v3550
  %v3563 = vsub.f32 %v3485, %v3550
  %v3564 = vsub.f32 %v3486, %v3550
  %v3565 = vsub.f32 %v3487, %v3550
  %v3566 = vsub.f32 %v3488, %v3550
  %v3567 = vsub.f32 %v3489, %v3550
  %v3568 = vsub.f32 %v3490, %v3550
  %v3569 = vsub.f32 %v3491, %v3550
  %v3570 = vadd.f32 %v3553, 1e-05
  %v3571 = vrsqrt.pop %v3570
  %v3572 = vmul.f32 %v3571, %v3570
  %v3573 = vmul.f32 %v3572, %v3571
  %v3574 = vmul.f32 0.5, %v3573
  %v3575 = vsub.f32 1.5, %v3574
  %v3576 = vmul.f32 %v3571, %v3575
  %vm3577 = vweird.f32 %v3570
  %vm3578 = vweird.f32 %v3571
  %vm3579 = vmor %vm3577, %vm3578
  %v3580 = vsel %vm3579, %v3571, %v3576
  %v3581 = vmul.f32 %v3554, %v3580
  %v3582 = vmul.f32 %v3555, %v3580
  %v3583 = vmul.f32 %v3556, %v3580
  %v3584 = vmul.f32 %v3557, %v3580
  %v3585 = vmul.f32 %v3558, %v3580
  %v3586 = vmul.f32 %v3559, %v3580
  %v3587 = vmul.f32 %v3560, %v3580
  %v3588 = vmul.f32 %v3561, %v3580
  %v3589 = vmul.f32 %v3562, %v3580
  %v3590 = vmul.f32 %v3563, %v3580
  %v3591 = vmul.f32 %v3564, %v3580
  %v3592 = vmul.f32 %v3565, %v3580
  %v3593 = vmul.f32 %v3566, %v3580
  %v3594 = vmul.f32 %v3567, %v3580
  %v3595 = vmul.f32 %v3568, %v3580
  %v3596 = vmul.f32 %v3569, %v3580
  %v3597 = vmax.f32 %v3581, 0.0
  %v3598 = vmax.f32 %v3582, 0.0
  %v3599 = vmax.f32 %v3583, 0.0
  %v3600 = vmax.f32 %v3584, 0.0
  %v3601 = vmax.f32 %v3585, 0.0
  %v3602 = vmax.f32 %v3586, 0.0
  %v3603 = vmax.f32 %v3587, 0.0
  %v3604 = vmax.f32 %v3588, 0.0
  %v3605 = vmax.f32 %v3589, 0.0
  %v3606 = vmax.f32 %v3590, 0.0
  %v3607 = vmax.f32 %v3591, 0.0
  %v3608 = vmax.f32 %v3592, 0.0
  %v3609 = vmax.f32 %v3593, 0.0
  %v3610 = vmax.f32 %v3594, 0.0
  %v3611 = vmax.f32 %v3595, 0.0
  %v3612 = vmax.f32 %v3596, 0.0
  %3613 = vxpose.xlu0.b32.start [1/16] %v3597, 128
  %3614 = vxpose.xlu0.b32.cont [2/16] %v3598, 128
  %3615 = vxpose.xlu0.b32.cont [3/16] %v3599, 128
  %3616 = vxpose.xlu0.b32.cont [4/16] %v3600, 128
  %3617 = vxpose.xlu0.b32.cont [5/16] %v3601, 128
  %3618 = vxpose.xlu0.b32.cont [6/16] %v3602, 128
  %3619 = vxpose.xlu0.b32.cont [7/16] %v3603, 128
  %3620 = vxpose.xlu0.b32.cont [8/16] %v3604, 128
  %3621 = vxpose.xlu0.b32.cont [9/16] %v3605, 128
  %3622 = vxpose.xlu0.b32.cont [10/16] %v3606, 128
  %3623 = vxpose.xlu0.b32.cont [11/16] %v3607, 128
  %3624 = vxpose.xlu0.b32.cont [12/16] %v3608, 128
  %3625 = vxpose.xlu0.b32.cont [13/16] %v3609, 128
  %3626 = vxpose.xlu0.b32.cont [14/16] %v3610, 128
  %3627 = vxpose.xlu0.b32.cont [15/16] %v3611, 128
  %3628 = vxpose.xlu0.b32.end [16/16] %v3612, 128
  %v3629 = vpop.trf.xlu0
  %v3630 = vpop.trf.xlu0
  %v3631 = vpop.trf.xlu0
  %v3632 = vpop.trf.xlu0
  %v3633 = vpop.trf.xlu0
  %v3634 = vpop.trf.xlu0
  %v3635 = vpop.trf.xlu0
  %v3636 = vpop.trf.xlu0
  %v3637 = vpop.trf.xlu0
  %v3638 = vpop.trf.xlu0
  %v3639 = vpop.trf.xlu0
  %v3640 = vpop.trf.xlu0
  %v3641 = vpop.trf.xlu0
  %v3642 = vpop.trf.xlu0
  %v3643 = vpop.trf.xlu0
  %v3644 = vpop.trf.xlu0
  %3645 = vmatpush.msra.mxu0 %v1272
  %3646 = vmatpush.msra.mxu0 %v1271
  %3647 = vmatpush.msra.mxu0 %v1270
  %3648 = vmatpush.msra.mxu0 %v1269
  %3649 = vmatpush.msra.mxu0 %v1268
  %3650 = vmatpush.msra.mxu0 %v1267
  %3651 = vmatpush.msra.mxu0 %v1266
  %3652 = vmatpush.msra.mxu0 %v1265
  %3653 = vmatpush.msra.mxu0 %v1264
  %3654 = vmatpush.msra.mxu0 %v1263
  %3655 = vmatpush.msra.mxu0 %v1262
  %3656 = vmatpush.msra.mxu0 %v1261
  %3657 = vmatpush.msra.mxu0 %v1260
  %3658 = vmatpush.msra.mxu0 %v1259
  %3659 = vmatpush.msra.mxu0 %v1258
  %3660 = vmatpush.msra.mxu0 %v1257
  %3661 = vmatmul.f32.gmra.mxu0 %v3629
  %v3662 = vpop.f32.mrf.mxu0
  %v3663 = vadd.f32 0.0, %v3662
  %3664 = vmatmul.f32.gmra.mxu0 %v3630
  %v3665 = vpop.f32.mrf.mxu0
  %v3666 = vadd.f32 0.0, %v3665
  %3667 = vmatmul.f32.gmra.mxu0 %v3631
  %v3668 = vpop.f32.mrf.mxu0
  %v3669 = vadd.f32 0.0, %v3668
  %3670 = vmatmul.f32.gmra.mxu0 %v3632
  %v3671 = vpop.f32.mrf.mxu0
  %v3672 = vadd.f32 0.0, %v3671
  %3673 = vmatmul.f32.gmra.mxu0 %v3633
  %v3674 = vpop.f32.mrf.mxu0
  %v3675 = vadd.f32 0.0, %v3674
  %3676 = vmatmul.f32.gmra.mxu0 %v3634
  %v3677 = vpop.f32.mrf.mxu0
  %v3678 = vadd.f32 0.0, %v3677
  %3679 = vmatmul.f32.gmra.mxu0 %v3635
  %v3680 = vpop.f32.mrf.mxu0
  %v3681 = vadd.f32 0.0, %v3680
  %3682 = vmatmul.f32.gmra.mxu0 %v3636
  %v3683 = vpop.f32.mrf.mxu0
  %v3684 = vadd.f32 0.0, %v3683
  %3685 = vmatmul.f32.gmra.mxu0 %v3637
  %v3686 = vpop.f32.mrf.mxu0
  %v3687 = vadd.f32 0.0, %v3686
  %3688 = vmatmul.f32.gmra.mxu0 %v3638
  %v3689 = vpop.f32.mrf.mxu0
  %v3690 = vadd.f32 0.0, %v3689
  %3691 = vmatmul.f32.gmra.mxu0 %v3639
  %v3692 = vpop.f32.mrf.mxu0
  %v3693 = vadd.f32 0.0, %v3692
  %3694 = vmatmul.f32.gmra.mxu0 %v3640
  %v3695 = vpop.f32.mrf.mxu0
  %v3696 = vadd.f32 0.0, %v3695
  %3697 = vmatmul.f32.gmra.mxu0 %v3641
  %v3698 = vpop.f32.mrf.mxu0
  %v3699 = vadd.f32 0.0, %v3698
  %3700 = vmatmul.f32.gmra.mxu0 %v3642
  %v3701 = vpop.f32.mrf.mxu0
  %v3702 = vadd.f32 0.0, %v3701
  %3703 = vmatmul.f32.gmra.mxu0 %v3643
  %v3704 = vpop.f32.mrf.mxu0
  %v3705 = vadd.f32 0.0, %v3704
  %3706 = vmatmul.f32.gmra.mxu0 %v3644
  %v3707 = vpop.f32.mrf.mxu0
  %v3708 = vadd.f32 0.0, %v3707
  %3709 = vdwg.mxu0
  %3710 = vxpose.xlu0.b32.start [1/16] %v2427, 128
  %3711 = vxpose.xlu0.b32.cont [2/16] %v2428, 128
  %3712 = vxpose.xlu0.b32.cont [3/16] %v2429, 128
  %3713 = vxpose.xlu0.b32.cont [4/16] %v2430, 128
  %3714 = vxpose.xlu0.b32.cont [5/16] %v2431, 128
  %3715 = vxpose.xlu0.b32.cont [6/16] %v2432, 128
  %3716 = vxpose.xlu0.b32.cont [7/16] %v2433, 128
  %3717 = vxpose.xlu0.b32.cont [8/16] %v2434, 128
  %3718 = vxpose.xlu0.b32.cont [9/16] %v2435, 128
  %3719 = vxpose.xlu0.b32.cont [10/16] %v2436, 128
  %3720 = vxpose.xlu0.b32.cont [11/16] %v2437, 128
  %3721 = vxpose.xlu0.b32.cont [12/16] %v2438, 128
  %3722 = vxpose.xlu0.b32.cont [13/16] %v2439, 128
  %3723 = vxpose.xlu0.b32.cont [14/16] %v2440, 128
  %3724 = vxpose.xlu0.b32.cont [15/16] %v2441, 128
  %3725 = vxpose.xlu0.b32.end [16/16] %v2442, 128
  %v3726 = vpop.trf.xlu0
  %v3727 = vpop.trf.xlu0
  %v3728 = vpop.trf.xlu0
  %v3729 = vpop.trf.xlu0
  %v3730 = vpop.trf.xlu0
  %v3731 = vpop.trf.xlu0
  %v3732 = vpop.trf.xlu0
  %v3733 = vpop.trf.xlu0
  %v3734 = vpop.trf.xlu0
  %v3735 = vpop.trf.xlu0
  %v3736 = vpop.trf.xlu0
  %v3737 = vpop.trf.xlu0
  %v3738 = vpop.trf.xlu0
  %v3739 = vpop.trf.xlu0
  %v3740 = vpop.trf.xlu0
  %v3741 = vpop.trf.xlu0
  %3742 = vmatpush.msra.mxu0 %v1256
  %3743 = vmatpush.msra.mxu0 %v1255
  %3744 = vmatpush.msra.mxu0 %v1254
  %3745 = vmatpush.msra.mxu0 %v1253
  %3746 = vmatpush.msra.mxu0 %v1252
  %3747 = vmatpush.msra.mxu0 %v1251
  %3748 = vmatpush.msra.mxu0 %v1250
  %3749 = vmatpush.msra.mxu0 %v1249
  %3750 = vmatpush.msra.mxu0 %v1248
  %3751 = vmatpush.msra.mxu0 %v1247
  %3752 = vmatpush.msra.mxu0 %v1246
  %3753 = vmatpush.msra.mxu0 %v1245
  %3754 = vmatpush.msra.mxu0 %v1244
  %3755 = vmatpush.msra.mxu0 %v1243
  %3756 = vmatpush.msra.mxu0 %v1242
  %3757 = vmatpush.msra.mxu0 %v1241
  %3758 = vmatmul.f32.gmra.mxu0 %v3726
  %v3759 = vpop.f32.mrf.mxu0
  %v3760 = vadd.f32 %v3663, %v3759
  %3761 = vmatmul.f32.gmra.mxu0 %v3727
  %v3762 = vpop.f32.mrf.mxu0
  %v3763 = vadd.f32 %v3666, %v3762
  %3764 = vmatmul.f32.gmra.mxu0 %v3728
  %v3765 = vpop.f32.mrf.mxu0
  %v3766 = vadd.f32 %v3669, %v3765
  %3767 = vmatmul.f32.gmra.mxu0 %v3729
  %v3768 = vpop.f32.mrf.mxu0
  %v3769 = vadd.f32 %v3672, %v3768
  %3770 = vmatmul.f32.gmra.mxu0 %v3730
  %v3771 = vpop.f32.mrf.mxu0
  %v3772 = vadd.f32 %v3675, %v3771
  %3773 = vmatmul.f32.gmra.mxu0 %v3731
  %v3774 = vpop.f32.mrf.mxu0
  %v3775 = vadd.f32 %v3678, %v3774
  %3776 = vmatmul.f32.gmra.mxu0 %v3732
  %v3777 = vpop.f32.mrf.mxu0
  %v3778 = vadd.f32 %v3681, %v3777
  %3779 = vmatmul.f32.gmra.mxu0 %v3733
  %v3780 = vpop.f32.mrf.mxu0
  %v3781 = vadd.f32 %v3684, %v3780
  %3782 = vmatmul.f32.gmra.mxu0 %v3734
  %v3783 = vpop.f32.mrf.mxu0
  %v3784 = vadd.f32 %v3687, %v3783
  %3785 = vmatmul.f32.gmra.mxu0 %v3735
  %v3786 = vpop.f32.mrf.mxu0
  %v3787 = vadd.f32 %v3690, %v3786
  %3788 = vmatmul.f32.gmra.mxu0 %v3736
  %v3789 = vpop.f32.mrf.mxu0
  %v3790 = vadd.f32 %v3693, %v3789
  %3791 = vmatmul.f32.gmra.mxu0 %v3737
  %v3792 = vpop.f32.mrf.mxu0
  %v3793 = vadd.f32 %v3696, %v3792
  %3794 = vmatmul.f32.gmra.mxu0 %v3738
  %v3795 = vpop.f32.mrf.mxu0
  %v3796 = vadd.f32 %v3699, %v3795
  %3797 = vmatmul.f32.gmra.mxu0 %v3739
  %v3798 = vpop.f32.mrf.mxu0
  %v3799 = vadd.f32 %v3702, %v3798
  %3800 = vmatmul.f32.gmra.mxu0 %v3740
  %v3801 = vpop.f32.mrf.mxu0
  %v3802 = vadd.f32 %v3705, %v3801
  %3803 = vmatmul.f32.gmra.mxu0 %v3741
  %v3804 = vpop.f32.mrf.mxu0
  %v3805 = vadd.f32 %v3708, %v3804
  %3806 = vdwg.mxu0
  %v3807 = vld [vmem:[%s5] sm:$0x1]
  %v3809 = vperm.slane %v3807, 0
  %v3811 = vadd.f32 %v3760, %v3809
  %v3812 = vadd.f32 %v3763, %v3809
  %v3813 = vadd.f32 %v3766, %v3809
  %v3814 = vadd.f32 %v3769, %v3809
  %v3815 = vadd.f32 %v3772, %v3809
  %v3816 = vadd.f32 %v3775, %v3809
  %v3817 = vadd.f32 %v3778, %v3809
  %v3818 = vadd.f32 %v3781, %v3809
  %v3819 = vadd.f32 %v3784, %v3809
  %v3820 = vadd.f32 %v3787, %v3809
  %v3821 = vadd.f32 %v3790, %v3809
  %v3822 = vadd.f32 %v3793, %v3809
  %v3823 = vadd.f32 %v3796, %v3809
  %v3824 = vadd.f32 %v3799, %v3809
  %v3825 = vadd.f32 %v3802, %v3809
  %v3826 = vadd.f32 %v3805, %v3809
  %v3827 = vadd.f32 %v23, %v3811
  %v3828 = vadd.f32 %v24, %v3812
  %v3829 = vadd.f32 %v25, %v3813
  %v3830 = vadd.f32 %v26, %v3814
  %v3831 = vadd.f32 %v27, %v3815
  %v3832 = vadd.f32 %v28, %v3816
  %v3833 = vadd.f32 %v29, %v3817
  %v3834 = vadd.f32 %v30, %v3818
  %v3835 = vadd.f32 %v31, %v3819
  %v3836 = vadd.f32 %v32, %v3820
  %v3837 = vadd.f32 %v33, %v3821
  %v3838 = vadd.f32 %v34, %v3822
  %v3839 = vadd.f32 %v35, %v3823
  %v3840 = vadd.f32 %v36, %v3824
  %v3841 = vadd.f32 %v37, %v3825
  %v3842 = vadd.f32 %v38, %v3826
  %3843 = vst.msk [vmem:[%s6] sm:$0xff] %vm599, %v3827
  %3844 = vst.msk [vmem:[%s6 + $0x8] sm:$0xff] %vm599, %v3828
  %3845 = vst.msk [vmem:[%s6 + $0x10] sm:$0xff] %vm599, %v3829
  %3846 = vst.msk [vmem:[%s6 + $0x18] sm:$0xff] %vm599, %v3830
  %3847 = vst.msk [vmem:[%s6 + $0x20] sm:$0xff] %vm599, %v3831
  %3848 = vst.msk [vmem:[%s6 + $0x28] sm:$0xff] %vm599, %v3832
  %3849 = vst.msk [vmem:[%s6 + $0x30] sm:$0xff] %vm599, %v3833
  %3850 = vst.msk [vmem:[%s6 + $0x38] sm:$0xff] %vm599, %v3834
  %3851 = vst.msk [vmem:[%s6 + $0x40] sm:$0xff] %vm599, %v3835
  %3852 = vst.msk [vmem:[%s6 + $0x48] sm:$0xff] %vm599, %v3836
  %3853 = vst.msk [vmem:[%s6 + $0x50] sm:$0xff] %vm599, %v3837
  %3854 = vst.msk [vmem:[%s6 + $0x58] sm:$0xff] %vm599, %v3838
  %3855 = vst.msk [vmem:[%s6 + $0x60] sm:$0xff] %vm599, %v3839
  %3856 = vst.msk [vmem:[%s6 + $0x68] sm:$0xff] %vm599, %v3840
  %3857 = vst.msk [vmem:[%s6 + $0x70] sm:$0xff] %vm599, %v3841
  %3858 = vst.msk [vmem:[%s6 + $0x78] sm:$0xff] %vm599, %v3842
  // Predicated region
  $region26: #{adaptive_mixing.1} parent=0 // pred_check
    _
  $region27: #{adaptive_mixing.1} parent=0 // pred_check_branch
    %3860 = sbr.rel (0) target = $region29
  $region28: #{adaptive_mixing.1} parent=0 // pred_region
    _
  $region29: #{adaptive_mixing.1} parent=0 // pred_fallthru
    _
  // Predicated region
  $region30: #{adaptive_mixing.1} parent=0 // pred_check
    _
  $region31: #{adaptive_mixing.1} parent=0 // pred_check_branch
    %3862 = sbr.rel (0) target = $region33
  $region32: #{adaptive_mixing.1} parent=0 // pred_region
    _
  $region33: #{adaptive_mixing.1} parent=0 // pred_fallthru
    _

</llo_original>
